<compile_context>
chip_gen: v7x
topology: tpu7x:2x2x1
jax: 0.10.0
libtpu: 0.0.40
codegen_flags: <defaults>
</compile_context>

<pallas_src>
import functools
import math

import jax
import jax.numpy as jnp
from jax import lax
from jax.experimental import pallas as pl
from jax.experimental.pallas import tpu as pltpu

# ---- synthetic, shrunk "bert-base-chinese"-style config ------------------
VOCAB = 100
HIDDEN = 32
N_HEADS = 2
HEAD_DIM = HIDDEN // N_HEADS
N_LAYERS = 2
INTERMEDIATE = 64
MAX_POS = 16
CLASS_NUM = 4
B = 2
S = 8


# ---------------------------- Pallas kernels ------------------------------
def _layernorm(x, g, b):
    mu = jnp.mean(x, axis=-1, keepdims=True)
    var = jnp.mean((x - mu) ** 2, axis=-1, keepdims=True)
    return (x - mu) * lax.rsqrt(var + 1e-12) * g + b


def _encoder_kernel(x_ref, bias_ref,
                    emb_g_ref, emb_b_ref,
                    wqkv_ref, bqkv_ref, wo_ref, bo_ref,
                    ln1_g_ref, ln1_b_ref,
                    w1_ref, b1_ref, w2_ref, b2_ref,
                    ln2_g_ref, ln2_b_ref,
                    cls_w_ref, cls_b_ref,
                    logits_ref):
    """Fused per-batch encoder: emb-LN -> N_LAYERS x (attn + FFN) -> classifier.

    x_ref: (1, S, H) embeddings for this batch element, bias_ref: (1, 1, S)
    additive key mask.  All weights are full-resident stacked slabs.  Output
    logits_ref: (1, S, CLASS_NUM).  Everything stays in VMEM/vregs."""
    x = x_ref[0]                                  # (S, H)
    bias = bias_ref[0]                            # (1, S)
    scale = 1.0 / math.sqrt(HEAD_DIM)

    x = _layernorm(x, emb_g_ref[...], emb_b_ref[...])

    for l in range(N_LAYERS):                     # static unroll over layers
        # merged QKV projection: one (S,H) @ (H,3H) matmul
        qkv = jnp.dot(x, wqkv_ref[l],
                      preferred_element_type=jnp.float32) + bqkv_ref[l]
        wo_l = wo_ref[l]                          # (H, H)

        # all heads handled inside this single kernel via static lane slices;
        # output projection is folded per-head (concat-free): sum_h o_h @ wo[h]
        attn = None
        for h in range(N_HEADS):
            q = qkv[:, h * HEAD_DIM:(h + 1) * HEAD_DIM]
            k = qkv[:, HIDDEN + h * HEAD_DIM:HIDDEN + (h + 1) * HEAD_DIM]
            v = qkv[:, 2 * HIDDEN + h * HEAD_DIM:2 * HIDDEN + (h + 1) * HEAD_DIM]
            s = jnp.einsum("qd,kd->qk", q, k,
                           preferred_element_type=jnp.float32)
            s = s * scale + bias
            m = jnp.max(s, axis=-1, keepdims=True)
            p = jnp.exp(s - m)
            p = p * pl.reciprocal(jnp.sum(p, axis=-1, keepdims=True),
                                  approx=True)   # EUP slot, ~free
            o_h = jnp.dot(p, v, preferred_element_type=jnp.float32)   # (S, Dh)
            contrib = jnp.dot(o_h, wo_l[h * HEAD_DIM:(h + 1) * HEAD_DIM, :],
                              preferred_element_type=jnp.float32)     # (S, H)
            attn = contrib if attn is None else attn + contrib
        attn = attn + bo_ref[l]

        x = _layernorm(attn + x, ln1_g_ref[l], ln1_b_ref[l])

        # fused FFN: the (S, INTERMEDIATE) intermediate never leaves VMEM
        ff = jnp.dot(x, w1_ref[l], preferred_element_type=jnp.float32) + b1_ref[l]
        # TODO(synk): PyTorch BERT uses exact erf GELU; tanh approximation kept
        # for robust Mosaic lowering (tiny numerical divergence).
        ff = jax.nn.gelu(ff, approximate=True)
        ff = jnp.dot(ff, w2_ref[l], preferred_element_type=jnp.float32) + b2_ref[l]
        x = _layernorm(ff + x, ln2_g_ref[l], ln2_b_ref[l])

    logits_ref[0] = (jnp.dot(x, cls_w_ref[...],
                             preferred_element_type=jnp.float32)
                     + cls_b_ref[...])


def bert_encoder_classify(params, tokens, attention_mask):
    """Embeddings (plain-JAX gather) + one fused pallas_call for everything else."""
    b_, s_ = tokens.shape
    emb = params["word_emb"][tokens]                              # (B,S,H) gather
    emb = emb + params["pos_emb"][:s_][None] + params["type_emb"][0][None, None]
    bias = ((attention_mask.astype(jnp.float32) - 1.0) * 1e9).reshape(b_, 1, s_)

    def full(shp):
        return pl.BlockSpec(shp, lambda b: (0,) * len(shp))

    return pl.pallas_call(
        _encoder_kernel,
        grid=(b_,),
        in_specs=[
            pl.BlockSpec((1, s_, HIDDEN), lambda b: (b, 0, 0)),
            pl.BlockSpec((1, 1, s_), lambda b: (b, 0, 0)),
            full((1, HIDDEN)), full((1, HIDDEN)),
            full((N_LAYERS, HIDDEN, 3 * HIDDEN)), full((N_LAYERS, 1, 3 * HIDDEN)),
            full((N_LAYERS, HIDDEN, HIDDEN)), full((N_LAYERS, 1, HIDDEN)),
            full((N_LAYERS, 1, HIDDEN)), full((N_LAYERS, 1, HIDDEN)),
            full((N_LAYERS, HIDDEN, INTERMEDIATE)), full((N_LAYERS, 1, INTERMEDIATE)),
            full((N_LAYERS, INTERMEDIATE, HIDDEN)), full((N_LAYERS, 1, HIDDEN)),
            full((N_LAYERS, 1, HIDDEN)), full((N_LAYERS, 1, HIDDEN)),
            full((HIDDEN, CLASS_NUM)), full((1, CLASS_NUM)),
        ],
        out_specs=pl.BlockSpec((1, s_, CLASS_NUM), lambda b: (b, 0, 0)),
        out_shape=jax.ShapeDtypeStruct((b_, s_, CLASS_NUM), jnp.float32),
        compiler_params=pltpu.CompilerParams(
            dimension_semantics=("parallel",)),       # 2 TCs on v7x, no-op v5e/v6e
    )(emb, bias,
      params["emb_ln_g"], params["emb_ln_b"],
      params["wqkv"], params["bqkv"], params["wo"], params["bo"],
      params["ln1_g"], params["ln1_b"],
      params["w1"], params["b1"], params["w2"], params["b2"],
      params["ln2_g"], params["ln2_b"],
      params["cls_w"], params["cls_b"])


def _crf_nll_kernel(emis_ref, oh_ref, mask_ref, last_oh_ref,
                    trans_t_ref, start_ref, end_ref, llh_ref, *, seq_len):
    """Per-batch CRF log-likelihood.  Inputs are time-major:
       emis/oh: (S,B,C), mask: (S,B,1), last_oh: (B,C),
       trans_t[j,i] = transitions[i,j], start/end: (1,C).  Output llh: (B,1)."""
    trans_t = trans_t_ref[...]
    trans_b = trans_t[None, :, :]          # hoisted broadcast (no per-step re-issue)
    start = start_ref[...]
    end = end_ref[...]

    e0 = emis_ref[0]                       # (B, C)
    oh0 = oh_ref[0]                        # (B, C)
    alpha = start + e0                     # forward variables
    num = jnp.sum(oh0 * (start + e0), axis=-1, keepdims=True)   # gold score
    oh_prev = oh0

    # seq_len is a fixed, short trip count -> full static unroll (scheduler
    # sees straight-line code; no per-iteration loop overhead).
    for t in range(1, seq_len):
        e_t = emis_ref[t]                  # (B, C)
        oh_t = oh_ref[t]                   # (B, C)
        m_t = mask_ref[t]                  # (B, 1)
        # partition-function recursion (logsumexp over previous tag)
        sc = alpha[:, None, :] + trans_b                     # (B, C, C)
        mmax = jnp.max(sc, axis=-1, keepdims=True)
        lse = jnp.log(jnp.sum(jnp.exp(sc - mmax), axis=-1)) + mmax[..., 0]
        new_alpha = lse + e_t
        alpha = jnp.where(m_t > 0, new_alpha, alpha)
        # gold-path score: transitions[prev_tag, cur_tag] + emission[cur_tag]
        tmp = jnp.sum(oh_prev[:, None, :] * trans_b, axis=-1)
        trans_term = jnp.sum(tmp * oh_t, axis=-1, keepdims=True)
        emit_term = jnp.sum(oh_t * e_t, axis=-1, keepdims=True)
        num = num + m_t * (trans_term + emit_term)
        oh_prev = jnp.where(m_t > 0, oh_t, oh_prev)

    alpha = alpha + end
    mmax = jnp.max(alpha, axis=-1, keepdims=True)
    log_z = jnp.log(jnp.sum(jnp.exp(alpha - mmax), axis=-1, keepdims=True)) + mmax
    num = num + jnp.sum(last_oh_ref[...] * end, axis=-1, keepdims=True)
    llh_ref[...] = num - log_z


def crf_nll(emissions, target, mask, trans, start, end):
    """-mean log-likelihood (torchcrf reduction='mean')."""
    b_, s_, c_ = emissions.shape
    maskf = mask.astype(jnp.float32)
    oh = jax.nn.one_hot(jnp.maximum(target, 0), c_, dtype=jnp.float32)
    mask_next = jnp.concatenate(
        [maskf[:, 1:], jnp.zeros((b_, 1), jnp.float32)], axis=1)
    last_pos = maskf - mask_next                         # 1 at last valid step
    last_oh = jnp.einsum("bs,bsc->bc", last_pos, oh)
    emis_t = jnp.swapaxes(emissions, 0, 1)               # (S, B, C)
    oh_t = jnp.swapaxes(oh, 0, 1)
    mask_t = jnp.swapaxes(maskf, 0, 1)[..., None]        # (S, B, 1)
    llh = pl.pallas_call(
        functools.partial(_crf_nll_kernel, seq_len=s_),
        out_shape=jax.ShapeDtypeStruct((b_, 1), jnp.float32),
    )(emis_t, oh_t, mask_t, last_oh, trans.T,
      start.reshape(1, -1), end.reshape(1, -1))
    return -jnp.mean(llh)


# TODO(synk): Viterbi decode backtrace is inherently sequential with argmax
# backpointers; kept in plain JAX (lax.scan) rather than a Pallas kernel.
def crf_decode(emissions, trans, start, end):
    score0 = start[None, :] + emissions[:, 0]            # (B, C)

    def step(score, e_t):
        cand = score[:, :, None] + trans[None, :, :]     # (B, prev, cur)
        best_prev = jnp.argmax(cand, axis=1)
        return jnp.max(cand, axis=1) + e_t, best_prev

    final_score, backptrs = lax.scan(step, score0,
                                     jnp.swapaxes(emissions, 0, 1)[1:])
    final_score = final_score + end[None, :]
    last_tag = jnp.argmax(final_score, axis=-1)          # (B,)

    def back(tag, bp):
        prev = jnp.take_along_axis(bp, tag[:, None], axis=1)[:, 0]
        return prev, tag

    first_tag, tags_rest = lax.scan(back, last_tag, backptrs, reverse=True)
    tags = jnp.concatenate([first_tag[None, :], tags_rest], axis=0)
    return jnp.swapaxes(tags, 0, 1)                      # (B, S)


# ------------------------------ model glue --------------------------------
def model_forward(params, tokens, target=None, attention_mask=None):
    b_, s_ = tokens.shape
    if attention_mask is None:
        attention_mask = jnp.ones((b_, s_), jnp.int32)
    logits = bert_encoder_classify(params, tokens, attention_mask)   # (B,S,C)
    if target is not None:
        mask = target > -1
        return crf_nll(logits, target, mask,
                       params["crf_trans"], params["crf_start"], params["crf_end"])
    return crf_decode(logits, params["crf_trans"],
                      params["crf_start"], params["crf_end"])


def init_params(key):
    def nrm(k, shape, scale=0.02):
        return scale * jax.random.normal(k, shape, dtype=jnp.float32)

    keys = jax.random.split(key, 12)
    return {
        "word_emb": nrm(keys[0], (VOCAB, HIDDEN)),
        "pos_emb": nrm(keys[1], (MAX_POS, HIDDEN)),
        "type_emb": nrm(keys[2], (2, HIDDEN)),
        "emb_ln_g": jnp.ones((1, HIDDEN), jnp.float32),
        "emb_ln_b": jnp.zeros((1, HIDDEN), jnp.float32),
        "cls_w": nrm(keys[3], (HIDDEN, CLASS_NUM)),
        "cls_b": jnp.zeros((1, CLASS_NUM), jnp.float32),
        "crf_trans": nrm(keys[4], (CLASS_NUM, CLASS_NUM), 0.1),
        "crf_start": nrm(keys[5], (CLASS_NUM,), 0.1),
        "crf_end": nrm(keys[6], (CLASS_NUM,), 0.1),
        # stacked encoder weights; Q|K|V merged into one (H, 3H) matrix
        "wqkv": nrm(keys[7], (N_LAYERS, HIDDEN, 3 * HIDDEN)),
        "bqkv": jnp.zeros((N_LAYERS, 1, 3 * HIDDEN), jnp.float32),
        "wo": nrm(keys[8], (N_LAYERS, HIDDEN, HIDDEN)),
        "bo": jnp.zeros((N_LAYERS, 1, HIDDEN), jnp.float32),
        "ln1_g": jnp.ones((N_LAYERS, 1, HIDDEN), jnp.float32),
        "ln1_b": jnp.zeros((N_LAYERS, 1, HIDDEN), jnp.float32),
        "w1": nrm(keys[9], (N_LAYERS, HIDDEN, INTERMEDIATE)),
        "b1": jnp.zeros((N_LAYERS, 1, INTERMEDIATE), jnp.float32),
        "w2": nrm(keys[10], (N_LAYERS, INTERMEDIATE, HIDDEN)),
        "b2": jnp.zeros((N_LAYERS, 1, HIDDEN), jnp.float32),
        "ln2_g": jnp.ones((N_LAYERS, 1, HIDDEN), jnp.float32),
        "ln2_b": jnp.zeros((N_LAYERS, 1, HIDDEN), jnp.float32),
    }


if __name__ == "__main__":
    # TODO(synk): pretrained bert-base-chinese weights are replaced by
    # deterministic random init (shapes/flow preserved, shrunk dims).
    root = jax.random.PRNGKey(0)
    kp, kt, kg = jax.random.split(root, 3)
    params = init_params(kp)

    tokens = jax.random.randint(kt, (B, S), 0, VOCAB, dtype=jnp.int32)
    lengths = jnp.array([S, 5], dtype=jnp.int32)
    attention_mask = (jnp.arange(S)[None, :] < lengths[:, None]).astype(jnp.int32)
    raw_tags = jax.random.randint(kg, (B, S), 0, CLASS_NUM, dtype=jnp.int32)
    target = jnp.where(attention_mask > 0, raw_tags, -1)

    # training branch: -CRF log-likelihood (reduction='mean')
    loss = model_forward(params, tokens, target=target,
                         attention_mask=attention_mask)
    loss = jax.block_until_ready(loss)

    # inference branch: CRF decode
    preds = model_forward(params, tokens, target=None,
                          attention_mask=attention_mask)
    preds = jax.block_until_ready(preds)

    print("KERNEL_OK")
</pallas_src>

<mosaic_0001>
module attributes {stable_mosaic.version = 11 : i64} {
  func.func @_encoder_kernel(%arg0: i32, %arg1: memref<1x8x32xf32, #tpu.memory_space<vmem>>, %arg2: memref<1x1x8xf32, #tpu.memory_space<vmem>>, %arg3: memref<1x32xf32, #tpu.memory_space<vmem>>, %arg4: memref<1x32xf32, #tpu.memory_space<vmem>>, %arg5: memref<2x32x96xf32, #tpu.memory_space<vmem>>, %arg6: memref<2x1x96xf32, #tpu.memory_space<vmem>>, %arg7: memref<2x32x32xf32, #tpu.memory_space<vmem>>, %arg8: memref<2x1x32xf32, #tpu.memory_space<vmem>>, %arg9: memref<2x1x32xf32, #tpu.memory_space<vmem>>, %arg10: memref<2x1x32xf32, #tpu.memory_space<vmem>>, %arg11: memref<2x32x64xf32, #tpu.memory_space<vmem>>, %arg12: memref<2x1x64xf32, #tpu.memory_space<vmem>>, %arg13: memref<2x64x32xf32, #tpu.memory_space<vmem>>, %arg14: memref<2x1x32xf32, #tpu.memory_space<vmem>>, %arg15: memref<2x1x32xf32, #tpu.memory_space<vmem>>, %arg16: memref<2x1x32xf32, #tpu.memory_space<vmem>>, %arg17: memref<32x4xf32, #tpu.memory_space<vmem>>, %arg18: memref<1x4xf32, #tpu.memory_space<vmem>>, %arg19: memref<1x8x4xf32, #tpu.memory_space<vmem>>) attributes {dimension_semantics = [#tpu.dimension_semantics<parallel>], iteration_bounds = array<i64: 2>, scalar_prefetch = 0 : i64, scratch_operands = 0 : i64, tpu.core_type = #tpu.core_type<tc>, window_params = [{transform_indices = @transform_0, window_bounds = array<i64: 1, 8, 32>}, {transform_indices = @transform_1, window_bounds = array<i64: 1, 1, 8>}, {pipeline_mode = #tpu.pipeline_mode<synchronous>, transform_indices = @transform_2, window_bounds = array<i64: 1, 32>}, {pipeline_mode = #tpu.pipeline_mode<synchronous>, transform_indices = @transform_3, window_bounds = array<i64: 1, 32>}, {pipeline_mode = #tpu.pipeline_mode<synchronous>, transform_indices = @transform_4, window_bounds = array<i64: 2, 32, 96>}, {pipeline_mode = #tpu.pipeline_mode<synchronous>, transform_indices = @transform_5, window_bounds = array<i64: 2, 1, 96>}, {pipeline_mode = #tpu.pipeline_mode<synchronous>, transform_indices = @transform_6, window_bounds = array<i64: 2, 32, 32>}, {pipeline_mode = #tpu.pipeline_mode<synchronous>, transform_indices = @transform_7, window_bounds = array<i64: 2, 1, 32>}, {pipeline_mode = #tpu.pipeline_mode<synchronous>, transform_indices = @transform_8, window_bounds = array<i64: 2, 1, 32>}, {pipeline_mode = #tpu.pipeline_mode<synchronous>, transform_indices = @transform_9, window_bounds = array<i64: 2, 1, 32>}, {pipeline_mode = #tpu.pipeline_mode<synchronous>, transform_indices = @transform_10, window_bounds = array<i64: 2, 32, 64>}, {pipeline_mode = #tpu.pipeline_mode<synchronous>, transform_indices = @transform_11, window_bounds = array<i64: 2, 1, 64>}, {pipeline_mode = #tpu.pipeline_mode<synchronous>, transform_indices = @transform_12, window_bounds = array<i64: 2, 64, 32>}, {pipeline_mode = #tpu.pipeline_mode<synchronous>, transform_indices = @transform_13, window_bounds = array<i64: 2, 1, 32>}, {pipeline_mode = #tpu.pipeline_mode<synchronous>, transform_indices = @transform_14, window_bounds = array<i64: 2, 1, 32>}, {pipeline_mode = #tpu.pipeline_mode<synchronous>, transform_indices = @transform_15, window_bounds = array<i64: 2, 1, 32>}, {pipeline_mode = #tpu.pipeline_mode<synchronous>, transform_indices = @transform_16, window_bounds = array<i64: 32, 4>}, {pipeline_mode = #tpu.pipeline_mode<synchronous>, transform_indices = @transform_17, window_bounds = array<i64: 1, 4>}, {transform_indices = @transform_18, window_bounds = array<i64: 1, 8, 4>}]} {
    %c0 = arith.constant 0 : index
    %c0_0 = arith.constant 0 : index
    %c0_1 = arith.constant 0 : index
    %0 = vector.load %arg1[%c0, %c0_0, %c0_1] : memref<1x8x32xf32, #tpu.memory_space<vmem>>, vector<1x8x32xf32>
    %1 = vector.shape_cast %0 : vector<1x8x32xf32> to vector<8x32xf32>
    %c0_2 = arith.constant 0 : index
    %c0_3 = arith.constant 0 : index
    %c0_4 = arith.constant 0 : index
    %2 = vector.load %arg2[%c0_2, %c0_3, %c0_4] : memref<1x1x8xf32, #tpu.memory_space<vmem>>, vector<1x1x8xf32>
    %3 = vector.shape_cast %2 : vector<1x1x8xf32> to vector<1x8xf32>
    %c0_5 = arith.constant 0 : index
    %c0_6 = arith.constant 0 : index
    %4 = vector.load %arg3[%c0_5, %c0_6] : memref<1x32xf32, #tpu.memory_space<vmem>>, vector<1x32xf32>
    %c0_7 = arith.constant 0 : index
    %c0_8 = arith.constant 0 : index
    %5 = vector.load %arg4[%c0_7, %c0_8] : memref<1x32xf32, #tpu.memory_space<vmem>>, vector<1x32xf32>
    %cst = arith.constant dense<0.000000e+00> : vector<8xf32>
    %6 = vector.multi_reduction <add>, %1, %cst [1] : vector<8x32xf32> to vector<8xf32>
    %7 = vector.shape_cast %6 : vector<8xf32> to vector<8x1xf32>
    %cst_9 = arith.constant 3.200000e+01 : f32
    %8 = vector.broadcast %cst_9 : f32 to vector<8x1xf32>
    %9 = arith.divf %7, %8 : vector<8x1xf32>
    %10 = vector.broadcast %9 : vector<8x1xf32> to vector<8x32xf32>
    %11 = arith.subf %1, %10 : vector<8x32xf32>
    %12 = arith.mulf %11, %11 : vector<8x32xf32>
    %cst_10 = arith.constant dense<0.000000e+00> : vector<8xf32>
    %13 = vector.multi_reduction <add>, %12, %cst_10 [1] : vector<8x32xf32> to vector<8xf32>
    %14 = vector.shape_cast %13 : vector<8xf32> to vector<8x1xf32>
    %cst_11 = arith.constant 3.200000e+01 : f32
    %15 = vector.broadcast %cst_11 : f32 to vector<8x1xf32>
    %16 = arith.divf %14, %15 : vector<8x1xf32>
    %17 = vector.broadcast %9 : vector<8x1xf32> to vector<8x32xf32>
    %18 = arith.subf %1, %17 : vector<8x32xf32>
    %cst_12 = arith.constant 9.99999996E-13 : f32
    %19 = vector.broadcast %cst_12 : f32 to vector<8x1xf32>
    %20 = arith.addf %16, %19 : vector<8x1xf32>
    %21 = math.rsqrt %20 : vector<8x1xf32>
    %22 = vector.broadcast %21 : vector<8x1xf32> to vector<8x32xf32>
    %23 = arith.mulf %18, %22 : vector<8x32xf32>
    %24 = vector.broadcast %4 : vector<1x32xf32> to vector<8x32xf32>
    %25 = arith.mulf %23, %24 : vector<8x32xf32>
    %26 = vector.broadcast %5 : vector<1x32xf32> to vector<8x32xf32>
    %27 = arith.addf %25, %26 : vector<8x32xf32>
    %c0_13 = arith.constant 0 : index
    %c0_14 = arith.constant 0 : index
    %c0_15 = arith.constant 0 : index
    %28 = vector.load %arg5[%c0_13, %c0_14, %c0_15] : memref<2x32x96xf32, #tpu.memory_space<vmem>>, vector<1x32x96xf32>
    %29 = vector.shape_cast %28 : vector<1x32x96xf32> to vector<32x96xf32>
    %cst_16 = arith.constant dense<0.000000e+00> : vector<8x96xf32>
    %30 = tpu.matmul %27, %29, %cst_16 {dimension_numbers = #tpu.dot_dimension_numbers<[1], [0], [0], [1], [0, 0, 1, 1], [], []>} : vector<8x32xf32>, vector<32x96xf32>, vector<8x96xf32> -> vector<8x96xf32>
    %c0_17 = arith.constant 0 : index
    %c0_18 = arith.constant 0 : index
    %c0_19 = arith.constant 0 : index
    %31 = vector.load %arg6[%c0_17, %c0_18, %c0_19] : memref<2x1x96xf32, #tpu.memory_space<vmem>>, vector<1x1x96xf32>
    %32 = vector.shape_cast %31 : vector<1x1x96xf32> to vector<1x96xf32>
    %33 = vector.broadcast %32 : vector<1x96xf32> to vector<8x96xf32>
    %34 = arith.addf %30, %33 : vector<8x96xf32>
    %c0_20 = arith.constant 0 : index
    %c0_21 = arith.constant 0 : index
    %c0_22 = arith.constant 0 : index
    %35 = vector.load %arg7[%c0_20, %c0_21, %c0_22] : memref<2x32x32xf32, #tpu.memory_space<vmem>>, vector<1x32x32xf32>
    %36 = vector.shape_cast %35 : vector<1x32x32xf32> to vector<32x32xf32>
    %37 = vector.extract_strided_slice %34 {offsets = [0, 0], sizes = [8, 16], strides = [1, 1]} : vector<8x96xf32> to vector<8x16xf32>
    %38 = vector.extract_strided_slice %34 {offsets = [0, 32], sizes = [8, 16], strides = [1, 1]} : vector<8x96xf32> to vector<8x16xf32>
    %39 = vector.extract_strided_slice %34 {offsets = [0, 64], sizes = [8, 16], strides = [1, 1]} : vector<8x96xf32> to vector<8x16xf32>
    "tpu.trace_start"() <{level = 10 : i32, message = "qd,kd->qk"}> : () -> ()
    %cst_23 = arith.constant dense<0.000000e+00> : vector<8x8xf32>
    %40 = tpu.matmul %37, %38, %cst_23 {dimension_numbers = #tpu.dot_dimension_numbers<[1], [1], [0], [0], [0, 0, 1, 0], [], []>} : vector<8x16xf32>, vector<8x16xf32>, vector<8x8xf32> -> vector<8x8xf32>
    "tpu.trace_stop"() : () -> ()
    %cst_24 = arith.constant 2.500000e-01 : f32
    %41 = vector.broadcast %cst_24 : f32 to vector<8x8xf32>
    %42 = arith.mulf %40, %41 : vector<8x8xf32>
    %43 = vector.broadcast %3 : vector<1x8xf32> to vector<8x8xf32>
    %44 = arith.addf %42, %43 : vector<8x8xf32>
    %cst_25 = arith.constant dense<0xFF800000> : vector<8xf32>
    %45 = vector.multi_reduction <maximumf>, %44, %cst_25 [1] : vector<8x8xf32> to vector<8xf32>
    %46 = vector.shape_cast %45 : vector<8xf32> to vector<8x1xf32>
    %47 = vector.broadcast %46 : vector<8x1xf32> to vector<8x8xf32>
    %48 = arith.subf %44, %47 : vector<8x8xf32>
    %49 = math.exp %48 : vector<8x8xf32>
    %cst_26 = arith.constant dense<0.000000e+00> : vector<8xf32>
    %50 = vector.multi_reduction <add>, %49, %cst_26 [1] : vector<8x8xf32> to vector<8xf32>
    %51 = vector.shape_cast %50 : vector<8xf32> to vector<8x1xf32>
    %52 = tpu.reciprocal %51 {approx = true} : vector<8x1xf32> -> vector<8x1xf32>
    %53 = vector.broadcast %52 : vector<8x1xf32> to vector<8x8xf32>
    %54 = arith.mulf %49, %53 : vector<8x8xf32>
    %cst_27 = arith.constant dense<0.000000e+00> : vector<8x16xf32>
    %55 = tpu.matmul %54, %39, %cst_27 {dimension_numbers = #tpu.dot_dimension_numbers<[1], [0], [0], [1], [0, 0, 1, 1], [], []>} : vector<8x8xf32>, vector<8x16xf32>, vector<8x16xf32> -> vector<8x16xf32>
    %56 = vector.extract_strided_slice %36 {offsets = [0, 0], sizes = [16, 32], strides = [1, 1]} : vector<32x32xf32> to vector<16x32xf32>
    %cst_28 = arith.constant dense<0.000000e+00> : vector<8x32xf32>
    %57 = tpu.matmul %55, %56, %cst_28 {dimension_numbers = #tpu.dot_dimension_numbers<[1], [0], [0], [1], [0, 0, 1, 1], [], []>} : vector<8x16xf32>, vector<16x32xf32>, vector<8x32xf32> -> vector<8x32xf32>
    %58 = vector.extract_strided_slice %34 {offsets = [0, 16], sizes = [8, 16], strides = [1, 1]} : vector<8x96xf32> to vector<8x16xf32>
    %59 = vector.extract_strided_slice %34 {offsets = [0, 48], sizes = [8, 16], strides = [1, 1]} : vector<8x96xf32> to vector<8x16xf32>
    %60 = vector.extract_strided_slice %34 {offsets = [0, 80], sizes = [8, 16], strides = [1, 1]} : vector<8x96xf32> to vector<8x16xf32>
    "tpu.trace_start"() <{level = 10 : i32, message = "qd,kd->qk"}> : () -> ()
    %cst_29 = arith.constant dense<0.000000e+00> : vector<8x8xf32>
    %61 = tpu.matmul %58, %59, %cst_29 {dimension_numbers = #tpu.dot_dimension_numbers<[1], [1], [0], [0], [0, 0, 1, 0], [], []>} : vector<8x16xf32>, vector<8x16xf32>, vector<8x8xf32> -> vector<8x8xf32>
    "tpu.trace_stop"() : () -> ()
    %cst_30 = arith.constant 2.500000e-01 : f32
    %62 = vector.broadcast %cst_30 : f32 to vector<8x8xf32>
    %63 = arith.mulf %61, %62 : vector<8x8xf32>
    %64 = vector.broadcast %3 : vector<1x8xf32> to vector<8x8xf32>
    %65 = arith.addf %63, %64 : vector<8x8xf32>
    %cst_31 = arith.constant dense<0xFF800000> : vector<8xf32>
    %66 = vector.multi_reduction <maximumf>, %65, %cst_31 [1] : vector<8x8xf32> to vector<8xf32>
    %67 = vector.shape_cast %66 : vector<8xf32> to vector<8x1xf32>
    %68 = vector.broadcast %67 : vector<8x1xf32> to vector<8x8xf32>
    %69 = arith.subf %65, %68 : vector<8x8xf32>
    %70 = math.exp %69 : vector<8x8xf32>
    %cst_32 = arith.constant dense<0.000000e+00> : vector<8xf32>
    %71 = vector.multi_reduction <add>, %70, %cst_32 [1] : vector<8x8xf32> to vector<8xf32>
    %72 = vector.shape_cast %71 : vector<8xf32> to vector<8x1xf32>
    %73 = tpu.reciprocal %72 {approx = true} : vector<8x1xf32> -> vector<8x1xf32>
    %74 = vector.broadcast %73 : vector<8x1xf32> to vector<8x8xf32>
    %75 = arith.mulf %70, %74 : vector<8x8xf32>
    %cst_33 = arith.constant dense<0.000000e+00> : vector<8x16xf32>
    %76 = tpu.matmul %75, %60, %cst_33 {dimension_numbers = #tpu.dot_dimension_numbers<[1], [0], [0], [1], [0, 0, 1, 1], [], []>} : vector<8x8xf32>, vector<8x16xf32>, vector<8x16xf32> -> vector<8x16xf32>
    %77 = vector.extract_strided_slice %36 {offsets = [16, 0], sizes = [16, 32], strides = [1, 1]} : vector<32x32xf32> to vector<16x32xf32>
    %cst_34 = arith.constant dense<0.000000e+00> : vector<8x32xf32>
    %78 = tpu.matmul %76, %77, %cst_34 {dimension_numbers = #tpu.dot_dimension_numbers<[1], [0], [0], [1], [0, 0, 1, 1], [], []>} : vector<8x16xf32>, vector<16x32xf32>, vector<8x32xf32> -> vector<8x32xf32>
    %79 = arith.addf %57, %78 : vector<8x32xf32>
    %c0_35 = arith.constant 0 : index
    %c0_36 = arith.constant 0 : index
    %c0_37 = arith.constant 0 : index
    %80 = vector.load %arg8[%c0_35, %c0_36, %c0_37] : memref<2x1x32xf32, #tpu.memory_space<vmem>>, vector<1x1x32xf32>
    %81 = vector.shape_cast %80 : vector<1x1x32xf32> to vector<1x32xf32>
    %82 = vector.broadcast %81 : vector<1x32xf32> to vector<8x32xf32>
    %83 = arith.addf %79, %82 : vector<8x32xf32>
    %84 = arith.addf %83, %27 : vector<8x32xf32>
    %c0_38 = arith.constant 0 : index
    %c0_39 = arith.constant 0 : index
    %c0_40 = arith.constant 0 : index
    %85 = vector.load %arg9[%c0_38, %c0_39, %c0_40] : memref<2x1x32xf32, #tpu.memory_space<vmem>>, vector<1x1x32xf32>
    %86 = vector.shape_cast %85 : vector<1x1x32xf32> to vector<1x32xf32>
    %c0_41 = arith.constant 0 : index
    %c0_42 = arith.constant 0 : index
    %c0_43 = arith.constant 0 : index
    %87 = vector.load %arg10[%c0_41, %c0_42, %c0_43] : memref<2x1x32xf32, #tpu.memory_space<vmem>>, vector<1x1x32xf32>
    %88 = vector.shape_cast %87 : vector<1x1x32xf32> to vector<1x32xf32>
    %cst_44 = arith.constant dense<0.000000e+00> : vector<8xf32>
    %89 = vector.multi_reduction <add>, %84, %cst_44 [1] : vector<8x32xf32> to vector<8xf32>
    %90 = vector.shape_cast %89 : vector<8xf32> to vector<8x1xf32>
    %cst_45 = arith.constant 3.200000e+01 : f32
    %91 = vector.broadcast %cst_45 : f32 to vector<8x1xf32>
    %92 = arith.divf %90, %91 : vector<8x1xf32>
    %93 = vector.broadcast %92 : vector<8x1xf32> to vector<8x32xf32>
    %94 = arith.subf %84, %93 : vector<8x32xf32>
    %95 = arith.mulf %94, %94 : vector<8x32xf32>
    %cst_46 = arith.constant dense<0.000000e+00> : vector<8xf32>
    %96 = vector.multi_reduction <add>, %95, %cst_46 [1] : vector<8x32xf32> to vector<8xf32>
    %97 = vector.shape_cast %96 : vector<8xf32> to vector<8x1xf32>
    %cst_47 = arith.constant 3.200000e+01 : f32
    %98 = vector.broadcast %cst_47 : f32 to vector<8x1xf32>
    %99 = arith.divf %97, %98 : vector<8x1xf32>
    %100 = vector.broadcast %92 : vector<8x1xf32> to vector<8x32xf32>
    %101 = arith.subf %84, %100 : vector<8x32xf32>
    %cst_48 = arith.constant 9.99999996E-13 : f32
    %102 = vector.broadcast %cst_48 : f32 to vector<8x1xf32>
    %103 = arith.addf %99, %102 : vector<8x1xf32>
    %104 = math.rsqrt %103 : vector<8x1xf32>
    %105 = vector.broadcast %104 : vector<8x1xf32> to vector<8x32xf32>
    %106 = arith.mulf %101, %105 : vector<8x32xf32>
    %107 = vector.broadcast %86 : vector<1x32xf32> to vector<8x32xf32>
    %108 = arith.mulf %106, %107 : vector<8x32xf32>
    %109 = vector.broadcast %88 : vector<1x32xf32> to vector<8x32xf32>
    %110 = arith.addf %108, %109 : vector<8x32xf32>
    %c0_49 = arith.constant 0 : index
    %c0_50 = arith.constant 0 : index
    %c0_51 = arith.constant 0 : index
    %111 = vector.load %arg11[%c0_49, %c0_50, %c0_51] : memref<2x32x64xf32, #tpu.memory_space<vmem>>, vector<1x32x64xf32>
    %112 = vector.shape_cast %111 : vector<1x32x64xf32> to vector<32x64xf32>
    %cst_52 = arith.constant dense<0.000000e+00> : vector<8x64xf32>
    %113 = tpu.matmul %110, %112, %cst_52 {dimension_numbers = #tpu.dot_dimension_numbers<[1], [0], [0], [1], [0, 0, 1, 1], [], []>} : vector<8x32xf32>, vector<32x64xf32>, vector<8x64xf32> -> vector<8x64xf32>
    %c0_53 = arith.constant 0 : index
    %c0_54 = arith.constant 0 : index
    %c0_55 = arith.constant 0 : index
    %114 = vector.load %arg12[%c0_53, %c0_54, %c0_55] : memref<2x1x64xf32, #tpu.memory_space<vmem>>, vector<1x1x64xf32>
    %115 = vector.shape_cast %114 : vector<1x1x64xf32> to vector<1x64xf32>
    %116 = vector.broadcast %115 : vector<1x64xf32> to vector<8x64xf32>
    %117 = arith.addf %113, %116 : vector<8x64xf32>
    %118 = arith.mulf %117, %117 : vector<8x64xf32>
    %119 = arith.mulf %117, %118 : vector<8x64xf32>
    %cst_56 = arith.constant 4.471500e-02 : f32
    %120 = vector.broadcast %cst_56 : f32 to vector<8x64xf32>
    %121 = arith.mulf %120, %119 : vector<8x64xf32>
    %122 = arith.addf %117, %121 : vector<8x64xf32>
    %cst_57 = arith.constant 0.797884583 : f32
    %123 = vector.broadcast %cst_57 : f32 to vector<8x64xf32>
    %124 = arith.mulf %123, %122 : vector<8x64xf32>
    %125 = math.tanh %124 : vector<8x64xf32>
    %cst_58 = arith.constant 1.000000e+00 : f32
    %126 = vector.broadcast %cst_58 : f32 to vector<8x64xf32>
    %127 = arith.addf %126, %125 : vector<8x64xf32>
    %cst_59 = arith.constant 5.000000e-01 : f32
    %128 = vector.broadcast %cst_59 : f32 to vector<8x64xf32>
    %129 = arith.mulf %128, %127 : vector<8x64xf32>
    %130 = arith.mulf %117, %129 : vector<8x64xf32>
    %c0_60 = arith.constant 0 : index
    %c0_61 = arith.constant 0 : index
    %c0_62 = arith.constant 0 : index
    %131 = vector.load %arg13[%c0_60, %c0_61, %c0_62] : memref<2x64x32xf32, #tpu.memory_space<vmem>>, vector<1x64x32xf32>
    %132 = vector.shape_cast %131 : vector<1x64x32xf32> to vector<64x32xf32>
    %cst_63 = arith.constant dense<0.000000e+00> : vector<8x32xf32>
    %133 = tpu.matmul %130, %132, %cst_63 {dimension_numbers = #tpu.dot_dimension_numbers<[1], [0], [0], [1], [0, 0, 1, 1], [], []>} : vector<8x64xf32>, vector<64x32xf32>, vector<8x32xf32> -> vector<8x32xf32>
    %c0_64 = arith.constant 0 : index
    %c0_65 = arith.constant 0 : index
    %c0_66 = arith.constant 0 : index
    %134 = vector.load %arg14[%c0_64, %c0_65, %c0_66] : memref<2x1x32xf32, #tpu.memory_space<vmem>>, vector<1x1x32xf32>
    %135 = vector.shape_cast %134 : vector<1x1x32xf32> to vector<1x32xf32>
    %136 = vector.broadcast %135 : vector<1x32xf32> to vector<8x32xf32>
    %137 = arith.addf %133, %136 : vector<8x32xf32>
    %138 = arith.addf %137, %110 : vector<8x32xf32>
    %c0_67 = arith.constant 0 : index
    %c0_68 = arith.constant 0 : index
    %c0_69 = arith.constant 0 : index
    %139 = vector.load %arg15[%c0_67, %c0_68, %c0_69] : memref<2x1x32xf32, #tpu.memory_space<vmem>>, vector<1x1x32xf32>
    %140 = vector.shape_cast %139 : vector<1x1x32xf32> to vector<1x32xf32>
    %c0_70 = arith.constant 0 : index
    %c0_71 = arith.constant 0 : index
    %c0_72 = arith.constant 0 : index
    %141 = vector.load %arg16[%c0_70, %c0_71, %c0_72] : memref<2x1x32xf32, #tpu.memory_space<vmem>>, vector<1x1x32xf32>
    %142 = vector.shape_cast %141 : vector<1x1x32xf32> to vector<1x32xf32>
    %cst_73 = arith.constant dense<0.000000e+00> : vector<8xf32>
    %143 = vector.multi_reduction <add>, %138, %cst_73 [1] : vector<8x32xf32> to vector<8xf32>
    %144 = vector.shape_cast %143 : vector<8xf32> to vector<8x1xf32>
    %cst_74 = arith.constant 3.200000e+01 : f32
    %145 = vector.broadcast %cst_74 : f32 to vector<8x1xf32>
    %146 = arith.divf %144, %145 : vector<8x1xf32>
    %147 = vector.broadcast %146 : vector<8x1xf32> to vector<8x32xf32>
    %148 = arith.subf %138, %147 : vector<8x32xf32>
    %149 = arith.mulf %148, %148 : vector<8x32xf32>
    %cst_75 = arith.constant dense<0.000000e+00> : vector<8xf32>
    %150 = vector.multi_reduction <add>, %149, %cst_75 [1] : vector<8x32xf32> to vector<8xf32>
    %151 = vector.shape_cast %150 : vector<8xf32> to vector<8x1xf32>
    %cst_76 = arith.constant 3.200000e+01 : f32
    %152 = vector.broadcast %cst_76 : f32 to vector<8x1xf32>
    %153 = arith.divf %151, %152 : vector<8x1xf32>
    %154 = vector.broadcast %146 : vector<8x1xf32> to vector<8x32xf32>
    %155 = arith.subf %138, %154 : vector<8x32xf32>
    %cst_77 = arith.constant 9.99999996E-13 : f32
    %156 = vector.broadcast %cst_77 : f32 to vector<8x1xf32>
    %157 = arith.addf %153, %156 : vector<8x1xf32>
    %158 = math.rsqrt %157 : vector<8x1xf32>
    %159 = vector.broadcast %158 : vector<8x1xf32> to vector<8x32xf32>
    %160 = arith.mulf %155, %159 : vector<8x32xf32>
    %161 = vector.broadcast %140 : vector<1x32xf32> to vector<8x32xf32>
    %162 = arith.mulf %160, %161 : vector<8x32xf32>
    %163 = vector.broadcast %142 : vector<1x32xf32> to vector<8x32xf32>
    %164 = arith.addf %162, %163 : vector<8x32xf32>
    %c1 = arith.constant 1 : index
    %c0_78 = arith.constant 0 : index
    %c0_79 = arith.constant 0 : index
    %165 = vector.load %arg5[%c1, %c0_78, %c0_79] : memref<2x32x96xf32, #tpu.memory_space<vmem>>, vector<1x32x96xf32>
    %166 = vector.shape_cast %165 : vector<1x32x96xf32> to vector<32x96xf32>
    %cst_80 = arith.constant dense<0.000000e+00> : vector<8x96xf32>
    %167 = tpu.matmul %164, %166, %cst_80 {dimension_numbers = #tpu.dot_dimension_numbers<[1], [0], [0], [1], [0, 0, 1, 1], [], []>} : vector<8x32xf32>, vector<32x96xf32>, vector<8x96xf32> -> vector<8x96xf32>
    %c1_81 = arith.constant 1 : index
    %c0_82 = arith.constant 0 : index
    %c0_83 = arith.constant 0 : index
    %168 = vector.load %arg6[%c1_81, %c0_82, %c0_83] : memref<2x1x96xf32, #tpu.memory_space<vmem>>, vector<1x1x96xf32>
    %169 = vector.shape_cast %168 : vector<1x1x96xf32> to vector<1x96xf32>
    %170 = vector.broadcast %169 : vector<1x96xf32> to vector<8x96xf32>
    %171 = arith.addf %167, %170 : vector<8x96xf32>
    %c1_84 = arith.constant 1 : index
    %c0_85 = arith.constant 0 : index
    %c0_86 = arith.constant 0 : index
    %172 = vector.load %arg7[%c1_84, %c0_85, %c0_86] : memref<2x32x32xf32, #tpu.memory_space<vmem>>, vector<1x32x32xf32>
    %173 = vector.shape_cast %172 : vector<1x32x32xf32> to vector<32x32xf32>
    %174 = vector.extract_strided_slice %171 {offsets = [0, 0], sizes = [8, 16], strides = [1, 1]} : vector<8x96xf32> to vector<8x16xf32>
    %175 = vector.extract_strided_slice %171 {offsets = [0, 32], sizes = [8, 16], strides = [1, 1]} : vector<8x96xf32> to vector<8x16xf32>
    %176 = vector.extract_strided_slice %171 {offsets = [0, 64], sizes = [8, 16], strides = [1, 1]} : vector<8x96xf32> to vector<8x16xf32>
    "tpu.trace_start"() <{level = 10 : i32, message = "qd,kd->qk"}> : () -> ()
    %cst_87 = arith.constant dense<0.000000e+00> : vector<8x8xf32>
    %177 = tpu.matmul %174, %175, %cst_87 {dimension_numbers = #tpu.dot_dimension_numbers<[1], [1], [0], [0], [0, 0, 1, 0], [], []>} : vector<8x16xf32>, vector<8x16xf32>, vector<8x8xf32> -> vector<8x8xf32>
    "tpu.trace_stop"() : () -> ()
    %cst_88 = arith.constant 2.500000e-01 : f32
    %178 = vector.broadcast %cst_88 : f32 to vector<8x8xf32>
    %179 = arith.mulf %177, %178 : vector<8x8xf32>
    %180 = vector.broadcast %3 : vector<1x8xf32> to vector<8x8xf32>
    %181 = arith.addf %179, %180 : vector<8x8xf32>
    %cst_89 = arith.constant dense<0xFF800000> : vector<8xf32>
    %182 = vector.multi_reduction <maximumf>, %181, %cst_89 [1] : vector<8x8xf32> to vector<8xf32>
    %183 = vector.shape_cast %182 : vector<8xf32> to vector<8x1xf32>
    %184 = vector.broadcast %183 : vector<8x1xf32> to vector<8x8xf32>
    %185 = arith.subf %181, %184 : vector<8x8xf32>
    %186 = math.exp %185 : vector<8x8xf32>
    %cst_90 = arith.constant dense<0.000000e+00> : vector<8xf32>
    %187 = vector.multi_reduction <add>, %186, %cst_90 [1] : vector<8x8xf32> to vector<8xf32>
    %188 = vector.shape_cast %187 : vector<8xf32> to vector<8x1xf32>
    %189 = tpu.reciprocal %188 {approx = true} : vector<8x1xf32> -> vector<8x1xf32>
    %190 = vector.broadcast %189 : vector<8x1xf32> to vector<8x8xf32>
    %191 = arith.mulf %186, %190 : vector<8x8xf32>
    %cst_91 = arith.constant dense<0.000000e+00> : vector<8x16xf32>
    %192 = tpu.matmul %191, %176, %cst_91 {dimension_numbers = #tpu.dot_dimension_numbers<[1], [0], [0], [1], [0, 0, 1, 1], [], []>} : vector<8x8xf32>, vector<8x16xf32>, vector<8x16xf32> -> vector<8x16xf32>
    %193 = vector.extract_strided_slice %173 {offsets = [0, 0], sizes = [16, 32], strides = [1, 1]} : vector<32x32xf32> to vector<16x32xf32>
    %cst_92 = arith.constant dense<0.000000e+00> : vector<8x32xf32>
    %194 = tpu.matmul %192, %193, %cst_92 {dimension_numbers = #tpu.dot_dimension_numbers<[1], [0], [0], [1], [0, 0, 1, 1], [], []>} : vector<8x16xf32>, vector<16x32xf32>, vector<8x32xf32> -> vector<8x32xf32>
    %195 = vector.extract_strided_slice %171 {offsets = [0, 16], sizes = [8, 16], strides = [1, 1]} : vector<8x96xf32> to vector<8x16xf32>
    %196 = vector.extract_strided_slice %171 {offsets = [0, 48], sizes = [8, 16], strides = [1, 1]} : vector<8x96xf32> to vector<8x16xf32>
    %197 = vector.extract_strided_slice %171 {offsets = [0, 80], sizes = [8, 16], strides = [1, 1]} : vector<8x96xf32> to vector<8x16xf32>
    "tpu.trace_start"() <{level = 10 : i32, message = "qd,kd->qk"}> : () -> ()
    %cst_93 = arith.constant dense<0.000000e+00> : vector<8x8xf32>
    %198 = tpu.matmul %195, %196, %cst_93 {dimension_numbers = #tpu.dot_dimension_numbers<[1], [1], [0], [0], [0, 0, 1, 0], [], []>} : vector<8x16xf32>, vector<8x16xf32>, vector<8x8xf32> -> vector<8x8xf32>
    "tpu.trace_stop"() : () -> ()
    %cst_94 = arith.constant 2.500000e-01 : f32
    %199 = vector.broadcast %cst_94 : f32 to vector<8x8xf32>
    %200 = arith.mulf %198, %199 : vector<8x8xf32>
    %201 = vector.broadcast %3 : vector<1x8xf32> to vector<8x8xf32>
    %202 = arith.addf %200, %201 : vector<8x8xf32>
    %cst_95 = arith.constant dense<0xFF800000> : vector<8xf32>
    %203 = vector.multi_reduction <maximumf>, %202, %cst_95 [1] : vector<8x8xf32> to vector<8xf32>
    %204 = vector.shape_cast %203 : vector<8xf32> to vector<8x1xf32>
    %205 = vector.broadcast %204 : vector<8x1xf32> to vector<8x8xf32>
    %206 = arith.subf %202, %205 : vector<8x8xf32>
    %207 = math.exp %206 : vector<8x8xf32>
    %cst_96 = arith.constant dense<0.000000e+00> : vector<8xf32>
    %208 = vector.multi_reduction <add>, %207, %cst_96 [1] : vector<8x8xf32> to vector<8xf32>
    %209 = vector.shape_cast %208 : vector<8xf32> to vector<8x1xf32>
    %210 = tpu.reciprocal %209 {approx = true} : vector<8x1xf32> -> vector<8x1xf32>
    %211 = vector.broadcast %210 : vector<8x1xf32> to vector<8x8xf32>
    %212 = arith.mulf %207, %211 : vector<8x8xf32>
    %cst_97 = arith.constant dense<0.000000e+00> : vector<8x16xf32>
    %213 = tpu.matmul %212, %197, %cst_97 {dimension_numbers = #tpu.dot_dimension_numbers<[1], [0], [0], [1], [0, 0, 1, 1], [], []>} : vector<8x8xf32>, vector<8x16xf32>, vector<8x16xf32> -> vector<8x16xf32>
    %214 = vector.extract_strided_slice %173 {offsets = [16, 0], sizes = [16, 32], strides = [1, 1]} : vector<32x32xf32> to vector<16x32xf32>
    %cst_98 = arith.constant dense<0.000000e+00> : vector<8x32xf32>
    %215 = tpu.matmul %213, %214, %cst_98 {dimension_numbers = #tpu.dot_dimension_numbers<[1], [0], [0], [1], [0, 0, 1, 1], [], []>} : vector<8x16xf32>, vector<16x32xf32>, vector<8x32xf32> -> vector<8x32xf32>
    %216 = arith.addf %194, %215 : vector<8x32xf32>
    %c1_99 = arith.constant 1 : index
    %c0_100 = arith.constant 0 : index
    %c0_101 = arith.constant 0 : index
    %217 = vector.load %arg8[%c1_99, %c0_100, %c0_101] : memref<2x1x32xf32, #tpu.memory_space<vmem>>, vector<1x1x32xf32>
    %218 = vector.shape_cast %217 : vector<1x1x32xf32> to vector<1x32xf32>
    %219 = vector.broadcast %218 : vector<1x32xf32> to vector<8x32xf32>
    %220 = arith.addf %216, %219 : vector<8x32xf32>
    %221 = arith.addf %220, %164 : vector<8x32xf32>
    %c1_102 = arith.constant 1 : index
    %c0_103 = arith.constant 0 : index
    %c0_104 = arith.constant 0 : index
    %222 = vector.load %arg9[%c1_102, %c0_103, %c0_104] : memref<2x1x32xf32, #tpu.memory_space<vmem>>, vector<1x1x32xf32>
    %223 = vector.shape_cast %222 : vector<1x1x32xf32> to vector<1x32xf32>
    %c1_105 = arith.constant 1 : index
    %c0_106 = arith.constant 0 : index
    %c0_107 = arith.constant 0 : index
    %224 = vector.load %arg10[%c1_105, %c0_106, %c0_107] : memref<2x1x32xf32, #tpu.memory_space<vmem>>, vector<1x1x32xf32>
    %225 = vector.shape_cast %224 : vector<1x1x32xf32> to vector<1x32xf32>
    %cst_108 = arith.constant dense<0.000000e+00> : vector<8xf32>
    %226 = vector.multi_reduction <add>, %221, %cst_108 [1] : vector<8x32xf32> to vector<8xf32>
    %227 = vector.shape_cast %226 : vector<8xf32> to vector<8x1xf32>
    %cst_109 = arith.constant 3.200000e+01 : f32
    %228 = vector.broadcast %cst_109 : f32 to vector<8x1xf32>
    %229 = arith.divf %227, %228 : vector<8x1xf32>
    %230 = vector.broadcast %229 : vector<8x1xf32> to vector<8x32xf32>
    %231 = arith.subf %221, %230 : vector<8x32xf32>
    %232 = arith.mulf %231, %231 : vector<8x32xf32>
    %cst_110 = arith.constant dense<0.000000e+00> : vector<8xf32>
    %233 = vector.multi_reduction <add>, %232, %cst_110 [1] : vector<8x32xf32> to vector<8xf32>
    %234 = vector.shape_cast %233 : vector<8xf32> to vector<8x1xf32>
    %cst_111 = arith.constant 3.200000e+01 : f32
    %235 = vector.broadcast %cst_111 : f32 to vector<8x1xf32>
    %236 = arith.divf %234, %235 : vector<8x1xf32>
    %237 = vector.broadcast %229 : vector<8x1xf32> to vector<8x32xf32>
    %238 = arith.subf %221, %237 : vector<8x32xf32>
    %cst_112 = arith.constant 9.99999996E-13 : f32
    %239 = vector.broadcast %cst_112 : f32 to vector<8x1xf32>
    %240 = arith.addf %236, %239 : vector<8x1xf32>
    %241 = math.rsqrt %240 : vector<8x1xf32>
    %242 = vector.broadcast %241 : vector<8x1xf32> to vector<8x32xf32>
    %243 = arith.mulf %238, %242 : vector<8x32xf32>
    %244 = vector.broadcast %223 : vector<1x32xf32> to vector<8x32xf32>
    %245 = arith.mulf %243, %244 : vector<8x32xf32>
    %246 = vector.broadcast %225 : vector<1x32xf32> to vector<8x32xf32>
    %247 = arith.addf %245, %246 : vector<8x32xf32>
    %c1_113 = arith.constant 1 : index
    %c0_114 = arith.constant 0 : index
    %c0_115 = arith.constant 0 : index
    %248 = vector.load %arg11[%c1_113, %c0_114, %c0_115] : memref<2x32x64xf32, #tpu.memory_space<vmem>>, vector<1x32x64xf32>
    %249 = vector.shape_cast %248 : vector<1x32x64xf32> to vector<32x64xf32>
    %cst_116 = arith.constant dense<0.000000e+00> : vector<8x64xf32>
    %250 = tpu.matmul %247, %249, %cst_116 {dimension_numbers = #tpu.dot_dimension_numbers<[1], [0], [0], [1], [0, 0, 1, 1], [], []>} : vector<8x32xf32>, vector<32x64xf32>, vector<8x64xf32> -> vector<8x64xf32>
    %c1_117 = arith.constant 1 : index
    %c0_118 = arith.constant 0 : index
    %c0_119 = arith.constant 0 : index
    %251 = vector.load %arg12[%c1_117, %c0_118, %c0_119] : memref<2x1x64xf32, #tpu.memory_space<vmem>>, vector<1x1x64xf32>
    %252 = vector.shape_cast %251 : vector<1x1x64xf32> to vector<1x64xf32>
    %253 = vector.broadcast %252 : vector<1x64xf32> to vector<8x64xf32>
    %254 = arith.addf %250, %253 : vector<8x64xf32>
    %255 = arith.mulf %254, %254 : vector<8x64xf32>
    %256 = arith.mulf %254, %255 : vector<8x64xf32>
    %cst_120 = arith.constant 4.471500e-02 : f32
    %257 = vector.broadcast %cst_120 : f32 to vector<8x64xf32>
    %258 = arith.mulf %257, %256 : vector<8x64xf32>
    %259 = arith.addf %254, %258 : vector<8x64xf32>
    %cst_121 = arith.constant 0.797884583 : f32
    %260 = vector.broadcast %cst_121 : f32 to vector<8x64xf32>
    %261 = arith.mulf %260, %259 : vector<8x64xf32>
    %262 = math.tanh %261 : vector<8x64xf32>
    %cst_122 = arith.constant 1.000000e+00 : f32
    %263 = vector.broadcast %cst_122 : f32 to vector<8x64xf32>
    %264 = arith.addf %263, %262 : vector<8x64xf32>
    %cst_123 = arith.constant 5.000000e-01 : f32
    %265 = vector.broadcast %cst_123 : f32 to vector<8x64xf32>
    %266 = arith.mulf %265, %264 : vector<8x64xf32>
    %267 = arith.mulf %254, %266 : vector<8x64xf32>
    %c1_124 = arith.constant 1 : index
    %c0_125 = arith.constant 0 : index
    %c0_126 = arith.constant 0 : index
    %268 = vector.load %arg13[%c1_124, %c0_125, %c0_126] : memref<2x64x32xf32, #tpu.memory_space<vmem>>, vector<1x64x32xf32>
    %269 = vector.shape_cast %268 : vector<1x64x32xf32> to vector<64x32xf32>
    %cst_127 = arith.constant dense<0.000000e+00> : vector<8x32xf32>
    %270 = tpu.matmul %267, %269, %cst_127 {dimension_numbers = #tpu.dot_dimension_numbers<[1], [0], [0], [1], [0, 0, 1, 1], [], []>} : vector<8x64xf32>, vector<64x32xf32>, vector<8x32xf32> -> vector<8x32xf32>
    %c1_128 = arith.constant 1 : index
    %c0_129 = arith.constant 0 : index
    %c0_130 = arith.constant 0 : index
    %271 = vector.load %arg14[%c1_128, %c0_129, %c0_130] : memref<2x1x32xf32, #tpu.memory_space<vmem>>, vector<1x1x32xf32>
    %272 = vector.shape_cast %271 : vector<1x1x32xf32> to vector<1x32xf32>
    %273 = vector.broadcast %272 : vector<1x32xf32> to vector<8x32xf32>
    %274 = arith.addf %270, %273 : vector<8x32xf32>
    %275 = arith.addf %274, %247 : vector<8x32xf32>
    %c1_131 = arith.constant 1 : index
    %c0_132 = arith.constant 0 : index
    %c0_133 = arith.constant 0 : index
    %276 = vector.load %arg15[%c1_131, %c0_132, %c0_133] : memref<2x1x32xf32, #tpu.memory_space<vmem>>, vector<1x1x32xf32>
    %277 = vector.shape_cast %276 : vector<1x1x32xf32> to vector<1x32xf32>
    %c1_134 = arith.constant 1 : index
    %c0_135 = arith.constant 0 : index
    %c0_136 = arith.constant 0 : index
    %278 = vector.load %arg16[%c1_134, %c0_135, %c0_136] : memref<2x1x32xf32, #tpu.memory_space<vmem>>, vector<1x1x32xf32>
    %279 = vector.shape_cast %278 : vector<1x1x32xf32> to vector<1x32xf32>
    %cst_137 = arith.constant dense<0.000000e+00> : vector<8xf32>
    %280 = vector.multi_reduction <add>, %275, %cst_137 [1] : vector<8x32xf32> to vector<8xf32>
    %281 = vector.shape_cast %280 : vector<8xf32> to vector<8x1xf32>
    %cst_138 = arith.constant 3.200000e+01 : f32
    %282 = vector.broadcast %cst_138 : f32 to vector<8x1xf32>
    %283 = arith.divf %281, %282 : vector<8x1xf32>
    %284 = vector.broadcast %283 : vector<8x1xf32> to vector<8x32xf32>
    %285 = arith.subf %275, %284 : vector<8x32xf32>
    %286 = arith.mulf %285, %285 : vector<8x32xf32>
    %cst_139 = arith.constant dense<0.000000e+00> : vector<8xf32>
    %287 = vector.multi_reduction <add>, %286, %cst_139 [1] : vector<8x32xf32> to vector<8xf32>
    %288 = vector.shape_cast %287 : vector<8xf32> to vector<8x1xf32>
    %cst_140 = arith.constant 3.200000e+01 : f32
    %289 = vector.broadcast %cst_140 : f32 to vector<8x1xf32>
    %290 = arith.divf %288, %289 : vector<8x1xf32>
    %291 = vector.broadcast %283 : vector<8x1xf32> to vector<8x32xf32>
    %292 = arith.subf %275, %291 : vector<8x32xf32>
    %cst_141 = arith.constant 9.99999996E-13 : f32
    %293 = vector.broadcast %cst_141 : f32 to vector<8x1xf32>
    %294 = arith.addf %290, %293 : vector<8x1xf32>
    %295 = math.rsqrt %294 : vector<8x1xf32>
    %296 = vector.broadcast %295 : vector<8x1xf32> to vector<8x32xf32>
    %297 = arith.mulf %292, %296 : vector<8x32xf32>
    %298 = vector.broadcast %277 : vector<1x32xf32> to vector<8x32xf32>
    %299 = arith.mulf %297, %298 : vector<8x32xf32>
    %300 = vector.broadcast %279 : vector<1x32xf32> to vector<8x32xf32>
    %301 = arith.addf %299, %300 : vector<8x32xf32>
    %c0_142 = arith.constant 0 : index
    %c0_143 = arith.constant 0 : index
    %302 = vector.load %arg17[%c0_142, %c0_143] : memref<32x4xf32, #tpu.memory_space<vmem>>, vector<32x4xf32>
    %cst_144 = arith.constant dense<0.000000e+00> : vector<8x4xf32>
    %303 = tpu.matmul %301, %302, %cst_144 {dimension_numbers = #tpu.dot_dimension_numbers<[1], [0], [0], [1], [0, 0, 1, 1], [], []>} : vector<8x32xf32>, vector<32x4xf32>, vector<8x4xf32> -> vector<8x4xf32>
    %c0_145 = arith.constant 0 : index
    %c0_146 = arith.constant 0 : index
    %304 = vector.load %arg18[%c0_145, %c0_146] : memref<1x4xf32, #tpu.memory_space<vmem>>, vector<1x4xf32>
    %305 = vector.broadcast %304 : vector<1x4xf32> to vector<8x4xf32>
    %306 = arith.addf %303, %305 : vector<8x4xf32>
    %c0_147 = arith.constant 0 : index
    %c0_148 = arith.constant 0 : index
    %c0_149 = arith.constant 0 : index
    %307 = vector.load %arg19[%c0_147, %c0_148, %c0_149] : memref<1x8x4xf32, #tpu.memory_space<vmem>>, vector<1x8x4xf32>
    %308 = vector.shape_cast %307 : vector<1x8x4xf32> to vector<8x4xf32>
    %309 = vector.shape_cast %306 : vector<8x4xf32> to vector<1x8x4xf32>
    tpu.vector_store %arg19[%c0_147, %c0_148, %c0_149], %309 {strides = array<i32>} : memref<1x8x4xf32, #tpu.memory_space<vmem>>, vector<1x8x4xf32>,
    return
  }
  func.func @transform_0(%arg0: i32) -> (i32, i32, i32) {
    %c0_i32 = arith.constant 0 : i32
    %c0_i32_0 = arith.constant 0 : i32
    %c0_i32_1 = arith.constant 0 : i32
    return %arg0, %c0_i32, %c0_i32_0 : i32, i32, i32
  }
  func.func @transform_1(%arg0: i32) -> (i32, i32, i32) {
    %c0_i32 = arith.constant 0 : i32
    %c0_i32_0 = arith.constant 0 : i32
    %c0_i32_1 = arith.constant 0 : i32
    return %arg0, %c0_i32, %c0_i32_0 : i32, i32, i32
  }
  func.func @transform_2(%arg0: i32) -> (i32, i32) {
    %c0_i32 = arith.constant 0 : i32
    %c0_i32_0 = arith.constant 0 : i32
    %c0_i32_1 = arith.constant 0 : i32
    return %c0_i32, %c0_i32_0 : i32, i32
  }
  func.func @transform_3(%arg0: i32) -> (i32, i32) {
    %c0_i32 = arith.constant 0 : i32
    %c0_i32_0 = arith.constant 0 : i32
    %c0_i32_1 = arith.constant 0 : i32
    return %c0_i32, %c0_i32_0 : i32, i32
  }
  func.func @transform_4(%arg0: i32) -> (i32, i32, i32) {
    %c0_i32 = arith.constant 0 : i32
    %c0_i32_0 = arith.constant 0 : i32
    %c0_i32_1 = arith.constant 0 : i32
    %c0_i32_2 = arith.constant 0 : i32
    return %c0_i32, %c0_i32_0, %c0_i32_1 : i32, i32, i32
  }
  func.func @transform_5(%arg0: i32) -> (i32, i32, i32) {
    %c0_i32 = arith.constant 0 : i32
    %c0_i32_0 = arith.constant 0 : i32
    %c0_i32_1 = arith.constant 0 : i32
    %c0_i32_2 = arith.constant 0 : i32
    return %c0_i32, %c0_i32_0, %c0_i32_1 : i32, i32, i32
  }
  func.func @transform_6(%arg0: i32) -> (i32, i32, i32) {
    %c0_i32 = arith.constant 0 : i32
    %c0_i32_0 = arith.constant 0 : i32
    %c0_i32_1 = arith.constant 0 : i32
    %c0_i32_2 = arith.constant 0 : i32
    return %c0_i32, %c0_i32_0, %c0_i32_1 : i32, i32, i32
  }
  func.func @transform_7(%arg0: i32) -> (i32, i32, i32) {
    %c0_i32 = arith.constant 0 : i32
    %c0_i32_0 = arith.constant 0 : i32
    %c0_i32_1 = arith.constant 0 : i32
    %c0_i32_2 = arith.constant 0 : i32
    return %c0_i32, %c0_i32_0, %c0_i32_1 : i32, i32, i32
  }
  func.func @transform_8(%arg0: i32) -> (i32, i32, i32) {
    %c0_i32 = arith.constant 0 : i32
    %c0_i32_0 = arith.constant 0 : i32
    %c0_i32_1 = arith.constant 0 : i32
    %c0_i32_2 = arith.constant 0 : i32
    return %c0_i32, %c0_i32_0, %c0_i32_1 : i32, i32, i32
  }
  func.func @transform_9(%arg0: i32) -> (i32, i32, i32) {
    %c0_i32 = arith.constant 0 : i32
    %c0_i32_0 = arith.constant 0 : i32
    %c0_i32_1 = arith.constant 0 : i32
    %c0_i32_2 = arith.constant 0 : i32
    return %c0_i32, %c0_i32_0, %c0_i32_1 : i32, i32, i32
  }
  func.func @transform_10(%arg0: i32) -> (i32, i32, i32) {
    %c0_i32 = arith.constant 0 : i32
    %c0_i32_0 = arith.constant 0 : i32
    %c0_i32_1 = arith.constant 0 : i32
    %c0_i32_2 = arith.constant 0 : i32
    return %c0_i32, %c0_i32_0, %c0_i32_1 : i32, i32, i32
  }
  func.func @transform_11(%arg0: i32) -> (i32, i32, i32) {
    %c0_i32 = arith.constant 0 : i32
    %c0_i32_0 = arith.constant 0 : i32
    %c0_i32_1 = arith.constant 0 : i32
    %c0_i32_2 = arith.constant 0 : i32
    return %c0_i32, %c0_i32_0, %c0_i32_1 : i32, i32, i32
  }
  func.func @transform_12(%arg0: i32) -> (i32, i32, i32) {
    %c0_i32 = arith.constant 0 : i32
    %c0_i32_0 = arith.constant 0 : i32
    %c0_i32_1 = arith.constant 0 : i32
    %c0_i32_2 = arith.constant 0 : i32
    return %c0_i32, %c0_i32_0, %c0_i32_1 : i32, i32, i32
  }
  func.func @transform_13(%arg0: i32) -> (i32, i32, i32) {
    %c0_i32 = arith.constant 0 : i32
    %c0_i32_0 = arith.constant 0 : i32
    %c0_i32_1 = arith.constant 0 : i32
    %c0_i32_2 = arith.constant 0 : i32
    return %c0_i32, %c0_i32_0, %c0_i32_1 : i32, i32, i32
  }
  func.func @transform_14(%arg0: i32) -> (i32, i32, i32) {
    %c0_i32 = arith.constant 0 : i32
    %c0_i32_0 = arith.constant 0 : i32
    %c0_i32_1 = arith.constant 0 : i32
    %c0_i32_2 = arith.constant 0 : i32
    return %c0_i32, %c0_i32_0, %c0_i32_1 : i32, i32, i32
  }
  func.func @transform_15(%arg0: i32) -> (i32, i32, i32) {
    %c0_i32 = arith.constant 0 : i32
    %c0_i32_0 = arith.constant 0 : i32
    %c0_i32_1 = arith.constant 0 : i32
    %c0_i32_2 = arith.constant 0 : i32
    return %c0_i32, %c0_i32_0, %c0_i32_1 : i32, i32, i32
  }
  func.func @transform_16(%arg0: i32) -> (i32, i32) {
    %c0_i32 = arith.constant 0 : i32
    %c0_i32_0 = arith.constant 0 : i32
    %c0_i32_1 = arith.constant 0 : i32
    return %c0_i32, %c0_i32_0 : i32, i32
  }
  func.func @transform_17(%arg0: i32) -> (i32, i32) {
    %c0_i32 = arith.constant 0 : i32
    %c0_i32_0 = arith.constant 0 : i32
    %c0_i32_1 = arith.constant 0 : i32
    return %c0_i32, %c0_i32_0 : i32, i32
  }
  func.func @transform_18(%arg0: i32) -> (i32, i32, i32) {
    %c0_i32 = arith.constant 0 : i32
    %c0_i32_0 = arith.constant 0 : i32
    %c0_i32_1 = arith.constant 0 : i32
    return %arg0, %c0_i32, %c0_i32_0 : i32, i32, i32
  }
}

</mosaic_0001>

<llo_original>
// kernel: tpu_custom_call.1
$region0: #{tpu_custom_call.1}
  #allocation0 [shape = 'u32[]', space=smem, size = 0x4, offset = 0x4, fixed_abs, tag = 'smem constant byte address 0x4 - core index']
  #allocation1 [shape = 'u32[144,128]{1,0:T(1,128)}', space=vmem, size = 0x12000, scoped, tag = 'internal scratch']
  %s0 = inlined_call_operand.vmem [shape: f32[2,8,32], index: 0, kind: input, shape index: {}]
  %s1 = inlined_call_operand.hbm [shape: f32[2,1,8], index: 1, kind: input, shape index: {}]
  %s2 = inlined_call_operand.vmem [shape: f32[1,32], index: 2, kind: input, shape index: {}]
  %s3 = inlined_call_operand.hbm [shape: f32[1,32], index: 3, kind: input, shape index: {}]
  %s4 = inlined_call_operand.vmem [shape: f32[2,32,96], index: 4, kind: input, shape index: {}]
  %s5 = inlined_call_operand.hbm [shape: f32[2,1,96], index: 5, kind: input, shape index: {}]
  %s6 = inlined_call_operand.vmem [shape: f32[2,32,32], index: 6, kind: input, shape index: {}]
  %s7 = inlined_call_operand.hbm [shape: f32[2,1,32], index: 7, kind: input, shape index: {}]
  %s8 = inlined_call_operand.hbm [shape: f32[2,1,32], index: 8, kind: input, shape index: {}]
  %s9 = inlined_call_operand.hbm [shape: f32[2,1,32], index: 9, kind: input, shape index: {}]
  %s10 = inlined_call_operand.vmem [shape: f32[2,32,64], index: 10, kind: input, shape index: {}]
  %s11 = inlined_call_operand.hbm [shape: f32[2,1,64], index: 11, kind: input, shape index: {}]
  %s12 = inlined_call_operand.vmem [shape: f32[2,64,32], index: 12, kind: input, shape index: {}]
  %s13 = inlined_call_operand.hbm [shape: f32[2,1,32], index: 13, kind: input, shape index: {}]
  %s14 = inlined_call_operand.vmem [shape: f32[2,1,32], index: 14, kind: input, shape index: {}]
  %s15 = inlined_call_operand.vmem [shape: f32[2,1,32], index: 15, kind: input, shape index: {}]
  %s16 = inlined_call_operand.vmem [shape: f32[32,4], index: 16, kind: input, shape index: {}]
  %s17 = inlined_call_operand.vmem [shape: f32[1,4], index: 17, kind: input, shape index: {}]
  %s18 = inlined_call_operand.vmem [shape: f32[2,8,4], index: 18, kind: output, shape index: {}]
  %s19 = sld [smem:[#allocation0]]
  $region137: #{tpu_custom_call.1} parent=0
    _
  %s21 = ssub.s32 1, %s19
  %s22 = scalar_select 0, %s21, %s19
  $region1: #{tpu_custom_call.1} parent=0
    #allocation2 [shape = 'u8[1024]{0}', space=vmem, size = 0x400, scoped, tag = 'input window, operand 1']
    #allocation3 [shape = 's32[2]{0}', space=sflag, size = 0x8, scoped, tag = 'scoped memory for tpu_custom_call.1']
    #allocation4 [shape = 'u8[512]{0}', space=vmem, size = 0x400, scoped, tag = 'input window, operand 3, single buffered']
    #allocation5 [shape = 's32[1]{0}', space=sflag, size = 0x4, scoped, tag = 'scoped memory for tpu_custom_call.1']
    #allocation6 [shape = 'u8[1024]{0}', space=vmem, size = 0x400, scoped, tag = 'input window, operand 5, single buffered']
    #allocation7 [shape = 'u8[1024]{0}', space=vmem, size = 0x400, scoped, tag = 'input window, operand 7, single buffered']
    #allocation8 [shape = 's32[1]{0}', space=sflag, size = 0x4, scoped, tag = 'scoped memory for tpu_custom_call.1']
    #allocation9 [shape = 'u8[1024]{0}', space=vmem, size = 0x400, scoped, tag = 'input window, operand 8, single buffered']
    #allocation10 [shape = 'u8[1024]{0}', space=vmem, size = 0x400, scoped, tag = 'input window, operand 9, single buffered']
    #allocation11 [shape = 's32[1]{0}', space=sflag, size = 0x4, scoped, tag = 'scoped memory for tpu_custom_call.1']
    #allocation12 [shape = 'u8[1024]{0}', space=vmem, size = 0x400, scoped, tag = 'input window, operand 11, single buffered']
    #allocation13 [shape = 'u8[1024]{0}', space=vmem, size = 0x400, scoped, tag = 'input window, operand 13, single buffered']
    #allocation14 [shape = 's32[1]{0}', space=sflag, size = 0x4, scoped, tag = 'scoped memory for tpu_custom_call.1']
    %23 = vsyncpa [#allocation3], 0
    %s24 = scalar_lea.sflag [#allocation3], 1
    %25 = vsyncpa %s24, 0
    %26 = vsyncpa [#allocation5], 0
    %27 = vsyncpa [#allocation8], 0
    %28 = vsyncpa [#allocation11], 0
    %29 = vsyncpa [#allocation14], 0
    loop: start=0, step=1, limit=4
    $region2: #{tpu_custom_call.1} parent=1 // loop_pre_header
      _
    $region3: #{tpu_custom_call.1} parent=1 // loop_header
      %s31 = sphi 0, %s35
      %p32 = scmp.ge.s32.totalorder %s31, 4
      %s41 = sphi 0, %s43
      %s44 = sphi 0, %s41
      %s45 = sphi 0, %s44
      %s61 = sphi 0, %s45
      %s67 = sphi 0, %s69
      %s70 = sphi 0, %s67
      %s71 = sphi 0, %s70
      %s87 = sphi 0, %s71
      %s91 = sphi 0, %s91
      %s93 = sphi 0, %s91
      %s94 = sphi 0, %s93
      %s108 = sphi 0, %s94
      %s112 = sphi 0, %s112
      %s114 = sphi 0, %s112
      %s115 = sphi 0, %s114
      %s129 = sphi 0, %s115
      %s133 = sphi 0, %s133
      %s135 = sphi 0, %s133
      %s136 = sphi 0, %s135
      %s150 = sphi 0, %s136
      %s154 = sphi 0, %s154
      %s156 = sphi 0, %s154
      %s157 = sphi 0, %s156
      %s171 = sphi 0, %s157
      %s175 = sphi 0, %s175
      %s177 = sphi 0, %s175
      %s178 = sphi 0, %s177
      %s192 = sphi 0, %s178
      %s196 = sphi 0, %s196
      %s198 = sphi 0, %s196
      %s199 = sphi 0, %s198
      %s213 = sphi 0, %s199
      %s217 = sphi 0, %s217
      %s219 = sphi 0, %s217
      %s220 = sphi 0, %s219
      %s234 = sphi 0, %s220
      %s238 = sphi 0, %s238
      %s240 = sphi 0, %s238
      %s241 = sphi 0, %s240
      %s255 = sphi 0, %s241
      %s259 = sphi 0, %s259
      %s261 = sphi 0, %s259
      %s262 = sphi 0, %s261
      %s276 = sphi 0, %s262
      %s280 = sphi 0, %s280
      %s282 = sphi 0, %s280
      %s283 = sphi 0, %s282
      %s297 = sphi 0, %s283
      %s301 = sphi 0, %s301
      %s303 = sphi 0, %s301
      %s304 = sphi 0, %s303
      %s318 = sphi 0, %s304
      %s322 = sphi 0, %s322
      %s324 = sphi 0, %s322
      %s325 = sphi 0, %s324
      %s339 = sphi 0, %s325
      %s343 = sphi 0, %s343
      %s345 = sphi 0, %s343
      %s346 = sphi 0, %s345
      %s360 = sphi 0, %s346
      %s364 = sphi 0, %s364
      %s366 = sphi 0, %s364
      %s367 = sphi 0, %s366
      %s381 = sphi 0, %s367
      %s385 = sphi 0, %s385
      %s387 = sphi 0, %s385
      %s388 = sphi 0, %s387
      %s402 = sphi 0, %s388
      %s406 = sphi 0, %s406
      %s408 = sphi 0, %s406
      %s409 = sphi 0, %s408
      %s423 = sphi 0, %s409
      %s429 = sphi 0, %s431
      %s432 = sphi 0, %s429
      %s433 = sphi 0, %s432
      %s449 = sphi 0, %s433
    $region4: #{tpu_custom_call.1} parent=1 // loop_header_branch
      %34 = sbr.rel (%p32) target = $region8
    $region5: #{tpu_custom_call.1} parent=1 // loop_body
      %s36 = ssub.s32 %s31, 1
      %s37 = ssub.s32 %s31, 2
      %s38 = sadd.s32 %s31, 1
      %s39 = ssub.s32 %s31, %s38
      %p40 = scmp.eq.s32.totalorder %s39, 0
      %s42 = sadd.s32 %s41, 1
      %s43 = scalar_select %p40, %s41, %s42
      %p46 = pneg %p40
      %p47 = scmp.eq.s32.totalorder %s31, 1
      %p48 = por %p46, %p47
      %p49 = scmp.ne.s32.totalorder %s41, %s44
      %p50 = scmp.eq.s32.totalorder %s31, 0
      %p51 = por %p49, %p50
      %p52 = scmp.ne.s32.totalorder %s41, %s44
      %p53 = scmp.eq.s32.totalorder %s36, 1
      %p54 = por %p52, %p53
      %p55 = scmp.ne.s32.totalorder %s44, %s45
      %p56 = scmp.eq.s32.totalorder %s36, 0
      %p57 = por %p55, %p56
      %p58 = scmp.ne.s32.totalorder %s44, %s45
      %p59 = scmp.eq.s32.totalorder %s37, 1
      %p60 = por %p58, %p59
      %p62 = scmp.ne.s32.totalorder %s45, %s61
      %p63 = scmp.eq.s32.totalorder %s37, 0
      %p64 = por %p62, %p63
      %s65 = ssub.s32 %s31, %s38
      %p66 = scmp.eq.s32.totalorder %s65, 0
      %s68 = sadd.s32 %s67, 1
      %s69 = scalar_select %p66, %s67, %s68
      %p72 = pneg %p66
      %p73 = scmp.eq.s32.totalorder %s31, 1
      %p74 = por %p72, %p73
      %p75 = scmp.ne.s32.totalorder %s67, %s70
      %p76 = scmp.eq.s32.totalorder %s31, 0
      %p77 = por %p75, %p76
      %p78 = scmp.ne.s32.totalorder %s67, %s70
      %p79 = scmp.eq.s32.totalorder %s36, 1
      %p80 = por %p78, %p79
      %p81 = scmp.ne.s32.totalorder %s70, %s71
      %p82 = scmp.eq.s32.totalorder %s36, 0
      %p83 = por %p81, %p82
      %p84 = scmp.ne.s32.totalorder %s70, %s71
      %p85 = scmp.eq.s32.totalorder %s37, 1
      %p86 = por %p84, %p85
      %p88 = scmp.ne.s32.totalorder %s71, %s87
      %p89 = scmp.eq.s32.totalorder %s37, 0
      %p90 = por %p88, %p89
      %s92 = sadd.s32 %s91, 1
      %p95 = scmp.eq.s32.totalorder %s31, 1
      %p96 = scmp.ne.s32.totalorder %s91, %s93
      %p97 = scmp.eq.s32.totalorder %s31, 0
      %p98 = por %p96, %p97
      %p99 = scmp.ne.s32.totalorder %s91, %s93
      %p100 = scmp.eq.s32.totalorder %s36, 1
      %p101 = por %p99, %p100
      %p102 = scmp.ne.s32.totalorder %s93, %s94
      %p103 = scmp.eq.s32.totalorder %s36, 0
      %p104 = por %p102, %p103
      %p105 = scmp.ne.s32.totalorder %s93, %s94
      %p106 = scmp.eq.s32.totalorder %s37, 1
      %p107 = por %p105, %p106
      %p109 = scmp.ne.s32.totalorder %s94, %s108
      %p110 = scmp.eq.s32.totalorder %s37, 0
      %p111 = por %p109, %p110
      %s113 = sadd.s32 %s112, 1
      %p116 = scmp.eq.s32.totalorder %s31, 1
      %p117 = scmp.ne.s32.totalorder %s112, %s114
      %p118 = scmp.eq.s32.totalorder %s31, 0
      %p119 = por %p117, %p118
      %p120 = scmp.ne.s32.totalorder %s112, %s114
      %p121 = scmp.eq.s32.totalorder %s36, 1
      %p122 = por %p120, %p121
      %p123 = scmp.ne.s32.totalorder %s114, %s115
      %p124 = scmp.eq.s32.totalorder %s36, 0
      %p125 = por %p123, %p124
      %p126 = scmp.ne.s32.totalorder %s114, %s115
      %p127 = scmp.eq.s32.totalorder %s37, 1
      %p128 = por %p126, %p127
      %p130 = scmp.ne.s32.totalorder %s115, %s129
      %p131 = scmp.eq.s32.totalorder %s37, 0
      %p132 = por %p130, %p131
      %s134 = sadd.s32 %s133, 1
      %p137 = scmp.eq.s32.totalorder %s31, 1
      %p138 = scmp.ne.s32.totalorder %s133, %s135
      %p139 = scmp.eq.s32.totalorder %s31, 0
      %p140 = por %p138, %p139
      %p141 = scmp.ne.s32.totalorder %s133, %s135
      %p142 = scmp.eq.s32.totalorder %s36, 1
      %p143 = por %p141, %p142
      %p144 = scmp.ne.s32.totalorder %s135, %s136
      %p145 = scmp.eq.s32.totalorder %s36, 0
      %p146 = por %p144, %p145
      %p147 = scmp.ne.s32.totalorder %s135, %s136
      %p148 = scmp.eq.s32.totalorder %s37, 1
      %p149 = por %p147, %p148
      %p151 = scmp.ne.s32.totalorder %s136, %s150
      %p152 = scmp.eq.s32.totalorder %s37, 0
      %p153 = por %p151, %p152
      %s155 = sadd.s32 %s154, 1
      %p158 = scmp.eq.s32.totalorder %s31, 1
      %p159 = scmp.ne.s32.totalorder %s154, %s156
      %p160 = scmp.eq.s32.totalorder %s31, 0
      %p161 = por %p159, %p160
      %p162 = scmp.ne.s32.totalorder %s154, %s156
      %p163 = scmp.eq.s32.totalorder %s36, 1
      %p164 = por %p162, %p163
      %p165 = scmp.ne.s32.totalorder %s156, %s157
      %p166 = scmp.eq.s32.totalorder %s36, 0
      %p167 = por %p165, %p166
      %p168 = scmp.ne.s32.totalorder %s156, %s157
      %p169 = scmp.eq.s32.totalorder %s37, 1
      %p170 = por %p168, %p169
      %p172 = scmp.ne.s32.totalorder %s157, %s171
      %p173 = scmp.eq.s32.totalorder %s37, 0
      %p174 = por %p172, %p173
      %s176 = sadd.s32 %s175, 1
      %p179 = scmp.eq.s32.totalorder %s31, 1
      %p180 = scmp.ne.s32.totalorder %s175, %s177
      %p181 = scmp.eq.s32.totalorder %s31, 0
      %p182 = por %p180, %p181
      %p183 = scmp.ne.s32.totalorder %s175, %s177
      %p184 = scmp.eq.s32.totalorder %s36, 1
      %p185 = por %p183, %p184
      %p186 = scmp.ne.s32.totalorder %s177, %s178
      %p187 = scmp.eq.s32.totalorder %s36, 0
      %p188 = por %p186, %p187
      %p189 = scmp.ne.s32.totalorder %s177, %s178
      %p190 = scmp.eq.s32.totalorder %s37, 1
      %p191 = por %p189, %p190
      %p193 = scmp.ne.s32.totalorder %s178, %s192
      %p194 = scmp.eq.s32.totalorder %s37, 0
      %p195 = por %p193, %p194
      %s197 = sadd.s32 %s196, 1
      %p200 = scmp.eq.s32.totalorder %s31, 1
      %p201 = scmp.ne.s32.totalorder %s196, %s198
      %p202 = scmp.eq.s32.totalorder %s31, 0
      %p203 = por %p201, %p202
      %p204 = scmp.ne.s32.totalorder %s196, %s198
      %p205 = scmp.eq.s32.totalorder %s36, 1
      %p206 = por %p204, %p205
      %p207 = scmp.ne.s32.totalorder %s198, %s199
      %p208 = scmp.eq.s32.totalorder %s36, 0
      %p209 = por %p207, %p208
      %p210 = scmp.ne.s32.totalorder %s198, %s199
      %p211 = scmp.eq.s32.totalorder %s37, 1
      %p212 = por %p210, %p211
      %p214 = scmp.ne.s32.totalorder %s199, %s213
      %p215 = scmp.eq.s32.totalorder %s37, 0
      %p216 = por %p214, %p215
      %s218 = sadd.s32 %s217, 1
      %p221 = scmp.eq.s32.totalorder %s31, 1
      %p222 = scmp.ne.s32.totalorder %s217, %s219
      %p223 = scmp.eq.s32.totalorder %s31, 0
      %p224 = por %p222, %p223
      %p225 = scmp.ne.s32.totalorder %s217, %s219
      %p226 = scmp.eq.s32.totalorder %s36, 1
      %p227 = por %p225, %p226
      %p228 = scmp.ne.s32.totalorder %s219, %s220
      %p229 = scmp.eq.s32.totalorder %s36, 0
      %p230 = por %p228, %p229
      %p231 = scmp.ne.s32.totalorder %s219, %s220
      %p232 = scmp.eq.s32.totalorder %s37, 1
      %p233 = por %p231, %p232
      %p235 = scmp.ne.s32.totalorder %s220, %s234
      %p236 = scmp.eq.s32.totalorder %s37, 0
      %p237 = por %p235, %p236
      %s239 = sadd.s32 %s238, 1
      %p242 = scmp.eq.s32.totalorder %s31, 1
      %p243 = scmp.ne.s32.totalorder %s238, %s240
      %p244 = scmp.eq.s32.totalorder %s31, 0
      %p245 = por %p243, %p244
      %p246 = scmp.ne.s32.totalorder %s238, %s240
      %p247 = scmp.eq.s32.totalorder %s36, 1
      %p248 = por %p246, %p247
      %p249 = scmp.ne.s32.totalorder %s240, %s241
      %p250 = scmp.eq.s32.totalorder %s36, 0
      %p251 = por %p249, %p250
      %p252 = scmp.ne.s32.totalorder %s240, %s241
      %p253 = scmp.eq.s32.totalorder %s37, 1
      %p254 = por %p252, %p253
      %p256 = scmp.ne.s32.totalorder %s241, %s255
      %p257 = scmp.eq.s32.totalorder %s37, 0
      %p258 = por %p256, %p257
      %s260 = sadd.s32 %s259, 1
      %p263 = scmp.eq.s32.totalorder %s31, 1
      %p264 = scmp.ne.s32.totalorder %s259, %s261
      %p265 = scmp.eq.s32.totalorder %s31, 0
      %p266 = por %p264, %p265
      %p267 = scmp.ne.s32.totalorder %s259, %s261
      %p268 = scmp.eq.s32.totalorder %s36, 1
      %p269 = por %p267, %p268
      %p270 = scmp.ne.s32.totalorder %s261, %s262
      %p271 = scmp.eq.s32.totalorder %s36, 0
      %p272 = por %p270, %p271
      %p273 = scmp.ne.s32.totalorder %s261, %s262
      %p274 = scmp.eq.s32.totalorder %s37, 1
      %p275 = por %p273, %p274
      %p277 = scmp.ne.s32.totalorder %s262, %s276
      %p278 = scmp.eq.s32.totalorder %s37, 0
      %p279 = por %p277, %p278
      %s281 = sadd.s32 %s280, 1
      %p284 = scmp.eq.s32.totalorder %s31, 1
      %p285 = scmp.ne.s32.totalorder %s280, %s282
      %p286 = scmp.eq.s32.totalorder %s31, 0
      %p287 = por %p285, %p286
      %p288 = scmp.ne.s32.totalorder %s280, %s282
      %p289 = scmp.eq.s32.totalorder %s36, 1
      %p290 = por %p288, %p289
      %p291 = scmp.ne.s32.totalorder %s282, %s283
      %p292 = scmp.eq.s32.totalorder %s36, 0
      %p293 = por %p291, %p292
      %p294 = scmp.ne.s32.totalorder %s282, %s283
      %p295 = scmp.eq.s32.totalorder %s37, 1
      %p296 = por %p294, %p295
      %p298 = scmp.ne.s32.totalorder %s283, %s297
      %p299 = scmp.eq.s32.totalorder %s37, 0
      %p300 = por %p298, %p299
      %s302 = sadd.s32 %s301, 1
      %p305 = scmp.eq.s32.totalorder %s31, 1
      %p306 = scmp.ne.s32.totalorder %s301, %s303
      %p307 = scmp.eq.s32.totalorder %s31, 0
      %p308 = por %p306, %p307
      %p309 = scmp.ne.s32.totalorder %s301, %s303
      %p310 = scmp.eq.s32.totalorder %s36, 1
      %p311 = por %p309, %p310
      %p312 = scmp.ne.s32.totalorder %s303, %s304
      %p313 = scmp.eq.s32.totalorder %s36, 0
      %p314 = por %p312, %p313
      %p315 = scmp.ne.s32.totalorder %s303, %s304
      %p316 = scmp.eq.s32.totalorder %s37, 1
      %p317 = por %p315, %p316
      %p319 = scmp.ne.s32.totalorder %s304, %s318
      %p320 = scmp.eq.s32.totalorder %s37, 0
      %p321 = por %p319, %p320
      %s323 = sadd.s32 %s322, 1
      %p326 = scmp.eq.s32.totalorder %s31, 1
      %p327 = scmp.ne.s32.totalorder %s322, %s324
      %p328 = scmp.eq.s32.totalorder %s31, 0
      %p329 = por %p327, %p328
      %p330 = scmp.ne.s32.totalorder %s322, %s324
      %p331 = scmp.eq.s32.totalorder %s36, 1
      %p332 = por %p330, %p331
      %p333 = scmp.ne.s32.totalorder %s324, %s325
      %p334 = scmp.eq.s32.totalorder %s36, 0
      %p335 = por %p333, %p334
      %p336 = scmp.ne.s32.totalorder %s324, %s325
      %p337 = scmp.eq.s32.totalorder %s37, 1
      %p338 = por %p336, %p337
      %p340 = scmp.ne.s32.totalorder %s325, %s339
      %p341 = scmp.eq.s32.totalorder %s37, 0
      %p342 = por %p340, %p341
      %s344 = sadd.s32 %s343, 1
      %p347 = scmp.eq.s32.totalorder %s31, 1
      %p348 = scmp.ne.s32.totalorder %s343, %s345
      %p349 = scmp.eq.s32.totalorder %s31, 0
      %p350 = por %p348, %p349
      %p351 = scmp.ne.s32.totalorder %s343, %s345
      %p352 = scmp.eq.s32.totalorder %s36, 1
      %p353 = por %p351, %p352
      %p354 = scmp.ne.s32.totalorder %s345, %s346
      %p355 = scmp.eq.s32.totalorder %s36, 0
      %p356 = por %p354, %p355
      %p357 = scmp.ne.s32.totalorder %s345, %s346
      %p358 = scmp.eq.s32.totalorder %s37, 1
      %p359 = por %p357, %p358
      %p361 = scmp.ne.s32.totalorder %s346, %s360
      %p362 = scmp.eq.s32.totalorder %s37, 0
      %p363 = por %p361, %p362
      %s365 = sadd.s32 %s364, 1
      %p368 = scmp.eq.s32.totalorder %s31, 1
      %p369 = scmp.ne.s32.totalorder %s364, %s366
      %p370 = scmp.eq.s32.totalorder %s31, 0
      %p371 = por %p369, %p370
      %p372 = scmp.ne.s32.totalorder %s364, %s366
      %p373 = scmp.eq.s32.totalorder %s36, 1
      %p374 = por %p372, %p373
      %p375 = scmp.ne.s32.totalorder %s366, %s367
      %p376 = scmp.eq.s32.totalorder %s36, 0
      %p377 = por %p375, %p376
      %p378 = scmp.ne.s32.totalorder %s366, %s367
      %p379 = scmp.eq.s32.totalorder %s37, 1
      %p380 = por %p378, %p379
      %p382 = scmp.ne.s32.totalorder %s367, %s381
      %p383 = scmp.eq.s32.totalorder %s37, 0
      %p384 = por %p382, %p383
      %s386 = sadd.s32 %s385, 1
      %p389 = scmp.eq.s32.totalorder %s31, 1
      %p390 = scmp.ne.s32.totalorder %s385, %s387
      %p391 = scmp.eq.s32.totalorder %s31, 0
      %p392 = por %p390, %p391
      %p393 = scmp.ne.s32.totalorder %s385, %s387
      %p394 = scmp.eq.s32.totalorder %s36, 1
      %p395 = por %p393, %p394
      %p396 = scmp.ne.s32.totalorder %s387, %s388
      %p397 = scmp.eq.s32.totalorder %s36, 0
      %p398 = por %p396, %p397
      %p399 = scmp.ne.s32.totalorder %s387, %s388
      %p400 = scmp.eq.s32.totalorder %s37, 1
      %p401 = por %p399, %p400
      %p403 = scmp.ne.s32.totalorder %s388, %s402
      %p404 = scmp.eq.s32.totalorder %s37, 0
      %p405 = por %p403, %p404
      %s407 = sadd.s32 %s406, 1
      %p410 = scmp.eq.s32.totalorder %s31, 1
      %p411 = scmp.ne.s32.totalorder %s406, %s408
      %p412 = scmp.eq.s32.totalorder %s31, 0
      %p413 = por %p411, %p412
      %p414 = scmp.ne.s32.totalorder %s406, %s408
      %p415 = scmp.eq.s32.totalorder %s36, 1
      %p416 = por %p414, %p415
      %p417 = scmp.ne.s32.totalorder %s408, %s409
      %p418 = scmp.eq.s32.totalorder %s36, 0
      %p419 = por %p417, %p418
      %p420 = scmp.ne.s32.totalorder %s408, %s409
      %p421 = scmp.eq.s32.totalorder %s37, 1
      %p422 = por %p420, %p421
      %p424 = scmp.ne.s32.totalorder %s409, %s423
      %p425 = scmp.eq.s32.totalorder %s37, 0
      %p426 = por %p424, %p425
      %s427 = ssub.s32 %s31, %s38
      %p428 = scmp.eq.s32.totalorder %s427, 0
      %s430 = sadd.s32 %s429, 1
      %s431 = scalar_select %p428, %s429, %s430
      %p434 = pneg %p428
      %p435 = scmp.eq.s32.totalorder %s31, 1
      %p436 = por %p434, %p435
      %p437 = scmp.ne.s32.totalorder %s429, %s432
      %p438 = scmp.eq.s32.totalorder %s31, 0
      %p439 = por %p437, %p438
      %p440 = scmp.ne.s32.totalorder %s429, %s432
      %p441 = scmp.eq.s32.totalorder %s36, 1
      %p442 = por %p440, %p441
      %p443 = scmp.ne.s32.totalorder %s432, %s433
      %p444 = scmp.eq.s32.totalorder %s36, 0
      %p445 = por %p443, %p444
      %p446 = scmp.ne.s32.totalorder %s432, %s433
      %p447 = scmp.eq.s32.totalorder %s37, 1
      %p448 = por %p446, %p447
      %p450 = scmp.ne.s32.totalorder %s433, %s449
      %p451 = scmp.eq.s32.totalorder %s37, 0
      %p452 = por %p450, %p451
      %p453 = scmp.le.s32.totalorder 1, %s31
      %p454 = scmp.lt.s32.totalorder %s31, 3
      %p455 = pnand %p453, %p454
      %p456 = pneg %p455
      // Predicated region
      $region9: #{tpu_custom_call.1} parent=5 // pred_check
        _
      $region10: #{tpu_custom_call.1} parent=5 // pred_check_branch
        %458 = sbr.rel (%p455) target = $region12
      $region11: #{tpu_custom_call.1} parent=5 // pred_region
        %s459 = ssub.s32 %s31, 1
        // Predicated region
        $region13: #{tpu_custom_call.1} parent=11 // pred_check
          %p460 = pneg %p104
        $region14: #{tpu_custom_call.1} parent=11 // pred_check_branch
          %462 = sbr.rel (%p460) target = $region16
        $region15: #{tpu_custom_call.1} parent=11 // pred_region
          _
        $region16: #{tpu_custom_call.1} parent=11 // pred_fallthru
          _
        // Predicated region
        $region17: #{tpu_custom_call.1} parent=11 // pred_check
          %p463 = pneg %p125
        $region18: #{tpu_custom_call.1} parent=11 // pred_check_branch
          %465 = sbr.rel (%p463) target = $region20
        $region19: #{tpu_custom_call.1} parent=11 // pred_region
          %s467 = ssub.s32 16, 16
          %468 = vsyncadd [#allocation5], %s467
          %s470 = sshll.u32 [#allocation4], 4
          %s471 = int_to_ptr.vmem [resolvable:$true] %s470
          %473 = dma.hbm_to_vmem [thread:$0]  %s3, 16, %s471, [#allocation5]
        $region20: #{tpu_custom_call.1} parent=11 // pred_fallthru
          _
        // Predicated region
        $region21: #{tpu_custom_call.1} parent=11 // pred_check
          %p474 = pneg %p146
        $region22: #{tpu_custom_call.1} parent=11 // pred_check_branch
          %476 = sbr.rel (%p474) target = $region24
        $region23: #{tpu_custom_call.1} parent=11 // pred_region
          _
        $region24: #{tpu_custom_call.1} parent=11 // pred_fallthru
          _
        // Predicated region
        $region25: #{tpu_custom_call.1} parent=11 // pred_check
          %p477 = pneg %p167
        $region26: #{tpu_custom_call.1} parent=11 // pred_check_branch
          %479 = sbr.rel (%p477) target = $region28
        $region27: #{tpu_custom_call.1} parent=11 // pred_region
          %s481 = ssub.s32 32, 32
          %482 = vsyncadd [#allocation5], %s481
          %s483 = sshll.u32 [#allocation6], 4
          %s484 = int_to_ptr.vmem [resolvable:$true] %s483
          %489 = dma.hbm_to_vmem [thread:$0]  %s5, 32, %s484, [#allocation5], 16, 16, 1
        $region28: #{tpu_custom_call.1} parent=11 // pred_fallthru
          _
        // Predicated region
        $region29: #{tpu_custom_call.1} parent=11 // pred_check
          %p490 = pneg %p188
        $region30: #{tpu_custom_call.1} parent=11 // pred_check_branch
          %492 = sbr.rel (%p490) target = $region32
        $region31: #{tpu_custom_call.1} parent=11 // pred_region
          _
        $region32: #{tpu_custom_call.1} parent=11 // pred_fallthru
          _
        // Predicated region
        $region33: #{tpu_custom_call.1} parent=11 // pred_check
          %p493 = pneg %p209
        $region34: #{tpu_custom_call.1} parent=11 // pred_check_branch
          %495 = sbr.rel (%p493) target = $region36
        $region35: #{tpu_custom_call.1} parent=11 // pred_region
          %s497 = ssub.s32 32, 32
          %498 = vsyncadd [#allocation8], %s497
          %s499 = sshll.u32 [#allocation7], 4
          %s500 = int_to_ptr.vmem [resolvable:$true] %s499
          %505 = dma.hbm_to_vmem [thread:$0]  %s7, 32, %s500, [#allocation8], 16, 16, 1
        $region36: #{tpu_custom_call.1} parent=11 // pred_fallthru
          _
        // Predicated region
        $region37: #{tpu_custom_call.1} parent=11 // pred_check
          %p506 = pneg %p230
        $region38: #{tpu_custom_call.1} parent=11 // pred_check_branch
          %508 = sbr.rel (%p506) target = $region40
        $region39: #{tpu_custom_call.1} parent=11 // pred_region
          %s510 = ssub.s32 32, 32
          %511 = vsyncadd [#allocation8], %s510
          %s512 = sshll.u32 [#allocation9], 4
          %s513 = int_to_ptr.vmem [resolvable:$true] %s512
          %518 = dma.hbm_to_vmem [thread:$0]  %s8, 32, %s513, [#allocation8], 16, 16, 1
        $region40: #{tpu_custom_call.1} parent=11 // pred_fallthru
          _
        // Predicated region
        $region41: #{tpu_custom_call.1} parent=11 // pred_check
          %p519 = pneg %p251
        $region42: #{tpu_custom_call.1} parent=11 // pred_check_branch
          %521 = sbr.rel (%p519) target = $region44
        $region43: #{tpu_custom_call.1} parent=11 // pred_region
          %s523 = ssub.s32 32, 32
          %524 = vsyncadd [#allocation11], %s523
          %s525 = sshll.u32 [#allocation10], 4
          %s526 = int_to_ptr.vmem [resolvable:$true] %s525
          %531 = dma.hbm_to_vmem [thread:$0]  %s9, 32, %s526, [#allocation11], 16, 16, 1
        $region44: #{tpu_custom_call.1} parent=11 // pred_fallthru
          _
        // Predicated region
        $region45: #{tpu_custom_call.1} parent=11 // pred_check
          %p532 = pneg %p272
        $region46: #{tpu_custom_call.1} parent=11 // pred_check_branch
          %534 = sbr.rel (%p532) target = $region48
        $region47: #{tpu_custom_call.1} parent=11 // pred_region
          _
        $region48: #{tpu_custom_call.1} parent=11 // pred_fallthru
          _
        // Predicated region
        $region49: #{tpu_custom_call.1} parent=11 // pred_check
          %p535 = pneg %p293
        $region50: #{tpu_custom_call.1} parent=11 // pred_check_branch
          %537 = sbr.rel (%p535) target = $region52
        $region51: #{tpu_custom_call.1} parent=11 // pred_region
          %s539 = ssub.s32 32, 32
          %540 = vsyncadd [#allocation11], %s539
          %s541 = sshll.u32 [#allocation12], 4
          %s542 = int_to_ptr.vmem [resolvable:$true] %s541
          %547 = dma.hbm_to_vmem [thread:$0]  %s11, 32, %s542, [#allocation11], 16, 16, 1
        $region52: #{tpu_custom_call.1} parent=11 // pred_fallthru
          _
        // Predicated region
        $region53: #{tpu_custom_call.1} parent=11 // pred_check
          %p548 = pneg %p314
        $region54: #{tpu_custom_call.1} parent=11 // pred_check_branch
          %550 = sbr.rel (%p548) target = $region56
        $region55: #{tpu_custom_call.1} parent=11 // pred_region
          _
        $region56: #{tpu_custom_call.1} parent=11 // pred_fallthru
          _
        // Predicated region
        $region57: #{tpu_custom_call.1} parent=11 // pred_check
          %p551 = pneg %p335
        $region58: #{tpu_custom_call.1} parent=11 // pred_check_branch
          %553 = sbr.rel (%p551) target = $region60
        $region59: #{tpu_custom_call.1} parent=11 // pred_region
          %s555 = ssub.s32 32, 32
          %556 = vsyncadd [#allocation14], %s555
          %s557 = sshll.u32 [#allocation13], 4
          %s558 = int_to_ptr.vmem [resolvable:$true] %s557
          %563 = dma.hbm_to_vmem [thread:$0]  %s13, 32, %s558, [#allocation14], 16, 16, 1
        $region60: #{tpu_custom_call.1} parent=11 // pred_fallthru
          _
        // Predicated region
        $region61: #{tpu_custom_call.1} parent=11 // pred_check
          %p564 = pneg %p356
        $region62: #{tpu_custom_call.1} parent=11 // pred_check_branch
          %566 = sbr.rel (%p564) target = $region64
        $region63: #{tpu_custom_call.1} parent=11 // pred_region
          _
        $region64: #{tpu_custom_call.1} parent=11 // pred_fallthru
          _
        // Predicated region
        $region65: #{tpu_custom_call.1} parent=11 // pred_check
          %p567 = pneg %p377
        $region66: #{tpu_custom_call.1} parent=11 // pred_check_branch
          %569 = sbr.rel (%p567) target = $region68
        $region67: #{tpu_custom_call.1} parent=11 // pred_region
          _
        $region68: #{tpu_custom_call.1} parent=11 // pred_fallthru
          _
        // Predicated region
        $region69: #{tpu_custom_call.1} parent=11 // pred_check
          %p570 = pneg %p398
        $region70: #{tpu_custom_call.1} parent=11 // pred_check_branch
          %572 = sbr.rel (%p570) target = $region72
        $region71: #{tpu_custom_call.1} parent=11 // pred_region
          _
        $region72: #{tpu_custom_call.1} parent=11 // pred_fallthru
          _
        // Predicated region
        $region73: #{tpu_custom_call.1} parent=11 // pred_check
          %p573 = pneg %p419
        $region74: #{tpu_custom_call.1} parent=11 // pred_check_branch
          %575 = sbr.rel (%p573) target = $region76
        $region75: #{tpu_custom_call.1} parent=11 // pred_region
          _
        $region76: #{tpu_custom_call.1} parent=11 // pred_fallthru
          _
      $region12: #{tpu_custom_call.1} parent=5 // pred_fallthru
        _
      %p576 = scmp.lt.s32.totalorder %s31, 2
      // Predicated region
      $region77: #{tpu_custom_call.1} parent=5 // pred_check
        %p577 = pneg %p576
      $region78: #{tpu_custom_call.1} parent=5 // pred_check_branch
        %579 = sbr.rel (%p577) target = $region80
      $region79: #{tpu_custom_call.1} parent=5 // pred_region
        // Predicated region
        $region81: #{tpu_custom_call.1} parent=79 // pred_check
          %p580 = pneg %p51
        $region82: #{tpu_custom_call.1} parent=79 // pred_check_branch
          %582 = sbr.rel (%p580) target = $region84
        $region83: #{tpu_custom_call.1} parent=79 // pred_region
          %p583 = scmp.lt.s32.totalorder %s31, 1
          %s584 = scalar_select %p583, %s31, 1
          %s585 = smul.addr %s584, 8
          %s586 = scalar_lea.vmem %s0, %s585
        $region84: #{tpu_custom_call.1} parent=79 // pred_fallthru
          _
        // Predicated region
        $region85: #{tpu_custom_call.1} parent=79 // pred_check
          %p587 = pneg %p77
        $region86: #{tpu_custom_call.1} parent=79 // pred_check_branch
          %589 = sbr.rel (%p587) target = $region88
        $region87: #{tpu_custom_call.1} parent=79 // pred_region
          %s590 = sand.u32 %s67, 1
          %s591 = scalar_lea.sflag [#allocation3], %s590
          %s592 = sand.u32 %s67, 1
          %s593 = scalar_lea.vmem [#allocation2], %s592
          %s595 = ssub.s32 16, 16
          %596 = vsyncadd %s591, %s595
          %s597 = smul.addr %s31, 16
          %s598 = scalar_lea.hbm %s1, %s597
          %s600 = sshll.u32 %s593, 4
          %s601 = int_to_ptr.vmem [resolvable:$true] %s600
          %603 = dma.hbm_to_vmem [thread:$0]  %s598, 16, %s601, %s591
        $region88: #{tpu_custom_call.1} parent=79 // pred_fallthru
          _
      $region80: #{tpu_custom_call.1} parent=5 // pred_fallthru
        _
      %p604 = scmp.le.s32.totalorder 1, %s31
      %p605 = scmp.lt.s32.totalorder %s31, 3
      %p606 = pnand %p604, %p605
      %p607 = pneg %p606
      // Predicated region
      $region89: #{tpu_custom_call.1} parent=5 // pred_check
        _
      $region90: #{tpu_custom_call.1} parent=5 // pred_check_branch
        %609 = sbr.rel (%p606) target = $region92
      $region91: #{tpu_custom_call.1} parent=5 // pred_region
        %s610 = ssub.s32 %s31, 1
        %s611 = sand.u32 %s70, 1
        %s612 = scalar_lea.sflag [#allocation3], %s611
        %s613 = sand.u32 %s70, 1
        %s614 = scalar_lea.vmem [#allocation2], %s613
        // Predicated region
        $region93: #{tpu_custom_call.1} parent=91 // pred_check
          %p615 = pneg %p83
        $region94: #{tpu_custom_call.1} parent=91 // pred_check_branch
          %617 = sbr.rel (%p615) target = $region96
        $region95: #{tpu_custom_call.1} parent=91 // pred_region
          %618 = dma.done %s612, 16
        $region96: #{tpu_custom_call.1} parent=91 // pred_fallthru
          _
        // Predicated region
        $region97: #{tpu_custom_call.1} parent=91 // pred_check
          %p619 = pneg %p125
        $region98: #{tpu_custom_call.1} parent=91 // pred_check_branch
          %621 = sbr.rel (%p619) target = $region100
        $region99: #{tpu_custom_call.1} parent=91 // pred_region
          %622 = dma.done [#allocation5], 16
        $region100: #{tpu_custom_call.1} parent=91 // pred_fallthru
          _
        // Predicated region
        $region101: #{tpu_custom_call.1} parent=91 // pred_check
          %p623 = pneg %p167
        $region102: #{tpu_custom_call.1} parent=91 // pred_check_branch
          %625 = sbr.rel (%p623) target = $region104
        $region103: #{tpu_custom_call.1} parent=91 // pred_region
          %626 = dma.done [#allocation5], 32
        $region104: #{tpu_custom_call.1} parent=91 // pred_fallthru
          _
        // Predicated region
        $region105: #{tpu_custom_call.1} parent=91 // pred_check
          %p627 = pneg %p209
        $region106: #{tpu_custom_call.1} parent=91 // pred_check_branch
          %629 = sbr.rel (%p627) target = $region108
        $region107: #{tpu_custom_call.1} parent=91 // pred_region
          %630 = dma.done [#allocation8], 32
        $region108: #{tpu_custom_call.1} parent=91 // pred_fallthru
          _
        // Predicated region
        $region109: #{tpu_custom_call.1} parent=91 // pred_check
          %p631 = pneg %p230
        $region110: #{tpu_custom_call.1} parent=91 // pred_check_branch
          %633 = sbr.rel (%p631) target = $region112
        $region111: #{tpu_custom_call.1} parent=91 // pred_region
          %634 = dma.done [#allocation8], 32
        $region112: #{tpu_custom_call.1} parent=91 // pred_fallthru
          _
        // Predicated region
        $region113: #{tpu_custom_call.1} parent=91 // pred_check
          %p635 = pneg %p251
        $region114: #{tpu_custom_call.1} parent=91 // pred_check_branch
          %637 = sbr.rel (%p635) target = $region116
        $region115: #{tpu_custom_call.1} parent=91 // pred_region
          %638 = dma.done [#allocation11], 32
        $region116: #{tpu_custom_call.1} parent=91 // pred_fallthru
          _
        // Predicated region
        $region117: #{tpu_custom_call.1} parent=91 // pred_check
          %p639 = pneg %p293
        $region118: #{tpu_custom_call.1} parent=91 // pred_check_branch
          %641 = sbr.rel (%p639) target = $region120
        $region119: #{tpu_custom_call.1} parent=91 // pred_region
          %642 = dma.done [#allocation11], 32
        $region120: #{tpu_custom_call.1} parent=91 // pred_fallthru
          _
        // Predicated region
        $region121: #{tpu_custom_call.1} parent=91 // pred_check
          %p643 = pneg %p335
        $region122: #{tpu_custom_call.1} parent=91 // pred_check_branch
          %645 = sbr.rel (%p643) target = $region124
        $region123: #{tpu_custom_call.1} parent=91 // pred_region
          %646 = dma.done [#allocation14], 32
        $region124: #{tpu_custom_call.1} parent=91 // pred_fallthru
          _
        %p647 = scmp.lt.s32.totalorder %s36, 1
        %s648 = scalar_select %p647, %s36, 1
        %s649 = smul.addr %s648, 8
        %s650 = scalar_lea.vmem %s0, %s649
        %p651 = pneg %p57
        %p652 = pneg %p54
        %s653 = sand.u32 %s70, 1
        %s654 = scalar_lea.sflag [#allocation3], %s653
        %s655 = sand.u32 %s70, 1
        %s656 = scalar_lea.vmem [#allocation2], %s655
        %p657 = pneg %p83
        %p658 = pneg %p80
        %p659 = pneg %p104
        %p660 = pneg %p101
        %p661 = pneg %p125
        %p662 = pneg %p122
        %p663 = pneg %p146
        %p664 = pneg %p143
        %p665 = pneg %p167
        %p666 = pneg %p164
        %p667 = pneg %p188
        %p668 = pneg %p185
        %p669 = pneg %p209
        %p670 = pneg %p206
        %p671 = pneg %p230
        %p672 = pneg %p227
        %p673 = pneg %p251
        %p674 = pneg %p248
        %p675 = pneg %p272
        %p676 = pneg %p269
        %p677 = pneg %p293
        %p678 = pneg %p290
        %p679 = pneg %p314
        %p680 = pneg %p311
        %p681 = pneg %p335
        %p682 = pneg %p332
        %p683 = pneg %p356
        %p684 = pneg %p353
        %p685 = pneg %p377
        %p686 = pneg %p374
        %p687 = pneg %p398
        %p688 = pneg %p395
        %p689 = pneg %p419
        %p690 = pneg %p416
        %p691 = pneg %p445
        %p692 = pneg %p442
        %p693 = scmp.lt.s32.totalorder %s36, 1
        %s694 = scalar_select %p693, %s36, 1
        %s695 = smul.addr %s694, 8
        %s696 = scalar_lea.vmem %s18, %s695
        %p697 = scmp.lt.s32.totalorder %s36, 1
        %s698 = scalar_select %p697, %s36, 1
        %s699 = smul.addr %s698, 8
        %s700 = scalar_lea.vmem %s0, %s699
        %p701 = scmp.lt.s32.totalorder %s36, 1
        %s702 = scalar_select %p701, %s36, 1
        %s703 = smul.addr %s702, 8
        %s704 = scalar_lea.vmem %s18, %s703
        %v705 = vld [vmem:[%s700] sm:$0xff]
        %v706 = vld [vmem:[%s614] sm:$0x1]
        %v707 = vld [vmem:[%s2] sm:$0x1]
        %v708 = vld [vmem:[#allocation4] sm:$0x1]
        %vm709 = vcmask 261120
        %v710 = vsel %vm709, %v705, 0.0
        %711 = vadd.xlane.f32.xlu0 %v710
        %v712 = vpop.xlane.xlu0 %711
        %v713 = vrcp.pop 32.0
        %v714 = vmul.f32 %v712, %v713
        %v715 = vsub.f32 %v705, %v714
        %v716 = vmul.f32 %v715, %v715
        %v717 = vsel %vm709, %v716, 0.0
        %718 = vadd.xlane.f32.xlu0 %v717
        %v719 = vpop.xlane.xlu0 %718
        %v720 = vmul.f32 %v719, %v713
        %v721 = vadd.f32 %v720, 1e-12
        %v722 = vrsqrt.pop %v721
        %v723 = vmul.f32 %v715, %v722
        %v725 = vlaneseq
        %v726 = vshrl.u32 %v725, 7
        %v727 = vsub.s32 0, %v726
        %v728 = vrot.slane %v707, %v727
        %v730 = vmul.f32 %v723, %v728
        %v732 = vlaneseq
        %v733 = vshrl.u32 %v732, 7
        %v734 = vsub.s32 0, %v733
        %v735 = vrot.slane %v708, %v734
        %v737 = vadd.f32 %v730, %v735
        %v738 = vld [vmem:[%s4] sm:$0xff]
        %v739 = vld [vmem:[%s4 + $0x8] sm:$0xff]
        %v740 = vld [vmem:[%s4 + $0x10] sm:$0xff]
        %v741 = vld [vmem:[%s4 + $0x18] sm:$0xff]
        %v742 = vld [vmem:[#allocation6] sm:$0x1]
        %v744 = vlaneseq
        %v745 = vshrl.u32 %v744, 7
        %v746 = vsub.s32 0, %v745
        %v747 = vrot.slane %v742, %v746
        %v750 = vsel %vm709, %v737, 0
        %752 = vmatprep.subr.mxu0 0.0
        %753 = vmatpush1.msra.mxu0 %v738
        %754 = vmatprep.subr.mxu0 0.0
        %755 = vmatpush1.msra.mxu0 %v739
        %756 = vmatprep.subr.mxu0 0.0
        %757 = vmatpush1.msra.mxu0 %v740
        %758 = vmatprep.subr.mxu0 0.0
        %759 = vmatpush1.msra.mxu0 %v741
        %760 = vmatprep.subr.mxu0 0.0
        %761 = vmatpush1.msra.mxu0 0.0
        %762 = vmatprep.subr.mxu0 0.0
        %763 = vmatpush1.msra.mxu0 0.0
        %764 = vmatprep.subr.mxu0 0.0
        %765 = vmatpush1.msra.mxu0 0.0
        %766 = vmatprep.subr.mxu0 0.0
        %767 = vmatpush1.msra.mxu0 0.0
        %768 = vmatprep.subr.mxu0 0.0
        %769 = vmatpush1.msra.mxu0 0.0
        %770 = vmatprep.subr.mxu0 0.0
        %771 = vmatpush1.msra.mxu0 0.0
        %772 = vmatprep.subr.mxu0 0.0
        %773 = vmatpush1.msra.mxu0 0.0
        %774 = vmatprep.subr.mxu0 0.0
        %775 = vmatpush1.msra.mxu0 0.0
        %776 = vmatprep.subr.mxu0 0.0
        %777 = vmatpush1.msra.mxu0 0.0
        %778 = vmatprep.subr.mxu0 0.0
        %779 = vmatpush1.msra.mxu0 0.0
        %780 = vmatprep.subr.mxu0 0.0
        %781 = vmatpush1.msra.mxu0 0.0
        %782 = vmatprep.subr.mxu0 0.0
        %783 = vmatpush1.msra.mxu0 0.0
        %784 = vmatprep.subr.mxu0 0.0
        %785 = vmatpush1.msra.mxu0 0.0
        %786 = vmatprep.subr.mxu0 0.0
        %787 = vmatpush1.msra.mxu0 0.0
        %788 = vmatprep.subr.mxu0 0.0
        %789 = vmatpush1.msra.mxu0 0.0
        %790 = vmatprep.subr.mxu0 0.0
        %791 = vmatpush1.msra.mxu0 0.0
        %792 = vmatprep.subr.mxu0 0.0
        %793 = vmatpush1.msra.mxu0 0.0
        %794 = vmatprep.subr.mxu0 0.0
        %795 = vmatpush1.msra.mxu0 0.0
        %796 = vmatprep.subr.mxu0 0.0
        %797 = vmatpush1.msra.mxu0 0.0
        %798 = vmatprep.subr.mxu0 0.0
        %799 = vmatpush1.msra.mxu0 0.0
        %800 = vmatprep.subr.mxu0 0.0
        %801 = vmatpush1.msra.mxu0 0.0
        %802 = vmatprep.subr.mxu0 0.0
        %803 = vmatpush1.msra.mxu0 0.0
        %804 = vmatprep.subr.mxu0 0.0
        %805 = vmatpush1.msra.mxu0 0.0
        %806 = vmatprep.subr.mxu0 0.0
        %807 = vmatpush1.msra.mxu0 0.0
        %808 = vmatprep.subr.mxu0 0.0
        %809 = vmatpush1.msra.mxu0 0.0
        %810 = vmatprep.subr.mxu0 0.0
        %811 = vmatpush1.msra.mxu0 0.0
        %812 = vmatprep.subr.mxu0 0.0
        %813 = vmatpush1.msra.mxu0 0.0
        %814 = vmatprep.subr.mxu0 0.0
        %815 = vmatpush1.msra.mxu0 0.0
        %816 = vmatprep.mubr.f32.mxu0 0.0
        %817 = vmatmul.mubr.f32.gmra.mrb[0].mxu0 %v750
        %v818 = vpop.f32.mrb[0].mxu0
        %v819 = vadd.f32 %v747, %v818
        %v820 = vpop.f32.mrb[0].mxu0
        %821 = vdwg.mxu0
        %v822 = vld [vmem:[%s6] sm:$0xff]
        %v823 = vld [vmem:[%s6 + $0x8] sm:$0xff]
        %v824 = vld [vmem:[%s6 + $0x10] sm:$0xff]
        %v825 = vld [vmem:[%s6 + $0x18] sm:$0xff]
        %827 = vrot.lane.b32.xlu0 %v819, 96
        %v828 = vpop.permute.xlu0 %827
        %vm829 = vcmask 130048
        %v830 = vsel %vm829, %v819, 0
        %v832 = vsel %vm829, %v828, 0
        %834 = vmatprep.subr.mxu0 0.0
        %835 = vmatpush1.xpose.msra.mxu0 %v832
        %836 = vmatprep.subr.mxu0 0.0
        %837 = vmatpush1.xpose.msra.mxu0 0.0
        %838 = vmatprep.subr.mxu0 0.0
        %839 = vmatpush1.xpose.msra.mxu0 0.0
        %840 = vmatprep.subr.mxu0 0.0
        %841 = vmatpush1.xpose.msra.mxu0 0.0
        %842 = vmatprep.subr.mxu0 0.0
        %843 = vmatpush1.xpose.msra.mxu0 0.0
        %844 = vmatprep.subr.mxu0 0.0
        %845 = vmatpush1.xpose.msra.mxu0 0.0
        %846 = vmatprep.subr.mxu0 0.0
        %847 = vmatpush1.xpose.msra.mxu0 0.0
        %848 = vmatprep.subr.mxu0 0.0
        %849 = vmatpush1.xpose.msra.mxu0 0.0
        %850 = vmatprep.subr.mxu0 0.0
        %851 = vmatpush1.xpose.msra.mxu0 0.0
        %852 = vmatprep.subr.mxu0 0.0
        %853 = vmatpush1.xpose.msra.mxu0 0.0
        %854 = vmatprep.subr.mxu0 0.0
        %855 = vmatpush1.xpose.msra.mxu0 0.0
        %856 = vmatprep.subr.mxu0 0.0
        %857 = vmatpush1.xpose.msra.mxu0 0.0
        %858 = vmatprep.subr.mxu0 0.0
        %859 = vmatpush1.xpose.msra.mxu0 0.0
        %860 = vmatprep.subr.mxu0 0.0
        %861 = vmatpush1.xpose.msra.mxu0 0.0
        %862 = vmatprep.subr.mxu0 0.0
        %863 = vmatpush1.xpose.msra.mxu0 0.0
        %864 = vmatprep.subr.mxu0 0.0
        %865 = vmatpush1.xpose.msra.mxu0 0.0
        %866 = vmatprep.subr.mxu0 0.0
        %867 = vmatpush1.xpose.msra.mxu0 0.0
        %868 = vmatprep.subr.mxu0 0.0
        %869 = vmatpush1.xpose.msra.mxu0 0.0
        %870 = vmatprep.subr.mxu0 0.0
        %871 = vmatpush1.xpose.msra.mxu0 0.0
        %872 = vmatprep.subr.mxu0 0.0
        %873 = vmatpush1.xpose.msra.mxu0 0.0
        %874 = vmatprep.subr.mxu0 0.0
        %875 = vmatpush1.xpose.msra.mxu0 0.0
        %876 = vmatprep.subr.mxu0 0.0
        %877 = vmatpush1.xpose.msra.mxu0 0.0
        %878 = vmatprep.subr.mxu0 0.0
        %879 = vmatpush1.xpose.msra.mxu0 0.0
        %880 = vmatprep.subr.mxu0 0.0
        %881 = vmatpush1.xpose.msra.mxu0 0.0
        %882 = vmatprep.subr.mxu0 0.0
        %883 = vmatpush1.xpose.msra.mxu0 0.0
        %884 = vmatprep.subr.mxu0 0.0
        %885 = vmatpush1.xpose.msra.mxu0 0.0
        %886 = vmatprep.subr.mxu0 0.0
        %887 = vmatpush1.xpose.msra.mxu0 0.0
        %888 = vmatprep.subr.mxu0 0.0
        %889 = vmatpush1.xpose.msra.mxu0 0.0
        %890 = vmatprep.subr.mxu0 0.0
        %891 = vmatpush1.xpose.msra.mxu0 0.0
        %892 = vmatprep.subr.mxu0 0.0
        %893 = vmatpush1.xpose.msra.mxu0 0.0
        %894 = vmatprep.subr.mxu0 0.0
        %895 = vmatpush1.xpose.msra.mxu0 0.0
        %896 = vmatprep.subr.mxu0 0.0
        %897 = vmatpush1.xpose.msra.mxu0 0.0
        %898 = vmatprep.mubr.f32.mxu0 0.0
        %899 = vmatmul.mubr.f32.gmra.mrb[0].mxu0 %v830
        %v900 = vpop.f32.mrb[0].mxu0
        %v901 = vadd.f32 0.0, %v900
        %v902 = vpop.f32.mrb[0].mxu0
        %903 = vdwg.mxu0
        %v904 = vmul.f32 %v901, 0.25
        %v906 = vlaneseq
        %v907 = vshrl.u32 %v906, 7
        %v908 = vsub.s32 0, %v907
        %v909 = vrot.slane %v706, %v908
        %v911 = vadd.f32 %v904, %v909
        %vm912 = vcmask 64512
        %v913 = vsel %vm912, %v911, -inf
        %914 = vmax.xlane.f32.xlu0 %v913
        %v915 = vpop.xlane.xlu0 %914
        %v916 = vsub.f32 %v911, %v915
        %v917 = vmul.f32 %v916, 1.442695
        %v918 = vpow.pop %v917
        %v919 = vsel %vm912, %v918, 0.0
        %920 = vadd.xlane.f32.xlu0 %v919
        %v921 = vpop.xlane.xlu0 %920
        %v922 = vrcp.pop %v921
        %v923 = vmul.f32 %v918, %v922
        %924 = vrot.lane.b32.xlu0 %v819, 64
        %v925 = vpop.permute.xlu0 %924
        %v928 = vsel %vm912, %v923, 0
        %930 = vmatprep.subr.mxu0 0.0
        %931 = vmatpush1.msra.mxu0 %v925
        %932 = vmatprep.subr.mxu0 0.0
        %933 = vmatpush1.msra.mxu0 0.0
        %934 = vmatprep.subr.mxu0 0.0
        %935 = vmatpush1.msra.mxu0 0.0
        %936 = vmatprep.subr.mxu0 0.0
        %937 = vmatpush1.msra.mxu0 0.0
        %938 = vmatprep.subr.mxu0 0.0
        %939 = vmatpush1.msra.mxu0 0.0
        %940 = vmatprep.subr.mxu0 0.0
        %941 = vmatpush1.msra.mxu0 0.0
        %942 = vmatprep.subr.mxu0 0.0
        %943 = vmatpush1.msra.mxu0 0.0
        %944 = vmatprep.subr.mxu0 0.0
        %945 = vmatpush1.msra.mxu0 0.0
        %946 = vmatprep.subr.mxu0 0.0
        %947 = vmatpush1.msra.mxu0 0.0
        %948 = vmatprep.subr.mxu0 0.0
        %949 = vmatpush1.msra.mxu0 0.0
        %950 = vmatprep.subr.mxu0 0.0
        %951 = vmatpush1.msra.mxu0 0.0
        %952 = vmatprep.subr.mxu0 0.0
        %953 = vmatpush1.msra.mxu0 0.0
        %954 = vmatprep.subr.mxu0 0.0
        %955 = vmatpush1.msra.mxu0 0.0
        %956 = vmatprep.subr.mxu0 0.0
        %957 = vmatpush1.msra.mxu0 0.0
        %958 = vmatprep.subr.mxu0 0.0
        %959 = vmatpush1.msra.mxu0 0.0
        %960 = vmatprep.subr.mxu0 0.0
        %961 = vmatpush1.msra.mxu0 0.0
        %962 = vmatprep.subr.mxu0 0.0
        %963 = vmatpush1.msra.mxu0 0.0
        %964 = vmatprep.subr.mxu0 0.0
        %965 = vmatpush1.msra.mxu0 0.0
        %966 = vmatprep.subr.mxu0 0.0
        %967 = vmatpush1.msra.mxu0 0.0
        %968 = vmatprep.subr.mxu0 0.0
        %969 = vmatpush1.msra.mxu0 0.0
        %970 = vmatprep.subr.mxu0 0.0
        %971 = vmatpush1.msra.mxu0 0.0
        %972 = vmatprep.subr.mxu0 0.0
        %973 = vmatpush1.msra.mxu0 0.0
        %974 = vmatprep.subr.mxu0 0.0
        %975 = vmatpush1.msra.mxu0 0.0
        %976 = vmatprep.subr.mxu0 0.0
        %977 = vmatpush1.msra.mxu0 0.0
        %978 = vmatprep.subr.mxu0 0.0
        %979 = vmatpush1.msra.mxu0 0.0
        %980 = vmatprep.subr.mxu0 0.0
        %981 = vmatpush1.msra.mxu0 0.0
        %982 = vmatprep.subr.mxu0 0.0
        %983 = vmatpush1.msra.mxu0 0.0
        %984 = vmatprep.subr.mxu0 0.0
        %985 = vmatpush1.msra.mxu0 0.0
        %986 = vmatprep.subr.mxu0 0.0
        %987 = vmatpush1.msra.mxu0 0.0
        %988 = vmatprep.subr.mxu0 0.0
        %989 = vmatpush1.msra.mxu0 0.0
        %990 = vmatprep.subr.mxu0 0.0
        %991 = vmatpush1.msra.mxu0 0.0
        %992 = vmatprep.subr.mxu0 0.0
        %993 = vmatpush1.msra.mxu0 0.0
        %994 = vmatprep.mubr.f32.mxu0 0.0
        %995 = vmatmul.mubr.f32.gmra.mrb[0].mxu0 %v928
        %v996 = vpop.f32.mrb[0].mxu0
        %v997 = vadd.f32 0.0, %v996
        %v998 = vpop.f32.mrb[0].mxu0
        %999 = vdwg.mxu0
        %1000 = vrot.lane.b32.xlu0 %v819, 112
        %v1001 = vpop.permute.xlu0 %1000
        %1002 = vrot.lane.b32.xlu0 %v819, 80
        %v1003 = vpop.permute.xlu0 %1002
        %v1004 = vsel %vm829, %v1001, 0
        %v1006 = vsel %vm829, %v1003, 0
        %1008 = vmatprep.subr.mxu0 0.0
        %1009 = vmatpush1.xpose.msra.mxu0 %v1006
        %1010 = vmatprep.subr.mxu0 0.0
        %1011 = vmatpush1.xpose.msra.mxu0 0.0
        %1012 = vmatprep.subr.mxu0 0.0
        %1013 = vmatpush1.xpose.msra.mxu0 0.0
        %1014 = vmatprep.subr.mxu0 0.0
        %1015 = vmatpush1.xpose.msra.mxu0 0.0
        %1016 = vmatprep.subr.mxu0 0.0
        %1017 = vmatpush1.xpose.msra.mxu0 0.0
        %1018 = vmatprep.subr.mxu0 0.0
        %1019 = vmatpush1.xpose.msra.mxu0 0.0
        %1020 = vmatprep.subr.mxu0 0.0
        %1021 = vmatpush1.xpose.msra.mxu0 0.0
        %1022 = vmatprep.subr.mxu0 0.0
        %1023 = vmatpush1.xpose.msra.mxu0 0.0
        %1024 = vmatprep.subr.mxu0 0.0
        %1025 = vmatpush1.xpose.msra.mxu0 0.0
        %1026 = vmatprep.subr.mxu0 0.0
        %1027 = vmatpush1.xpose.msra.mxu0 0.0
        %1028 = vmatprep.subr.mxu0 0.0
        %1029 = vmatpush1.xpose.msra.mxu0 0.0
        %1030 = vmatprep.subr.mxu0 0.0
        %1031 = vmatpush1.xpose.msra.mxu0 0.0
        %1032 = vmatprep.subr.mxu0 0.0
        %1033 = vmatpush1.xpose.msra.mxu0 0.0
        %1034 = vmatprep.subr.mxu0 0.0
        %1035 = vmatpush1.xpose.msra.mxu0 0.0
        %1036 = vmatprep.subr.mxu0 0.0
        %1037 = vmatpush1.xpose.msra.mxu0 0.0
        %1038 = vmatprep.subr.mxu0 0.0
        %1039 = vmatpush1.xpose.msra.mxu0 0.0
        %1040 = vmatprep.subr.mxu0 0.0
        %1041 = vmatpush1.xpose.msra.mxu0 0.0
        %1042 = vmatprep.subr.mxu0 0.0
        %1043 = vmatpush1.xpose.msra.mxu0 0.0
        %1044 = vmatprep.subr.mxu0 0.0
        %1045 = vmatpush1.xpose.msra.mxu0 0.0
        %1046 = vmatprep.subr.mxu0 0.0
        %1047 = vmatpush1.xpose.msra.mxu0 0.0
        %1048 = vmatprep.subr.mxu0 0.0
        %1049 = vmatpush1.xpose.msra.mxu0 0.0
        %1050 = vmatprep.subr.mxu0 0.0
        %1051 = vmatpush1.xpose.msra.mxu0 0.0
        %1052 = vmatprep.subr.mxu0 0.0
        %1053 = vmatpush1.xpose.msra.mxu0 0.0
        %1054 = vmatprep.subr.mxu0 0.0
        %1055 = vmatpush1.xpose.msra.mxu0 0.0
        %1056 = vmatprep.subr.mxu0 0.0
        %1057 = vmatpush1.xpose.msra.mxu0 0.0
        %1058 = vmatprep.subr.mxu0 0.0
        %1059 = vmatpush1.xpose.msra.mxu0 0.0
        %1060 = vmatprep.subr.mxu0 0.0
        %1061 = vmatpush1.xpose.msra.mxu0 0.0
        %1062 = vmatprep.subr.mxu0 0.0
        %1063 = vmatpush1.xpose.msra.mxu0 0.0
        %1064 = vmatprep.subr.mxu0 0.0
        %1065 = vmatpush1.xpose.msra.mxu0 0.0
        %1066 = vmatprep.subr.mxu0 0.0
        %1067 = vmatpush1.xpose.msra.mxu0 0.0
        %1068 = vmatprep.subr.mxu0 0.0
        %1069 = vmatpush1.xpose.msra.mxu0 0.0
        %1070 = vmatprep.subr.mxu0 0.0
        %1071 = vmatpush1.xpose.msra.mxu0 0.0
        %1072 = vmatprep.mubr.f32.mxu0 0.0
        %1073 = vmatmul.mubr.f32.gmra.mrb[0].mxu0 %v1004
        %v1074 = vpop.f32.mrb[0].mxu0
        %v1075 = vadd.f32 0.0, %v1074
        %v1076 = vpop.f32.mrb[0].mxu0
        %1077 = vdwg.mxu0
        %v1078 = vmul.f32 %v1075, 0.25
        %v1079 = vadd.f32 %v1078, %v909
        %v1080 = vsel %vm912, %v1079, -inf
        %1081 = vmax.xlane.f32.xlu0 %v1080
        %v1082 = vpop.xlane.xlu0 %1081
        %v1083 = vsub.f32 %v1079, %v1082
        %v1084 = vmul.f32 %v1083, 1.442695
        %v1085 = vpow.pop %v1084
        %v1086 = vsel %vm912, %v1085, 0.0
        %1087 = vadd.xlane.f32.xlu0 %v1086
        %v1088 = vpop.xlane.xlu0 %1087
        %v1089 = vrcp.pop %v1088
        %v1090 = vmul.f32 %v1085, %v1089
        %1091 = vrot.lane.b32.xlu0 %v819, 48
        %v1092 = vpop.permute.xlu0 %1091
        %v1095 = vsel %vm912, %v1090, 0
        %1097 = vmatprep.subr.mxu0 0.0
        %1098 = vmatpush1.msra.mxu0 %v1092
        %1099 = vmatprep.subr.mxu0 0.0
        %1100 = vmatpush1.msra.mxu0 0.0
        %1101 = vmatprep.subr.mxu0 0.0
        %1102 = vmatpush1.msra.mxu0 0.0
        %1103 = vmatprep.subr.mxu0 0.0
        %1104 = vmatpush1.msra.mxu0 0.0
        %1105 = vmatprep.subr.mxu0 0.0
        %1106 = vmatpush1.msra.mxu0 0.0
        %1107 = vmatprep.subr.mxu0 0.0
        %1108 = vmatpush1.msra.mxu0 0.0
        %1109 = vmatprep.subr.mxu0 0.0
        %1110 = vmatpush1.msra.mxu0 0.0
        %1111 = vmatprep.subr.mxu0 0.0
        %1112 = vmatpush1.msra.mxu0 0.0
        %1113 = vmatprep.subr.mxu0 0.0
        %1114 = vmatpush1.msra.mxu0 0.0
        %1115 = vmatprep.subr.mxu0 0.0
        %1116 = vmatpush1.msra.mxu0 0.0
        %1117 = vmatprep.subr.mxu0 0.0
        %1118 = vmatpush1.msra.mxu0 0.0
        %1119 = vmatprep.subr.mxu0 0.0
        %1120 = vmatpush1.msra.mxu0 0.0
        %1121 = vmatprep.subr.mxu0 0.0
        %1122 = vmatpush1.msra.mxu0 0.0
        %1123 = vmatprep.subr.mxu0 0.0
        %1124 = vmatpush1.msra.mxu0 0.0
        %1125 = vmatprep.subr.mxu0 0.0
        %1126 = vmatpush1.msra.mxu0 0.0
        %1127 = vmatprep.subr.mxu0 0.0
        %1128 = vmatpush1.msra.mxu0 0.0
        %1129 = vmatprep.subr.mxu0 0.0
        %1130 = vmatpush1.msra.mxu0 0.0
        %1131 = vmatprep.subr.mxu0 0.0
        %1132 = vmatpush1.msra.mxu0 0.0
        %1133 = vmatprep.subr.mxu0 0.0
        %1134 = vmatpush1.msra.mxu0 0.0
        %1135 = vmatprep.subr.mxu0 0.0
        %1136 = vmatpush1.msra.mxu0 0.0
        %1137 = vmatprep.subr.mxu0 0.0
        %1138 = vmatpush1.msra.mxu0 0.0
        %1139 = vmatprep.subr.mxu0 0.0
        %1140 = vmatpush1.msra.mxu0 0.0
        %1141 = vmatprep.subr.mxu0 0.0
        %1142 = vmatpush1.msra.mxu0 0.0
        %1143 = vmatprep.subr.mxu0 0.0
        %1144 = vmatpush1.msra.mxu0 0.0
        %1145 = vmatprep.subr.mxu0 0.0
        %1146 = vmatpush1.msra.mxu0 0.0
        %1147 = vmatprep.subr.mxu0 0.0
        %1148 = vmatpush1.msra.mxu0 0.0
        %1149 = vmatprep.subr.mxu0 0.0
        %1150 = vmatpush1.msra.mxu0 0.0
        %1151 = vmatprep.subr.mxu0 0.0
        %1152 = vmatpush1.msra.mxu0 0.0
        %1153 = vmatprep.subr.mxu0 0.0
        %1154 = vmatpush1.msra.mxu0 0.0
        %1155 = vmatprep.subr.mxu0 0.0
        %1156 = vmatpush1.msra.mxu0 0.0
        %1157 = vmatprep.subr.mxu0 0.0
        %1158 = vmatpush1.msra.mxu0 0.0
        %1159 = vmatprep.subr.mxu0 0.0
        %1160 = vmatpush1.msra.mxu0 0.0
        %1161 = vmatprep.mubr.f32.mxu0 0.0
        %1162 = vmatmul.mubr.f32.gmra.mrb[0].mxu0 %v1095
        %v1163 = vpop.f32.mrb[0].mxu0
        %v1164 = vadd.f32 0.0, %v1163
        %v1165 = vpop.f32.mrb[0].mxu0
        %1166 = vdwg.mxu0
        %v1168 = vsel %vm829, %v1164, 0
        %1170 = vmatprep.subr.mxu0 0.0
        %1171 = vmatpush1.msra.mxu0 %v824
        %1172 = vmatprep.subr.mxu0 0.0
        %1173 = vmatpush1.msra.mxu0 %v825
        %1174 = vmatprep.subr.mxu0 0.0
        %1175 = vmatpush1.msra.mxu0 0.0
        %1176 = vmatprep.subr.mxu0 0.0
        %1177 = vmatpush1.msra.mxu0 0.0
        %1178 = vmatprep.subr.mxu0 0.0
        %1179 = vmatpush1.msra.mxu0 0.0
        %1180 = vmatprep.subr.mxu0 0.0
        %1181 = vmatpush1.msra.mxu0 0.0
        %1182 = vmatprep.subr.mxu0 0.0
        %1183 = vmatpush1.msra.mxu0 0.0
        %1184 = vmatprep.subr.mxu0 0.0
        %1185 = vmatpush1.msra.mxu0 0.0
        %1186 = vmatprep.subr.mxu0 0.0
        %1187 = vmatpush1.msra.mxu0 0.0
        %1188 = vmatprep.subr.mxu0 0.0
        %1189 = vmatpush1.msra.mxu0 0.0
        %1190 = vmatprep.subr.mxu0 0.0
        %1191 = vmatpush1.msra.mxu0 0.0
        %1192 = vmatprep.subr.mxu0 0.0
        %1193 = vmatpush1.msra.mxu0 0.0
        %1194 = vmatprep.subr.mxu0 0.0
        %1195 = vmatpush1.msra.mxu0 0.0
        %1196 = vmatprep.subr.mxu0 0.0
        %1197 = vmatpush1.msra.mxu0 0.0
        %1198 = vmatprep.subr.mxu0 0.0
        %1199 = vmatpush1.msra.mxu0 0.0
        %1200 = vmatprep.subr.mxu0 0.0
        %1201 = vmatpush1.msra.mxu0 0.0
        %1202 = vmatprep.subr.mxu0 0.0
        %1203 = vmatpush1.msra.mxu0 0.0
        %1204 = vmatprep.subr.mxu0 0.0
        %1205 = vmatpush1.msra.mxu0 0.0
        %1206 = vmatprep.subr.mxu0 0.0
        %1207 = vmatpush1.msra.mxu0 0.0
        %1208 = vmatprep.subr.mxu0 0.0
        %1209 = vmatpush1.msra.mxu0 0.0
        %1210 = vmatprep.subr.mxu0 0.0
        %1211 = vmatpush1.msra.mxu0 0.0
        %1212 = vmatprep.subr.mxu0 0.0
        %1213 = vmatpush1.msra.mxu0 0.0
        %1214 = vmatprep.subr.mxu0 0.0
        %1215 = vmatpush1.msra.mxu0 0.0
        %1216 = vmatprep.subr.mxu0 0.0
        %1217 = vmatpush1.msra.mxu0 0.0
        %1218 = vmatprep.subr.mxu0 0.0
        %1219 = vmatpush1.msra.mxu0 0.0
        %1220 = vmatprep.subr.mxu0 0.0
        %1221 = vmatpush1.msra.mxu0 0.0
        %1222 = vmatprep.subr.mxu0 0.0
        %1223 = vmatpush1.msra.mxu0 0.0
        %1224 = vmatprep.subr.mxu0 0.0
        %1225 = vmatpush1.msra.mxu0 0.0
        %1226 = vmatprep.subr.mxu0 0.0
        %1227 = vmatpush1.msra.mxu0 0.0
        %1228 = vmatprep.subr.mxu0 0.0
        %1229 = vmatpush1.msra.mxu0 0.0
        %1230 = vmatprep.subr.mxu0 0.0
        %1231 = vmatpush1.msra.mxu0 0.0
        %1232 = vmatprep.subr.mxu0 0.0
        %1233 = vmatpush1.msra.mxu0 0.0
        %1234 = vmatprep.mubr.f32.mxu0 0.0
        %1235 = vmatmul.mubr.f32.gmra.mrb[0].mxu0 %v1168
        %v1236 = vpop.f32.mrb[0].mxu0
        %v1237 = vadd.f32 0.0, %v1236
        %v1238 = vpop.f32.mrb[0].mxu0
        %1239 = vdwg.mxu0
        %v1241 = vsel %vm829, %v997, 0
        %1243 = vmatprep.subr.mxu0 0.0
        %1244 = vmatpush1.msra.mxu0 %v822
        %1245 = vmatprep.subr.mxu0 0.0
        %1246 = vmatpush1.msra.mxu0 %v823
        %1247 = vmatprep.subr.mxu0 0.0
        %1248 = vmatpush1.msra.mxu0 0.0
        %1249 = vmatprep.subr.mxu0 0.0
        %1250 = vmatpush1.msra.mxu0 0.0
        %1251 = vmatprep.subr.mxu0 0.0
        %1252 = vmatpush1.msra.mxu0 0.0
        %1253 = vmatprep.subr.mxu0 0.0
        %1254 = vmatpush1.msra.mxu0 0.0
        %1255 = vmatprep.subr.mxu0 0.0
        %1256 = vmatpush1.msra.mxu0 0.0
        %1257 = vmatprep.subr.mxu0 0.0
        %1258 = vmatpush1.msra.mxu0 0.0
        %1259 = vmatprep.subr.mxu0 0.0
        %1260 = vmatpush1.msra.mxu0 0.0
        %1261 = vmatprep.subr.mxu0 0.0
        %1262 = vmatpush1.msra.mxu0 0.0
        %1263 = vmatprep.subr.mxu0 0.0
        %1264 = vmatpush1.msra.mxu0 0.0
        %1265 = vmatprep.subr.mxu0 0.0
        %1266 = vmatpush1.msra.mxu0 0.0
        %1267 = vmatprep.subr.mxu0 0.0
        %1268 = vmatpush1.msra.mxu0 0.0
        %1269 = vmatprep.subr.mxu0 0.0
        %1270 = vmatpush1.msra.mxu0 0.0
        %1271 = vmatprep.subr.mxu0 0.0
        %1272 = vmatpush1.msra.mxu0 0.0
        %1273 = vmatprep.subr.mxu0 0.0
        %1274 = vmatpush1.msra.mxu0 0.0
        %1275 = vmatprep.subr.mxu0 0.0
        %1276 = vmatpush1.msra.mxu0 0.0
        %1277 = vmatprep.subr.mxu0 0.0
        %1278 = vmatpush1.msra.mxu0 0.0
        %1279 = vmatprep.subr.mxu0 0.0
        %1280 = vmatpush1.msra.mxu0 0.0
        %1281 = vmatprep.subr.mxu0 0.0
        %1282 = vmatpush1.msra.mxu0 0.0
        %1283 = vmatprep.subr.mxu0 0.0
        %1284 = vmatpush1.msra.mxu0 0.0
        %1285 = vmatprep.subr.mxu0 0.0
        %1286 = vmatpush1.msra.mxu0 0.0
        %1287 = vmatprep.subr.mxu0 0.0
        %1288 = vmatpush1.msra.mxu0 0.0
        %1289 = vmatprep.subr.mxu0 0.0
        %1290 = vmatpush1.msra.mxu0 0.0
        %1291 = vmatprep.subr.mxu0 0.0
        %1292 = vmatpush1.msra.mxu0 0.0
        %1293 = vmatprep.subr.mxu0 0.0
        %1294 = vmatpush1.msra.mxu0 0.0
        %1295 = vmatprep.subr.mxu0 0.0
        %1296 = vmatpush1.msra.mxu0 0.0
        %1297 = vmatprep.subr.mxu0 0.0
        %1298 = vmatpush1.msra.mxu0 0.0
        %1299 = vmatprep.subr.mxu0 0.0
        %1300 = vmatpush1.msra.mxu0 0.0
        %1301 = vmatprep.subr.mxu0 0.0
        %1302 = vmatpush1.msra.mxu0 0.0
        %1303 = vmatprep.subr.mxu0 0.0
        %1304 = vmatpush1.msra.mxu0 0.0
        %1305 = vmatprep.subr.mxu0 0.0
        %1306 = vmatpush1.msra.mxu0 0.0
        %1307 = vmatprep.mubr.f32.mxu0 0.0
        %1308 = vmatmul.mubr.f32.gmra.mrb[0].mxu0 %v1241
        %v1309 = vpop.f32.mrb[0].mxu0
        %v1310 = vadd.f32 %v1237, %v1309
        %v1311 = vpop.f32.mrb[0].mxu0
        %1312 = vdwg.mxu0
        %v1313 = vld [vmem:[#allocation7] sm:$0x1]
        %v1315 = vlaneseq
        %v1316 = vshrl.u32 %v1315, 7
        %v1317 = vsub.s32 0, %v1316
        %v1318 = vrot.slane %v1313, %v1317
        %v1320 = vadd.f32 %v1310, %v1318
        %v1321 = vadd.f32 %v1320, %v737
        %v1322 = vld [vmem:[#allocation9] sm:$0x1]
        %v1323 = vld [vmem:[#allocation10] sm:$0x1]
        %v1324 = vsel %vm709, %v1321, 0.0
        %1325 = vadd.xlane.f32.xlu0 %v1324
        %v1326 = vpop.xlane.xlu0 %1325
        %v1327 = vmul.f32 %v1326, %v713
        %v1328 = vsub.f32 %v1321, %v1327
        %v1329 = vmul.f32 %v1328, %v1328
        %v1330 = vsel %vm709, %v1329, 0.0
        %1331 = vadd.xlane.f32.xlu0 %v1330
        %v1332 = vpop.xlane.xlu0 %1331
        %v1333 = vmul.f32 %v1332, %v713
        %v1334 = vadd.f32 %v1333, 1e-12
        %v1335 = vrsqrt.pop %v1334
        %v1336 = vmul.f32 %v1328, %v1335
        %v1338 = vlaneseq
        %v1339 = vshrl.u32 %v1338, 7
        %v1340 = vsub.s32 0, %v1339
        %v1341 = vrot.slane %v1322, %v1340
        %v1343 = vmul.f32 %v1336, %v1341
        %v1345 = vlaneseq
        %v1346 = vshrl.u32 %v1345, 7
        %v1347 = vsub.s32 0, %v1346
        %v1348 = vrot.slane %v1323, %v1347
        %v1350 = vadd.f32 %v1343, %v1348
        %v1351 = vld [vmem:[%s10] sm:$0xff]
        %v1352 = vld [vmem:[%s10 + $0x8] sm:$0xff]
        %v1353 = vld [vmem:[%s10 + $0x10] sm:$0xff]
        %v1354 = vld [vmem:[%s10 + $0x18] sm:$0xff]
        %v1355 = vld [vmem:[#allocation12] sm:$0x1]
        %v1357 = vlaneseq
        %v1358 = vshrl.u32 %v1357, 7
        %v1359 = vsub.s32 0, %v1358
        %v1360 = vrot.slane %v1355, %v1359
        %v1363 = vsel %vm709, %v1350, 0
        %1365 = vmatprep.subr.mxu0 0.0
        %1366 = vmatpush1.msra.mxu0 %v1351
        %1367 = vmatprep.subr.mxu0 0.0
        %1368 = vmatpush1.msra.mxu0 %v1352
        %1369 = vmatprep.subr.mxu0 0.0
        %1370 = vmatpush1.msra.mxu0 %v1353
        %1371 = vmatprep.subr.mxu0 0.0
        %1372 = vmatpush1.msra.mxu0 %v1354
        %1373 = vmatprep.subr.mxu0 0.0
        %1374 = vmatpush1.msra.mxu0 0.0
        %1375 = vmatprep.subr.mxu0 0.0
        %1376 = vmatpush1.msra.mxu0 0.0
        %1377 = vmatprep.subr.mxu0 0.0
        %1378 = vmatpush1.msra.mxu0 0.0
        %1379 = vmatprep.subr.mxu0 0.0
        %1380 = vmatpush1.msra.mxu0 0.0
        %1381 = vmatprep.subr.mxu0 0.0
        %1382 = vmatpush1.msra.mxu0 0.0
        %1383 = vmatprep.subr.mxu0 0.0
        %1384 = vmatpush1.msra.mxu0 0.0
        %1385 = vmatprep.subr.mxu0 0.0
        %1386 = vmatpush1.msra.mxu0 0.0
        %1387 = vmatprep.subr.mxu0 0.0
        %1388 = vmatpush1.msra.mxu0 0.0
        %1389 = vmatprep.subr.mxu0 0.0
        %1390 = vmatpush1.msra.mxu0 0.0
        %1391 = vmatprep.subr.mxu0 0.0
        %1392 = vmatpush1.msra.mxu0 0.0
        %1393 = vmatprep.subr.mxu0 0.0
        %1394 = vmatpush1.msra.mxu0 0.0
        %1395 = vmatprep.subr.mxu0 0.0
        %1396 = vmatpush1.msra.mxu0 0.0
        %1397 = vmatprep.subr.mxu0 0.0
        %1398 = vmatpush1.msra.mxu0 0.0
        %1399 = vmatprep.subr.mxu0 0.0
        %1400 = vmatpush1.msra.mxu0 0.0
        %1401 = vmatprep.subr.mxu0 0.0
        %1402 = vmatpush1.msra.mxu0 0.0
        %1403 = vmatprep.subr.mxu0 0.0
        %1404 = vmatpush1.msra.mxu0 0.0
        %1405 = vmatprep.subr.mxu0 0.0
        %1406 = vmatpush1.msra.mxu0 0.0
        %1407 = vmatprep.subr.mxu0 0.0
        %1408 = vmatpush1.msra.mxu0 0.0
        %1409 = vmatprep.subr.mxu0 0.0
        %1410 = vmatpush1.msra.mxu0 0.0
        %1411 = vmatprep.subr.mxu0 0.0
        %1412 = vmatpush1.msra.mxu0 0.0
        %1413 = vmatprep.subr.mxu0 0.0
        %1414 = vmatpush1.msra.mxu0 0.0
        %1415 = vmatprep.subr.mxu0 0.0
        %1416 = vmatpush1.msra.mxu0 0.0
        %1417 = vmatprep.subr.mxu0 0.0
        %1418 = vmatpush1.msra.mxu0 0.0
        %1419 = vmatprep.subr.mxu0 0.0
        %1420 = vmatpush1.msra.mxu0 0.0
        %1421 = vmatprep.subr.mxu0 0.0
        %1422 = vmatpush1.msra.mxu0 0.0
        %1423 = vmatprep.subr.mxu0 0.0
        %1424 = vmatpush1.msra.mxu0 0.0
        %1425 = vmatprep.subr.mxu0 0.0
        %1426 = vmatpush1.msra.mxu0 0.0
        %1427 = vmatprep.subr.mxu0 0.0
        %1428 = vmatpush1.msra.mxu0 0.0
        %1429 = vmatprep.mubr.f32.mxu0 0.0
        %1430 = vmatmul.mubr.f32.gmra.mrb[0].mxu0 %v1363
        %v1431 = vpop.f32.mrb[0].mxu0
        %v1432 = vadd.f32 %v1360, %v1431
        %v1433 = vpop.f32.mrb[0].mxu0
        %1434 = vdwg.mxu0
        %v1435 = vmul.f32 %v1432, %v1432
        %v1436 = vmul.f32 %v1432, %v1435
        %v1437 = vmul.f32 %v1436, 0.044715
        %v1438 = vadd.f32 %v1432, %v1437
        %v1439 = vmul.f32 %v1438, 0.7978846
        %v1440 = vtanh.pop %v1439
        %v1441 = vadd.f32 %v1440, 1.0
        %v1442 = vmul.f32 %v1441, 0.5
        %v1443 = vmul.f32 %v1432, %v1442
        %v1444 = vld [vmem:[%s12] sm:$0xff]
        %v1445 = vld [vmem:[%s12 + $0x8] sm:$0xff]
        %v1446 = vld [vmem:[%s12 + $0x10] sm:$0xff]
        %v1447 = vld [vmem:[%s12 + $0x18] sm:$0xff]
        %v1448 = vld [vmem:[%s12 + $0x20] sm:$0xff]
        %v1449 = vld [vmem:[%s12 + $0x28] sm:$0xff]
        %v1450 = vld [vmem:[%s12 + $0x30] sm:$0xff]
        %v1451 = vld [vmem:[%s12 + $0x38] sm:$0xff]
        %v1452 = vld [vmem:[#allocation13] sm:$0x1]
        %v1454 = vlaneseq
        %v1455 = vshrl.u32 %v1454, 7
        %v1456 = vsub.s32 0, %v1455
        %v1457 = vrot.slane %v1452, %v1456
        %vm1459 = vcmask 523264
        %v1461 = vsel %vm1459, %v1443, 0
        %1463 = vmatprep.subr.mxu0 0.0
        %1464 = vmatpush1.msra.mxu0 %v1444
        %1465 = vmatprep.subr.mxu0 0.0
        %1466 = vmatpush1.msra.mxu0 %v1445
        %1467 = vmatprep.subr.mxu0 0.0
        %1468 = vmatpush1.msra.mxu0 %v1446
        %1469 = vmatprep.subr.mxu0 0.0
        %1470 = vmatpush1.msra.mxu0 %v1447
        %1471 = vmatprep.subr.mxu0 0.0
        %1472 = vmatpush1.msra.mxu0 %v1448
        %1473 = vmatprep.subr.mxu0 0.0
        %1474 = vmatpush1.msra.mxu0 %v1449
        %1475 = vmatprep.subr.mxu0 0.0
        %1476 = vmatpush1.msra.mxu0 %v1450
        %1477 = vmatprep.subr.mxu0 0.0
        %1478 = vmatpush1.msra.mxu0 %v1451
        %1479 = vmatprep.subr.mxu0 0.0
        %1480 = vmatpush1.msra.mxu0 0.0
        %1481 = vmatprep.subr.mxu0 0.0
        %1482 = vmatpush1.msra.mxu0 0.0
        %1483 = vmatprep.subr.mxu0 0.0
        %1484 = vmatpush1.msra.mxu0 0.0
        %1485 = vmatprep.subr.mxu0 0.0
        %1486 = vmatpush1.msra.mxu0 0.0
        %1487 = vmatprep.subr.mxu0 0.0
        %1488 = vmatpush1.msra.mxu0 0.0
        %1489 = vmatprep.subr.mxu0 0.0
        %1490 = vmatpush1.msra.mxu0 0.0
        %1491 = vmatprep.subr.mxu0 0.0
        %1492 = vmatpush1.msra.mxu0 0.0
        %1493 = vmatprep.subr.mxu0 0.0
        %1494 = vmatpush1.msra.mxu0 0.0
        %1495 = vmatprep.subr.mxu0 0.0
        %1496 = vmatpush1.msra.mxu0 0.0
        %1497 = vmatprep.subr.mxu0 0.0
        %1498 = vmatpush1.msra.mxu0 0.0
        %1499 = vmatprep.subr.mxu0 0.0
        %1500 = vmatpush1.msra.mxu0 0.0
        %1501 = vmatprep.subr.mxu0 0.0
        %1502 = vmatpush1.msra.mxu0 0.0
        %1503 = vmatprep.subr.mxu0 0.0
        %1504 = vmatpush1.msra.mxu0 0.0
        %1505 = vmatprep.subr.mxu0 0.0
        %1506 = vmatpush1.msra.mxu0 0.0
        %1507 = vmatprep.subr.mxu0 0.0
        %1508 = vmatpush1.msra.mxu0 0.0
        %1509 = vmatprep.subr.mxu0 0.0
        %1510 = vmatpush1.msra.mxu0 0.0
        %1511 = vmatprep.subr.mxu0 0.0
        %1512 = vmatpush1.msra.mxu0 0.0
        %1513 = vmatprep.subr.mxu0 0.0
        %1514 = vmatpush1.msra.mxu0 0.0
        %1515 = vmatprep.subr.mxu0 0.0
        %1516 = vmatpush1.msra.mxu0 0.0
        %1517 = vmatprep.subr.mxu0 0.0
        %1518 = vmatpush1.msra.mxu0 0.0
        %1519 = vmatprep.subr.mxu0 0.0
        %1520 = vmatpush1.msra.mxu0 0.0
        %1521 = vmatprep.subr.mxu0 0.0
        %1522 = vmatpush1.msra.mxu0 0.0
        %1523 = vmatprep.subr.mxu0 0.0
        %1524 = vmatpush1.msra.mxu0 0.0
        %1525 = vmatprep.subr.mxu0 0.0
        %1526 = vmatpush1.msra.mxu0 0.0
        %1527 = vmatprep.mubr.f32.mxu0 0.0
        %1528 = vmatmul.mubr.f32.gmra.mrb[0].mxu0 %v1461
        %v1529 = vpop.f32.mrb[0].mxu0
        %v1530 = vadd.f32 %v1457, %v1529
        %v1531 = vpop.f32.mrb[0].mxu0
        %1532 = vdwg.mxu0
        %v1533 = vadd.f32 %v1530, %v1350
        %v1534 = vld [vmem:[%s14] sm:$0x1]
        %v1535 = vld [vmem:[%s15] sm:$0x1]
        %v1536 = vsel %vm709, %v1533, 0.0
        %1537 = vadd.xlane.f32.xlu0 %v1536
        %v1538 = vpop.xlane.xlu0 %1537
        %v1539 = vmul.f32 %v1538, %v713
        %v1540 = vsub.f32 %v1533, %v1539
        %v1541 = vmul.f32 %v1540, %v1540
        %v1542 = vsel %vm709, %v1541, 0.0
        %1543 = vadd.xlane.f32.xlu0 %v1542
        %v1544 = vpop.xlane.xlu0 %1543
        %v1545 = vmul.f32 %v1544, %v713
        %v1546 = vadd.f32 %v1545, 1e-12
        %v1547 = vrsqrt.pop %v1546
        %v1548 = vmul.f32 %v1540, %v1547
        %v1550 = vlaneseq
        %v1551 = vshrl.u32 %v1550, 7
        %v1552 = vsub.s32 0, %v1551
        %v1553 = vrot.slane %v1534, %v1552
        %v1555 = vmul.f32 %v1548, %v1553
        %v1557 = vlaneseq
        %v1558 = vshrl.u32 %v1557, 7
        %v1559 = vsub.s32 0, %v1558
        %v1560 = vrot.slane %v1535, %v1559
        %v1562 = vadd.f32 %v1555, %v1560
        %s1563 = scalar_lea.vmem %s4, 32
        %v1564 = vld [vmem:[%s1563] sm:$0xff]
        %v1565 = vld [vmem:[%s1563 + $0x8] sm:$0xff]
        %v1566 = vld [vmem:[%s1563 + $0x10] sm:$0xff]
        %v1567 = vld [vmem:[%s1563 + $0x18] sm:$0xff]
        %s1568 = scalar_lea.vmem [#allocation6], 1
        %v1569 = vld [vmem:[%s1568] sm:$0x1]
        %v1571 = vlaneseq
        %v1572 = vshrl.u32 %v1571, 7
        %v1573 = vsub.s32 0, %v1572
        %v1574 = vrot.slane %v1569, %v1573
        %v1577 = vsel %vm709, %v1562, 0
        %1579 = vmatprep.subr.mxu0 0.0
        %1580 = vmatpush1.msra.mxu0 %v1564
        %1581 = vmatprep.subr.mxu0 0.0
        %1582 = vmatpush1.msra.mxu0 %v1565
        %1583 = vmatprep.subr.mxu0 0.0
        %1584 = vmatpush1.msra.mxu0 %v1566
        %1585 = vmatprep.subr.mxu0 0.0
        %1586 = vmatpush1.msra.mxu0 %v1567
        %1587 = vmatprep.subr.mxu0 0.0
        %1588 = vmatpush1.msra.mxu0 0.0
        %1589 = vmatprep.subr.mxu0 0.0
        %1590 = vmatpush1.msra.mxu0 0.0
        %1591 = vmatprep.subr.mxu0 0.0
        %1592 = vmatpush1.msra.mxu0 0.0
        %1593 = vmatprep.subr.mxu0 0.0
        %1594 = vmatpush1.msra.mxu0 0.0
        %1595 = vmatprep.subr.mxu0 0.0
        %1596 = vmatpush1.msra.mxu0 0.0
        %1597 = vmatprep.subr.mxu0 0.0
        %1598 = vmatpush1.msra.mxu0 0.0
        %1599 = vmatprep.subr.mxu0 0.0
        %1600 = vmatpush1.msra.mxu0 0.0
        %1601 = vmatprep.subr.mxu0 0.0
        %1602 = vmatpush1.msra.mxu0 0.0
        %1603 = vmatprep.subr.mxu0 0.0
        %1604 = vmatpush1.msra.mxu0 0.0
        %1605 = vmatprep.subr.mxu0 0.0
        %1606 = vmatpush1.msra.mxu0 0.0
        %1607 = vmatprep.subr.mxu0 0.0
        %1608 = vmatpush1.msra.mxu0 0.0
        %1609 = vmatprep.subr.mxu0 0.0
        %1610 = vmatpush1.msra.mxu0 0.0
        %1611 = vmatprep.subr.mxu0 0.0
        %1612 = vmatpush1.msra.mxu0 0.0
        %1613 = vmatprep.subr.mxu0 0.0
        %1614 = vmatpush1.msra.mxu0 0.0
        %1615 = vmatprep.subr.mxu0 0.0
        %1616 = vmatpush1.msra.mxu0 0.0
        %1617 = vmatprep.subr.mxu0 0.0
        %1618 = vmatpush1.msra.mxu0 0.0
        %1619 = vmatprep.subr.mxu0 0.0
        %1620 = vmatpush1.msra.mxu0 0.0
        %1621 = vmatprep.subr.mxu0 0.0
        %1622 = vmatpush1.msra.mxu0 0.0
        %1623 = vmatprep.subr.mxu0 0.0
        %1624 = vmatpush1.msra.mxu0 0.0
        %1625 = vmatprep.subr.mxu0 0.0
        %1626 = vmatpush1.msra.mxu0 0.0
        %1627 = vmatprep.subr.mxu0 0.0
        %1628 = vmatpush1.msra.mxu0 0.0
        %1629 = vmatprep.subr.mxu0 0.0
        %1630 = vmatpush1.msra.mxu0 0.0
        %1631 = vmatprep.subr.mxu0 0.0
        %1632 = vmatpush1.msra.mxu0 0.0
        %1633 = vmatprep.subr.mxu0 0.0
        %1634 = vmatpush1.msra.mxu0 0.0
        %1635 = vmatprep.subr.mxu0 0.0
        %1636 = vmatpush1.msra.mxu0 0.0
        %1637 = vmatprep.subr.mxu0 0.0
        %1638 = vmatpush1.msra.mxu0 0.0
        %1639 = vmatprep.subr.mxu0 0.0
        %1640 = vmatpush1.msra.mxu0 0.0
        %1641 = vmatprep.subr.mxu0 0.0
        %1642 = vmatpush1.msra.mxu0 0.0
        %1643 = vmatprep.mubr.f32.mxu0 0.0
        %1644 = vmatmul.mubr.f32.gmra.mrb[0].mxu0 %v1577
        %v1645 = vpop.f32.mrb[0].mxu0
        %v1646 = vadd.f32 %v1574, %v1645
        %v1647 = vpop.f32.mrb[0].mxu0
        %1648 = vdwg.mxu0
        %s1649 = scalar_lea.vmem %s6, 32
        %v1650 = vld [vmem:[%s1649] sm:$0xff]
        %v1651 = vld [vmem:[%s1649 + $0x8] sm:$0xff]
        %v1652 = vld [vmem:[%s1649 + $0x10] sm:$0xff]
        %v1653 = vld [vmem:[%s1649 + $0x18] sm:$0xff]
        %1655 = vrot.lane.b32.xlu0 %v1646, 96
        %v1656 = vpop.permute.xlu0 %1655
        %v1657 = vsel %vm829, %v1646, 0
        %v1659 = vsel %vm829, %v1656, 0
        %1661 = vmatprep.subr.mxu0 0.0
        %1662 = vmatpush1.xpose.msra.mxu0 %v1659
        %1663 = vmatprep.subr.mxu0 0.0
        %1664 = vmatpush1.xpose.msra.mxu0 0.0
        %1665 = vmatprep.subr.mxu0 0.0
        %1666 = vmatpush1.xpose.msra.mxu0 0.0
        %1667 = vmatprep.subr.mxu0 0.0
        %1668 = vmatpush1.xpose.msra.mxu0 0.0
        %1669 = vmatprep.subr.mxu0 0.0
        %1670 = vmatpush1.xpose.msra.mxu0 0.0
        %1671 = vmatprep.subr.mxu0 0.0
        %1672 = vmatpush1.xpose.msra.mxu0 0.0
        %1673 = vmatprep.subr.mxu0 0.0
        %1674 = vmatpush1.xpose.msra.mxu0 0.0
        %1675 = vmatprep.subr.mxu0 0.0
        %1676 = vmatpush1.xpose.msra.mxu0 0.0
        %1677 = vmatprep.subr.mxu0 0.0
        %1678 = vmatpush1.xpose.msra.mxu0 0.0
        %1679 = vmatprep.subr.mxu0 0.0
        %1680 = vmatpush1.xpose.msra.mxu0 0.0
        %1681 = vmatprep.subr.mxu0 0.0
        %1682 = vmatpush1.xpose.msra.mxu0 0.0
        %1683 = vmatprep.subr.mxu0 0.0
        %1684 = vmatpush1.xpose.msra.mxu0 0.0
        %1685 = vmatprep.subr.mxu0 0.0
        %1686 = vmatpush1.xpose.msra.mxu0 0.0
        %1687 = vmatprep.subr.mxu0 0.0
        %1688 = vmatpush1.xpose.msra.mxu0 0.0
        %1689 = vmatprep.subr.mxu0 0.0
        %1690 = vmatpush1.xpose.msra.mxu0 0.0
        %1691 = vmatprep.subr.mxu0 0.0
        %1692 = vmatpush1.xpose.msra.mxu0 0.0
        %1693 = vmatprep.subr.mxu0 0.0
        %1694 = vmatpush1.xpose.msra.mxu0 0.0
        %1695 = vmatprep.subr.mxu0 0.0
        %1696 = vmatpush1.xpose.msra.mxu0 0.0
        %1697 = vmatprep.subr.mxu0 0.0
        %1698 = vmatpush1.xpose.msra.mxu0 0.0
        %1699 = vmatprep.subr.mxu0 0.0
        %1700 = vmatpush1.xpose.msra.mxu0 0.0
        %1701 = vmatprep.subr.mxu0 0.0
        %1702 = vmatpush1.xpose.msra.mxu0 0.0
        %1703 = vmatprep.subr.mxu0 0.0
        %1704 = vmatpush1.xpose.msra.mxu0 0.0
        %1705 = vmatprep.subr.mxu0 0.0
        %1706 = vmatpush1.xpose.msra.mxu0 0.0
        %1707 = vmatprep.subr.mxu0 0.0
        %1708 = vmatpush1.xpose.msra.mxu0 0.0
        %1709 = vmatprep.subr.mxu0 0.0
        %1710 = vmatpush1.xpose.msra.mxu0 0.0
        %1711 = vmatprep.subr.mxu0 0.0
        %1712 = vmatpush1.xpose.msra.mxu0 0.0
        %1713 = vmatprep.subr.mxu0 0.0
        %1714 = vmatpush1.xpose.msra.mxu0 0.0
        %1715 = vmatprep.subr.mxu0 0.0
        %1716 = vmatpush1.xpose.msra.mxu0 0.0
        %1717 = vmatprep.subr.mxu0 0.0
        %1718 = vmatpush1.xpose.msra.mxu0 0.0
        %1719 = vmatprep.subr.mxu0 0.0
        %1720 = vmatpush1.xpose.msra.mxu0 0.0
        %1721 = vmatprep.subr.mxu0 0.0
        %1722 = vmatpush1.xpose.msra.mxu0 0.0
        %1723 = vmatprep.subr.mxu0 0.0
        %1724 = vmatpush1.xpose.msra.mxu0 0.0
        %1725 = vmatprep.mubr.f32.mxu0 0.0
        %1726 = vmatmul.mubr.f32.gmra.mrb[0].mxu0 %v1657
        %v1727 = vpop.f32.mrb[0].mxu0
        %v1728 = vadd.f32 0.0, %v1727
        %v1729 = vpop.f32.mrb[0].mxu0
        %1730 = vdwg.mxu0
        %v1731 = vmul.f32 %v1728, 0.25
        %v1732 = vadd.f32 %v1731, %v909
        %v1733 = vsel %vm912, %v1732, -inf
        %1734 = vmax.xlane.f32.xlu0 %v1733
        %v1735 = vpop.xlane.xlu0 %1734
        %v1736 = vsub.f32 %v1732, %v1735
        %v1737 = vmul.f32 %v1736, 1.442695
        %v1738 = vpow.pop %v1737
        %v1739 = vsel %vm912, %v1738, 0.0
        %1740 = vadd.xlane.f32.xlu0 %v1739
        %v1741 = vpop.xlane.xlu0 %1740
        %v1742 = vrcp.pop %v1741
        %v1743 = vmul.f32 %v1738, %v1742
        %1744 = vrot.lane.b32.xlu0 %v1646, 64
        %v1745 = vpop.permute.xlu0 %1744
        %v1748 = vsel %vm912, %v1743, 0
        %1750 = vmatprep.subr.mxu0 0.0
        %1751 = vmatpush1.msra.mxu0 %v1745
        %1752 = vmatprep.subr.mxu0 0.0
        %1753 = vmatpush1.msra.mxu0 0.0
        %1754 = vmatprep.subr.mxu0 0.0
        %1755 = vmatpush1.msra.mxu0 0.0
        %1756 = vmatprep.subr.mxu0 0.0
        %1757 = vmatpush1.msra.mxu0 0.0
        %1758 = vmatprep.subr.mxu0 0.0
        %1759 = vmatpush1.msra.mxu0 0.0
        %1760 = vmatprep.subr.mxu0 0.0
        %1761 = vmatpush1.msra.mxu0 0.0
        %1762 = vmatprep.subr.mxu0 0.0
        %1763 = vmatpush1.msra.mxu0 0.0
        %1764 = vmatprep.subr.mxu0 0.0
        %1765 = vmatpush1.msra.mxu0 0.0
        %1766 = vmatprep.subr.mxu0 0.0
        %1767 = vmatpush1.msra.mxu0 0.0
        %1768 = vmatprep.subr.mxu0 0.0
        %1769 = vmatpush1.msra.mxu0 0.0
        %1770 = vmatprep.subr.mxu0 0.0
        %1771 = vmatpush1.msra.mxu0 0.0
        %1772 = vmatprep.subr.mxu0 0.0
        %1773 = vmatpush1.msra.mxu0 0.0
        %1774 = vmatprep.subr.mxu0 0.0
        %1775 = vmatpush1.msra.mxu0 0.0
        %1776 = vmatprep.subr.mxu0 0.0
        %1777 = vmatpush1.msra.mxu0 0.0
        %1778 = vmatprep.subr.mxu0 0.0
        %1779 = vmatpush1.msra.mxu0 0.0
        %1780 = vmatprep.subr.mxu0 0.0
        %1781 = vmatpush1.msra.mxu0 0.0
        %1782 = vmatprep.subr.mxu0 0.0
        %1783 = vmatpush1.msra.mxu0 0.0
        %1784 = vmatprep.subr.mxu0 0.0
        %1785 = vmatpush1.msra.mxu0 0.0
        %1786 = vmatprep.subr.mxu0 0.0
        %1787 = vmatpush1.msra.mxu0 0.0
        %1788 = vmatprep.subr.mxu0 0.0
        %1789 = vmatpush1.msra.mxu0 0.0
        %1790 = vmatprep.subr.mxu0 0.0
        %1791 = vmatpush1.msra.mxu0 0.0
        %1792 = vmatprep.subr.mxu0 0.0
        %1793 = vmatpush1.msra.mxu0 0.0
        %1794 = vmatprep.subr.mxu0 0.0
        %1795 = vmatpush1.msra.mxu0 0.0
        %1796 = vmatprep.subr.mxu0 0.0
        %1797 = vmatpush1.msra.mxu0 0.0
        %1798 = vmatprep.subr.mxu0 0.0
        %1799 = vmatpush1.msra.mxu0 0.0
        %1800 = vmatprep.subr.mxu0 0.0
        %1801 = vmatpush1.msra.mxu0 0.0
        %1802 = vmatprep.subr.mxu0 0.0
        %1803 = vmatpush1.msra.mxu0 0.0
        %1804 = vmatprep.subr.mxu0 0.0
        %1805 = vmatpush1.msra.mxu0 0.0
        %1806 = vmatprep.subr.mxu0 0.0
        %1807 = vmatpush1.msra.mxu0 0.0
        %1808 = vmatprep.subr.mxu0 0.0
        %1809 = vmatpush1.msra.mxu0 0.0
        %1810 = vmatprep.subr.mxu0 0.0
        %1811 = vmatpush1.msra.mxu0 0.0
        %1812 = vmatprep.subr.mxu0 0.0
        %1813 = vmatpush1.msra.mxu0 0.0
        %1814 = vmatprep.mubr.f32.mxu0 0.0
        %1815 = vmatmul.mubr.f32.gmra.mrb[0].mxu0 %v1748
        %v1816 = vpop.f32.mrb[0].mxu0
        %v1817 = vadd.f32 0.0, %v1816
        %v1818 = vpop.f32.mrb[0].mxu0
        %1819 = vdwg.mxu0
        %1820 = vrot.lane.b32.xlu0 %v1646, 112
        %v1821 = vpop.permute.xlu0 %1820
        %1822 = vrot.lane.b32.xlu0 %v1646, 80
        %v1823 = vpop.permute.xlu0 %1822
        %v1824 = vsel %vm829, %v1821, 0
        %v1826 = vsel %vm829, %v1823, 0
        %1828 = vmatprep.subr.mxu0 0.0
        %1829 = vmatpush1.xpose.msra.mxu0 %v1826
        %1830 = vmatprep.subr.mxu0 0.0
        %1831 = vmatpush1.xpose.msra.mxu0 0.0
        %1832 = vmatprep.subr.mxu0 0.0
        %1833 = vmatpush1.xpose.msra.mxu0 0.0
        %1834 = vmatprep.subr.mxu0 0.0
        %1835 = vmatpush1.xpose.msra.mxu0 0.0
        %1836 = vmatprep.subr.mxu0 0.0
        %1837 = vmatpush1.xpose.msra.mxu0 0.0
        %1838 = vmatprep.subr.mxu0 0.0
        %1839 = vmatpush1.xpose.msra.mxu0 0.0
        %1840 = vmatprep.subr.mxu0 0.0
        %1841 = vmatpush1.xpose.msra.mxu0 0.0
        %1842 = vmatprep.subr.mxu0 0.0
        %1843 = vmatpush1.xpose.msra.mxu0 0.0
        %1844 = vmatprep.subr.mxu0 0.0
        %1845 = vmatpush1.xpose.msra.mxu0 0.0
        %1846 = vmatprep.subr.mxu0 0.0
        %1847 = vmatpush1.xpose.msra.mxu0 0.0
        %1848 = vmatprep.subr.mxu0 0.0
        %1849 = vmatpush1.xpose.msra.mxu0 0.0
        %1850 = vmatprep.subr.mxu0 0.0
        %1851 = vmatpush1.xpose.msra.mxu0 0.0
        %1852 = vmatprep.subr.mxu0 0.0
        %1853 = vmatpush1.xpose.msra.mxu0 0.0
        %1854 = vmatprep.subr.mxu0 0.0
        %1855 = vmatpush1.xpose.msra.mxu0 0.0
        %1856 = vmatprep.subr.mxu0 0.0
        %1857 = vmatpush1.xpose.msra.mxu0 0.0
        %1858 = vmatprep.subr.mxu0 0.0
        %1859 = vmatpush1.xpose.msra.mxu0 0.0
        %1860 = vmatprep.subr.mxu0 0.0
        %1861 = vmatpush1.xpose.msra.mxu0 0.0
        %1862 = vmatprep.subr.mxu0 0.0
        %1863 = vmatpush1.xpose.msra.mxu0 0.0
        %1864 = vmatprep.subr.mxu0 0.0
        %1865 = vmatpush1.xpose.msra.mxu0 0.0
        %1866 = vmatprep.subr.mxu0 0.0
        %1867 = vmatpush1.xpose.msra.mxu0 0.0
        %1868 = vmatprep.subr.mxu0 0.0
        %1869 = vmatpush1.xpose.msra.mxu0 0.0
        %1870 = vmatprep.subr.mxu0 0.0
        %1871 = vmatpush1.xpose.msra.mxu0 0.0
        %1872 = vmatprep.subr.mxu0 0.0
        %1873 = vmatpush1.xpose.msra.mxu0 0.0
        %1874 = vmatprep.subr.mxu0 0.0
        %1875 = vmatpush1.xpose.msra.mxu0 0.0
        %1876 = vmatprep.subr.mxu0 0.0
        %1877 = vmatpush1.xpose.msra.mxu0 0.0
        %1878 = vmatprep.subr.mxu0 0.0
        %1879 = vmatpush1.xpose.msra.mxu0 0.0
        %1880 = vmatprep.subr.mxu0 0.0
        %1881 = vmatpush1.xpose.msra.mxu0 0.0
        %1882 = vmatprep.subr.mxu0 0.0
        %1883 = vmatpush1.xpose.msra.mxu0 0.0
        %1884 = vmatprep.subr.mxu0 0.0
        %1885 = vmatpush1.xpose.msra.mxu0 0.0
        %1886 = vmatprep.subr.mxu0 0.0
        %1887 = vmatpush1.xpose.msra.mxu0 0.0
        %1888 = vmatprep.subr.mxu0 0.0
        %1889 = vmatpush1.xpose.msra.mxu0 0.0
        %1890 = vmatprep.subr.mxu0 0.0
        %1891 = vmatpush1.xpose.msra.mxu0 0.0
        %1892 = vmatprep.mubr.f32.mxu0 0.0
        %1893 = vmatmul.mubr.f32.gmra.mrb[0].mxu0 %v1824
        %v1894 = vpop.f32.mrb[0].mxu0
        %v1895 = vadd.f32 0.0, %v1894
        %v1896 = vpop.f32.mrb[0].mxu0
        %1897 = vdwg.mxu0
        %v1898 = vmul.f32 %v1895, 0.25
        %v1899 = vadd.f32 %v1898, %v909
        %v1900 = vsel %vm912, %v1899, -inf
        %1901 = vmax.xlane.f32.xlu0 %v1900
        %v1902 = vpop.xlane.xlu0 %1901
        %v1903 = vsub.f32 %v1899, %v1902
        %v1904 = vmul.f32 %v1903, 1.442695
        %v1905 = vpow.pop %v1904
        %v1906 = vsel %vm912, %v1905, 0.0
        %1907 = vadd.xlane.f32.xlu0 %v1906
        %v1908 = vpop.xlane.xlu0 %1907
        %v1909 = vrcp.pop %v1908
        %v1910 = vmul.f32 %v1905, %v1909
        %1911 = vrot.lane.b32.xlu0 %v1646, 48
        %v1912 = vpop.permute.xlu0 %1911
        %v1915 = vsel %vm912, %v1910, 0
        %1917 = vmatprep.subr.mxu0 0.0
        %1918 = vmatpush1.msra.mxu0 %v1912
        %1919 = vmatprep.subr.mxu0 0.0
        %1920 = vmatpush1.msra.mxu0 0.0
        %1921 = vmatprep.subr.mxu0 0.0
        %1922 = vmatpush1.msra.mxu0 0.0
        %1923 = vmatprep.subr.mxu0 0.0
        %1924 = vmatpush1.msra.mxu0 0.0
        %1925 = vmatprep.subr.mxu0 0.0
        %1926 = vmatpush1.msra.mxu0 0.0
        %1927 = vmatprep.subr.mxu0 0.0
        %1928 = vmatpush1.msra.mxu0 0.0
        %1929 = vmatprep.subr.mxu0 0.0
        %1930 = vmatpush1.msra.mxu0 0.0
        %1931 = vmatprep.subr.mxu0 0.0
        %1932 = vmatpush1.msra.mxu0 0.0
        %1933 = vmatprep.subr.mxu0 0.0
        %1934 = vmatpush1.msra.mxu0 0.0
        %1935 = vmatprep.subr.mxu0 0.0
        %1936 = vmatpush1.msra.mxu0 0.0
        %1937 = vmatprep.subr.mxu0 0.0
        %1938 = vmatpush1.msra.mxu0 0.0
        %1939 = vmatprep.subr.mxu0 0.0
        %1940 = vmatpush1.msra.mxu0 0.0
        %1941 = vmatprep.subr.mxu0 0.0
        %1942 = vmatpush1.msra.mxu0 0.0
        %1943 = vmatprep.subr.mxu0 0.0
        %1944 = vmatpush1.msra.mxu0 0.0
        %1945 = vmatprep.subr.mxu0 0.0
        %1946 = vmatpush1.msra.mxu0 0.0
        %1947 = vmatprep.subr.mxu0 0.0
        %1948 = vmatpush1.msra.mxu0 0.0
        %1949 = vmatprep.subr.mxu0 0.0
        %1950 = vmatpush1.msra.mxu0 0.0
        %1951 = vmatprep.subr.mxu0 0.0
        %1952 = vmatpush1.msra.mxu0 0.0
        %1953 = vmatprep.subr.mxu0 0.0
        %1954 = vmatpush1.msra.mxu0 0.0
        %1955 = vmatprep.subr.mxu0 0.0
        %1956 = vmatpush1.msra.mxu0 0.0
        %1957 = vmatprep.subr.mxu0 0.0
        %1958 = vmatpush1.msra.mxu0 0.0
        %1959 = vmatprep.subr.mxu0 0.0
        %1960 = vmatpush1.msra.mxu0 0.0
        %1961 = vmatprep.subr.mxu0 0.0
        %1962 = vmatpush1.msra.mxu0 0.0
        %1963 = vmatprep.subr.mxu0 0.0
        %1964 = vmatpush1.msra.mxu0 0.0
        %1965 = vmatprep.subr.mxu0 0.0
        %1966 = vmatpush1.msra.mxu0 0.0
        %1967 = vmatprep.subr.mxu0 0.0
        %1968 = vmatpush1.msra.mxu0 0.0
        %1969 = vmatprep.subr.mxu0 0.0
        %1970 = vmatpush1.msra.mxu0 0.0
        %1971 = vmatprep.subr.mxu0 0.0
        %1972 = vmatpush1.msra.mxu0 0.0
        %1973 = vmatprep.subr.mxu0 0.0
        %1974 = vmatpush1.msra.mxu0 0.0
        %1975 = vmatprep.subr.mxu0 0.0
        %1976 = vmatpush1.msra.mxu0 0.0
        %1977 = vmatprep.subr.mxu0 0.0
        %1978 = vmatpush1.msra.mxu0 0.0
        %1979 = vmatprep.subr.mxu0 0.0
        %1980 = vmatpush1.msra.mxu0 0.0
        %1981 = vmatprep.mubr.f32.mxu0 0.0
        %1982 = vmatmul.mubr.f32.gmra.mrb[0].mxu0 %v1915
        %v1983 = vpop.f32.mrb[0].mxu0
        %v1984 = vadd.f32 0.0, %v1983
        %v1985 = vpop.f32.mrb[0].mxu0
        %1986 = vdwg.mxu0
        %v1988 = vsel %vm829, %v1984, 0
        %1990 = vmatprep.subr.mxu0 0.0
        %1991 = vmatpush1.msra.mxu0 %v1652
        %1992 = vmatprep.subr.mxu0 0.0
        %1993 = vmatpush1.msra.mxu0 %v1653
        %1994 = vmatprep.subr.mxu0 0.0
        %1995 = vmatpush1.msra.mxu0 0.0
        %1996 = vmatprep.subr.mxu0 0.0
        %1997 = vmatpush1.msra.mxu0 0.0
        %1998 = vmatprep.subr.mxu0 0.0
        %1999 = vmatpush1.msra.mxu0 0.0
        %2000 = vmatprep.subr.mxu0 0.0
        %2001 = vmatpush1.msra.mxu0 0.0
        %2002 = vmatprep.subr.mxu0 0.0
        %2003 = vmatpush1.msra.mxu0 0.0
        %2004 = vmatprep.subr.mxu0 0.0
        %2005 = vmatpush1.msra.mxu0 0.0
        %2006 = vmatprep.subr.mxu0 0.0
        %2007 = vmatpush1.msra.mxu0 0.0
        %2008 = vmatprep.subr.mxu0 0.0
        %2009 = vmatpush1.msra.mxu0 0.0
        %2010 = vmatprep.subr.mxu0 0.0
        %2011 = vmatpush1.msra.mxu0 0.0
        %2012 = vmatprep.subr.mxu0 0.0
        %2013 = vmatpush1.msra.mxu0 0.0
        %2014 = vmatprep.subr.mxu0 0.0
        %2015 = vmatpush1.msra.mxu0 0.0
        %2016 = vmatprep.subr.mxu0 0.0
        %2017 = vmatpush1.msra.mxu0 0.0
        %2018 = vmatprep.subr.mxu0 0.0
        %2019 = vmatpush1.msra.mxu0 0.0
        %2020 = vmatprep.subr.mxu0 0.0
        %2021 = vmatpush1.msra.mxu0 0.0
        %2022 = vmatprep.subr.mxu0 0.0
        %2023 = vmatpush1.msra.mxu0 0.0
        %2024 = vmatprep.subr.mxu0 0.0
        %2025 = vmatpush1.msra.mxu0 0.0
        %2026 = vmatprep.subr.mxu0 0.0
        %2027 = vmatpush1.msra.mxu0 0.0
        %2028 = vmatprep.subr.mxu0 0.0
        %2029 = vmatpush1.msra.mxu0 0.0
        %2030 = vmatprep.subr.mxu0 0.0
        %2031 = vmatpush1.msra.mxu0 0.0
        %2032 = vmatprep.subr.mxu0 0.0
        %2033 = vmatpush1.msra.mxu0 0.0
        %2034 = vmatprep.subr.mxu0 0.0
        %2035 = vmatpush1.msra.mxu0 0.0
        %2036 = vmatprep.subr.mxu0 0.0
        %2037 = vmatpush1.msra.mxu0 0.0
        %2038 = vmatprep.subr.mxu0 0.0
        %2039 = vmatpush1.msra.mxu0 0.0
        %2040 = vmatprep.subr.mxu0 0.0
        %2041 = vmatpush1.msra.mxu0 0.0
        %2042 = vmatprep.subr.mxu0 0.0
        %2043 = vmatpush1.msra.mxu0 0.0
        %2044 = vmatprep.subr.mxu0 0.0
        %2045 = vmatpush1.msra.mxu0 0.0
        %2046 = vmatprep.subr.mxu0 0.0
        %2047 = vmatpush1.msra.mxu0 0.0
        %2048 = vmatprep.subr.mxu0 0.0
        %2049 = vmatpush1.msra.mxu0 0.0
        %2050 = vmatprep.subr.mxu0 0.0
        %2051 = vmatpush1.msra.mxu0 0.0
        %2052 = vmatprep.subr.mxu0 0.0
        %2053 = vmatpush1.msra.mxu0 0.0
        %2054 = vmatprep.mubr.f32.mxu0 0.0
        %2055 = vmatmul.mubr.f32.gmra.mrb[0].mxu0 %v1988
        %v2056 = vpop.f32.mrb[0].mxu0
        %v2057 = vadd.f32 0.0, %v2056
        %v2058 = vpop.f32.mrb[0].mxu0
        %2059 = vdwg.mxu0
        %v2061 = vsel %vm829, %v1817, 0
        %2063 = vmatprep.subr.mxu0 0.0
        %2064 = vmatpush1.msra.mxu0 %v1650
        %2065 = vmatprep.subr.mxu0 0.0
        %2066 = vmatpush1.msra.mxu0 %v1651
        %2067 = vmatprep.subr.mxu0 0.0
        %2068 = vmatpush1.msra.mxu0 0.0
        %2069 = vmatprep.subr.mxu0 0.0
        %2070 = vmatpush1.msra.mxu0 0.0
        %2071 = vmatprep.subr.mxu0 0.0
        %2072 = vmatpush1.msra.mxu0 0.0
        %2073 = vmatprep.subr.mxu0 0.0
        %2074 = vmatpush1.msra.mxu0 0.0
        %2075 = vmatprep.subr.mxu0 0.0
        %2076 = vmatpush1.msra.mxu0 0.0
        %2077 = vmatprep.subr.mxu0 0.0
        %2078 = vmatpush1.msra.mxu0 0.0
        %2079 = vmatprep.subr.mxu0 0.0
        %2080 = vmatpush1.msra.mxu0 0.0
        %2081 = vmatprep.subr.mxu0 0.0
        %2082 = vmatpush1.msra.mxu0 0.0
        %2083 = vmatprep.subr.mxu0 0.0
        %2084 = vmatpush1.msra.mxu0 0.0
        %2085 = vmatprep.subr.mxu0 0.0
        %2086 = vmatpush1.msra.mxu0 0.0
        %2087 = vmatprep.subr.mxu0 0.0
        %2088 = vmatpush1.msra.mxu0 0.0
        %2089 = vmatprep.subr.mxu0 0.0
        %2090 = vmatpush1.msra.mxu0 0.0
        %2091 = vmatprep.subr.mxu0 0.0
        %2092 = vmatpush1.msra.mxu0 0.0
        %2093 = vmatprep.subr.mxu0 0.0
        %2094 = vmatpush1.msra.mxu0 0.0
        %2095 = vmatprep.subr.mxu0 0.0
        %2096 = vmatpush1.msra.mxu0 0.0
        %2097 = vmatprep.subr.mxu0 0.0
        %2098 = vmatpush1.msra.mxu0 0.0
        %2099 = vmatprep.subr.mxu0 0.0
        %2100 = vmatpush1.msra.mxu0 0.0
        %2101 = vmatprep.subr.mxu0 0.0
        %2102 = vmatpush1.msra.mxu0 0.0
        %2103 = vmatprep.subr.mxu0 0.0
        %2104 = vmatpush1.msra.mxu0 0.0
        %2105 = vmatprep.subr.mxu0 0.0
        %2106 = vmatpush1.msra.mxu0 0.0
        %2107 = vmatprep.subr.mxu0 0.0
        %2108 = vmatpush1.msra.mxu0 0.0
        %2109 = vmatprep.subr.mxu0 0.0
        %2110 = vmatpush1.msra.mxu0 0.0
        %2111 = vmatprep.subr.mxu0 0.0
        %2112 = vmatpush1.msra.mxu0 0.0
        %2113 = vmatprep.subr.mxu0 0.0
        %2114 = vmatpush1.msra.mxu0 0.0
        %2115 = vmatprep.subr.mxu0 0.0
        %2116 = vmatpush1.msra.mxu0 0.0
        %2117 = vmatprep.subr.mxu0 0.0
        %2118 = vmatpush1.msra.mxu0 0.0
        %2119 = vmatprep.subr.mxu0 0.0
        %2120 = vmatpush1.msra.mxu0 0.0
        %2121 = vmatprep.subr.mxu0 0.0
        %2122 = vmatpush1.msra.mxu0 0.0
        %2123 = vmatprep.subr.mxu0 0.0
        %2124 = vmatpush1.msra.mxu0 0.0
        %2125 = vmatprep.subr.mxu0 0.0
        %2126 = vmatpush1.msra.mxu0 0.0
        %2127 = vmatprep.mubr.f32.mxu0 0.0
        %2128 = vmatmul.mubr.f32.gmra.mrb[0].mxu0 %v2061
        %v2129 = vpop.f32.mrb[0].mxu0
        %v2130 = vadd.f32 %v2057, %v2129
        %v2131 = vpop.f32.mrb[0].mxu0
        %2132 = vdwg.mxu0
        %s2133 = scalar_lea.vmem [#allocation7], 1
        %v2134 = vld [vmem:[%s2133] sm:$0x1]
        %v2136 = vlaneseq
        %v2137 = vshrl.u32 %v2136, 7
        %v2138 = vsub.s32 0, %v2137
        %v2139 = vrot.slane %v2134, %v2138
        %v2141 = vadd.f32 %v2130, %v2139
        %v2142 = vadd.f32 %v2141, %v1562
        %s2143 = scalar_lea.vmem [#allocation9], 1
        %v2144 = vld [vmem:[%s2143] sm:$0x1]
        %s2145 = scalar_lea.vmem [#allocation10], 1
        %v2146 = vld [vmem:[%s2145] sm:$0x1]
        %v2147 = vsel %vm709, %v2142, 0.0
        %2148 = vadd.xlane.f32.xlu0 %v2147
        %v2149 = vpop.xlane.xlu0 %2148
        %v2150 = vmul.f32 %v2149, %v713
        %v2151 = vsub.f32 %v2142, %v2150
        %v2152 = vmul.f32 %v2151, %v2151
        %v2153 = vsel %vm709, %v2152, 0.0
        %2154 = vadd.xlane.f32.xlu0 %v2153
        %v2155 = vpop.xlane.xlu0 %2154
        %v2156 = vmul.f32 %v2155, %v713
        %v2157 = vadd.f32 %v2156, 1e-12
        %v2158 = vrsqrt.pop %v2157
        %v2159 = vmul.f32 %v2151, %v2158
        %v2161 = vlaneseq
        %v2162 = vshrl.u32 %v2161, 7
        %v2163 = vsub.s32 0, %v2162
        %v2164 = vrot.slane %v2144, %v2163
        %v2166 = vmul.f32 %v2159, %v2164
        %v2168 = vlaneseq
        %v2169 = vshrl.u32 %v2168, 7
        %v2170 = vsub.s32 0, %v2169
        %v2171 = vrot.slane %v2146, %v2170
        %v2173 = vadd.f32 %v2166, %v2171
        %s2174 = scalar_lea.vmem %s10, 32
        %v2175 = vld [vmem:[%s2174] sm:$0xff]
        %v2176 = vld [vmem:[%s2174 + $0x8] sm:$0xff]
        %v2177 = vld [vmem:[%s2174 + $0x10] sm:$0xff]
        %v2178 = vld [vmem:[%s2174 + $0x18] sm:$0xff]
        %s2179 = scalar_lea.vmem [#allocation12], 1
        %v2180 = vld [vmem:[%s2179] sm:$0x1]
        %v2182 = vlaneseq
        %v2183 = vshrl.u32 %v2182, 7
        %v2184 = vsub.s32 0, %v2183
        %v2185 = vrot.slane %v2180, %v2184
        %v2188 = vsel %vm709, %v2173, 0
        %2190 = vmatprep.subr.mxu0 0.0
        %2191 = vmatpush1.msra.mxu0 %v2175
        %2192 = vmatprep.subr.mxu0 0.0
        %2193 = vmatpush1.msra.mxu0 %v2176
        %2194 = vmatprep.subr.mxu0 0.0
        %2195 = vmatpush1.msra.mxu0 %v2177
        %2196 = vmatprep.subr.mxu0 0.0
        %2197 = vmatpush1.msra.mxu0 %v2178
        %2198 = vmatprep.subr.mxu0 0.0
        %2199 = vmatpush1.msra.mxu0 0.0
        %2200 = vmatprep.subr.mxu0 0.0
        %2201 = vmatpush1.msra.mxu0 0.0
        %2202 = vmatprep.subr.mxu0 0.0
        %2203 = vmatpush1.msra.mxu0 0.0
        %2204 = vmatprep.subr.mxu0 0.0
        %2205 = vmatpush1.msra.mxu0 0.0
        %2206 = vmatprep.subr.mxu0 0.0
        %2207 = vmatpush1.msra.mxu0 0.0
        %2208 = vmatprep.subr.mxu0 0.0
        %2209 = vmatpush1.msra.mxu0 0.0
        %2210 = vmatprep.subr.mxu0 0.0
        %2211 = vmatpush1.msra.mxu0 0.0
        %2212 = vmatprep.subr.mxu0 0.0
        %2213 = vmatpush1.msra.mxu0 0.0
        %2214 = vmatprep.subr.mxu0 0.0
        %2215 = vmatpush1.msra.mxu0 0.0
        %2216 = vmatprep.subr.mxu0 0.0
        %2217 = vmatpush1.msra.mxu0 0.0
        %2218 = vmatprep.subr.mxu0 0.0
        %2219 = vmatpush1.msra.mxu0 0.0
        %2220 = vmatprep.subr.mxu0 0.0
        %2221 = vmatpush1.msra.mxu0 0.0
        %2222 = vmatprep.subr.mxu0 0.0
        %2223 = vmatpush1.msra.mxu0 0.0
        %2224 = vmatprep.subr.mxu0 0.0
        %2225 = vmatpush1.msra.mxu0 0.0
        %2226 = vmatprep.subr.mxu0 0.0
        %2227 = vmatpush1.msra.mxu0 0.0
        %2228 = vmatprep.subr.mxu0 0.0
        %2229 = vmatpush1.msra.mxu0 0.0
        %2230 = vmatprep.subr.mxu0 0.0
        %2231 = vmatpush1.msra.mxu0 0.0
        %2232 = vmatprep.subr.mxu0 0.0
        %2233 = vmatpush1.msra.mxu0 0.0
        %2234 = vmatprep.subr.mxu0 0.0
        %2235 = vmatpush1.msra.mxu0 0.0
        %2236 = vmatprep.subr.mxu0 0.0
        %2237 = vmatpush1.msra.mxu0 0.0
        %2238 = vmatprep.subr.mxu0 0.0
        %2239 = vmatpush1.msra.mxu0 0.0
        %2240 = vmatprep.subr.mxu0 0.0
        %2241 = vmatpush1.msra.mxu0 0.0
        %2242 = vmatprep.subr.mxu0 0.0
        %2243 = vmatpush1.msra.mxu0 0.0
        %2244 = vmatprep.subr.mxu0 0.0
        %2245 = vmatpush1.msra.mxu0 0.0
        %2246 = vmatprep.subr.mxu0 0.0
        %2247 = vmatpush1.msra.mxu0 0.0
        %2248 = vmatprep.subr.mxu0 0.0
        %2249 = vmatpush1.msra.mxu0 0.0
        %2250 = vmatprep.subr.mxu0 0.0
        %2251 = vmatpush1.msra.mxu0 0.0
        %2252 = vmatprep.subr.mxu0 0.0
        %2253 = vmatpush1.msra.mxu0 0.0
        %2254 = vmatprep.mubr.f32.mxu0 0.0
        %2255 = vmatmul.mubr.f32.gmra.mrb[0].mxu0 %v2188
        %v2256 = vpop.f32.mrb[0].mxu0
        %v2257 = vadd.f32 %v2185, %v2256
        %v2258 = vpop.f32.mrb[0].mxu0
        %2259 = vdwg.mxu0
        %v2260 = vmul.f32 %v2257, %v2257
        %v2261 = vmul.f32 %v2257, %v2260
        %v2262 = vmul.f32 %v2261, 0.044715
        %v2263 = vadd.f32 %v2257, %v2262
        %v2264 = vmul.f32 %v2263, 0.7978846
        %v2265 = vtanh.pop %v2264
        %v2266 = vadd.f32 %v2265, 1.0
        %v2267 = vmul.f32 %v2266, 0.5
        %v2268 = vmul.f32 %v2257, %v2267
        %s2269 = scalar_lea.vmem %s12, 64
        %v2270 = vld [vmem:[%s2269] sm:$0xff]
        %v2271 = vld [vmem:[%s2269 + $0x8] sm:$0xff]
        %v2272 = vld [vmem:[%s2269 + $0x10] sm:$0xff]
        %v2273 = vld [vmem:[%s2269 + $0x18] sm:$0xff]
        %v2274 = vld [vmem:[%s2269 + $0x20] sm:$0xff]
        %v2275 = vld [vmem:[%s2269 + $0x28] sm:$0xff]
        %v2276 = vld [vmem:[%s2269 + $0x30] sm:$0xff]
        %v2277 = vld [vmem:[%s2269 + $0x38] sm:$0xff]
        %s2278 = scalar_lea.vmem [#allocation13], 1
        %v2279 = vld [vmem:[%s2278] sm:$0x1]
        %v2281 = vlaneseq
        %v2282 = vshrl.u32 %v2281, 7
        %v2283 = vsub.s32 0, %v2282
        %v2284 = vrot.slane %v2279, %v2283
        %v2287 = vsel %vm1459, %v2268, 0
        %2289 = vmatprep.subr.mxu0 0.0
        %2290 = vmatpush1.msra.mxu0 %v2270
        %2291 = vmatprep.subr.mxu0 0.0
        %2292 = vmatpush1.msra.mxu0 %v2271
        %2293 = vmatprep.subr.mxu0 0.0
        %2294 = vmatpush1.msra.mxu0 %v2272
        %2295 = vmatprep.subr.mxu0 0.0
        %2296 = vmatpush1.msra.mxu0 %v2273
        %2297 = vmatprep.subr.mxu0 0.0
        %2298 = vmatpush1.msra.mxu0 %v2274
        %2299 = vmatprep.subr.mxu0 0.0
        %2300 = vmatpush1.msra.mxu0 %v2275
        %2301 = vmatprep.subr.mxu0 0.0
        %2302 = vmatpush1.msra.mxu0 %v2276
        %2303 = vmatprep.subr.mxu0 0.0
        %2304 = vmatpush1.msra.mxu0 %v2277
        %2305 = vmatprep.subr.mxu0 0.0
        %2306 = vmatpush1.msra.mxu0 0.0
        %2307 = vmatprep.subr.mxu0 0.0
        %2308 = vmatpush1.msra.mxu0 0.0
        %2309 = vmatprep.subr.mxu0 0.0
        %2310 = vmatpush1.msra.mxu0 0.0
        %2311 = vmatprep.subr.mxu0 0.0
        %2312 = vmatpush1.msra.mxu0 0.0
        %2313 = vmatprep.subr.mxu0 0.0
        %2314 = vmatpush1.msra.mxu0 0.0
        %2315 = vmatprep.subr.mxu0 0.0
        %2316 = vmatpush1.msra.mxu0 0.0
        %2317 = vmatprep.subr.mxu0 0.0
        %2318 = vmatpush1.msra.mxu0 0.0
        %2319 = vmatprep.subr.mxu0 0.0
        %2320 = vmatpush1.msra.mxu0 0.0
        %2321 = vmatprep.subr.mxu0 0.0
        %2322 = vmatpush1.msra.mxu0 0.0
        %2323 = vmatprep.subr.mxu0 0.0
        %2324 = vmatpush1.msra.mxu0 0.0
        %2325 = vmatprep.subr.mxu0 0.0
        %2326 = vmatpush1.msra.mxu0 0.0
        %2327 = vmatprep.subr.mxu0 0.0
        %2328 = vmatpush1.msra.mxu0 0.0
        %2329 = vmatprep.subr.mxu0 0.0
        %2330 = vmatpush1.msra.mxu0 0.0
        %2331 = vmatprep.subr.mxu0 0.0
        %2332 = vmatpush1.msra.mxu0 0.0
        %2333 = vmatprep.subr.mxu0 0.0
        %2334 = vmatpush1.msra.mxu0 0.0
        %2335 = vmatprep.subr.mxu0 0.0
        %2336 = vmatpush1.msra.mxu0 0.0
        %2337 = vmatprep.subr.mxu0 0.0
        %2338 = vmatpush1.msra.mxu0 0.0
        %2339 = vmatprep.subr.mxu0 0.0
        %2340 = vmatpush1.msra.mxu0 0.0
        %2341 = vmatprep.subr.mxu0 0.0
        %2342 = vmatpush1.msra.mxu0 0.0
        %2343 = vmatprep.subr.mxu0 0.0
        %2344 = vmatpush1.msra.mxu0 0.0
        %2345 = vmatprep.subr.mxu0 0.0
        %2346 = vmatpush1.msra.mxu0 0.0
        %2347 = vmatprep.subr.mxu0 0.0
        %2348 = vmatpush1.msra.mxu0 0.0
        %2349 = vmatprep.subr.mxu0 0.0
        %2350 = vmatpush1.msra.mxu0 0.0
        %2351 = vmatprep.subr.mxu0 0.0
        %2352 = vmatpush1.msra.mxu0 0.0
        %2353 = vmatprep.mubr.f32.mxu0 0.0
        %2354 = vmatmul.mubr.f32.gmra.mrb[0].mxu0 %v2287
        %v2355 = vpop.f32.mrb[0].mxu0
        %v2356 = vadd.f32 %v2284, %v2355
        %v2357 = vpop.f32.mrb[0].mxu0
        %2358 = vdwg.mxu0
        %v2359 = vadd.f32 %v2356, %v2173
        %s2360 = scalar_lea.vmem %s14, 1
        %v2361 = vld [vmem:[%s2360] sm:$0x1]
        %s2362 = scalar_lea.vmem %s15, 1
        %v2363 = vld [vmem:[%s2362] sm:$0x1]
        %v2364 = vsel %vm709, %v2359, 0.0
        %2365 = vadd.xlane.f32.xlu0 %v2364
        %v2366 = vpop.xlane.xlu0 %2365
        %v2367 = vmul.f32 %v2366, %v713
        %v2368 = vsub.f32 %v2359, %v2367
        %v2369 = vmul.f32 %v2368, %v2368
        %v2370 = vsel %vm709, %v2369, 0.0
        %2371 = vadd.xlane.f32.xlu0 %v2370
        %v2372 = vpop.xlane.xlu0 %2371
        %v2373 = vmul.f32 %v2372, %v713
        %v2374 = vadd.f32 %v2373, 1e-12
        %v2375 = vrsqrt.pop %v2374
        %v2376 = vmul.f32 %v2368, %v2375
        %v2378 = vlaneseq
        %v2379 = vshrl.u32 %v2378, 7
        %v2380 = vsub.s32 0, %v2379
        %v2381 = vrot.slane %v2361, %v2380
        %v2383 = vmul.f32 %v2376, %v2381
        %v2385 = vlaneseq
        %v2386 = vshrl.u32 %v2385, 7
        %v2387 = vsub.s32 0, %v2386
        %v2388 = vrot.slane %v2363, %v2387
        %v2390 = vadd.f32 %v2383, %v2388
        %v2391 = vld [vmem:[%s16] sm:$0xff]
        %v2392 = vld [vmem:[%s16 + $0x8] sm:$0xff]
        %v2393 = vld [vmem:[%s16 + $0x10] sm:$0xff]
        %v2394 = vld [vmem:[%s16 + $0x18] sm:$0xff]
        %v2395 = vld [vmem:[%s17] sm:$0x1]
        %v2397 = vlaneseq
        %v2398 = vshrl.u32 %v2397, 7
        %v2399 = vsub.s32 0, %v2398
        %v2400 = vrot.slane %v2395, %v2399
        %v2403 = vsel %vm709, %v2390, 0
        %2405 = vmatprep.subr.mxu0 0.0
        %2406 = vmatpush1.msra.mxu0 %v2391
        %2407 = vmatprep.subr.mxu0 0.0
        %2408 = vmatpush1.msra.mxu0 %v2392
        %2409 = vmatprep.subr.mxu0 0.0
        %2410 = vmatpush1.msra.mxu0 %v2393
        %2411 = vmatprep.subr.mxu0 0.0
        %2412 = vmatpush1.msra.mxu0 %v2394
        %2413 = vmatprep.subr.mxu0 0.0
        %2414 = vmatpush1.msra.mxu0 0.0
        %2415 = vmatprep.subr.mxu0 0.0
        %2416 = vmatpush1.msra.mxu0 0.0
        %2417 = vmatprep.subr.mxu0 0.0
        %2418 = vmatpush1.msra.mxu0 0.0
        %2419 = vmatprep.subr.mxu0 0.0
        %2420 = vmatpush1.msra.mxu0 0.0
        %2421 = vmatprep.subr.mxu0 0.0
        %2422 = vmatpush1.msra.mxu0 0.0
        %2423 = vmatprep.subr.mxu0 0.0
        %2424 = vmatpush1.msra.mxu0 0.0
        %2425 = vmatprep.subr.mxu0 0.0
        %2426 = vmatpush1.msra.mxu0 0.0
        %2427 = vmatprep.subr.mxu0 0.0
        %2428 = vmatpush1.msra.mxu0 0.0
        %2429 = vmatprep.subr.mxu0 0.0
        %2430 = vmatpush1.msra.mxu0 0.0
        %2431 = vmatprep.subr.mxu0 0.0
        %2432 = vmatpush1.msra.mxu0 0.0
        %2433 = vmatprep.subr.mxu0 0.0
        %2434 = vmatpush1.msra.mxu0 0.0
        %2435 = vmatprep.subr.mxu0 0.0
        %2436 = vmatpush1.msra.mxu0 0.0
        %2437 = vmatprep.subr.mxu0 0.0
        %2438 = vmatpush1.msra.mxu0 0.0
        %2439 = vmatprep.subr.mxu0 0.0
        %2440 = vmatpush1.msra.mxu0 0.0
        %2441 = vmatprep.subr.mxu0 0.0
        %2442 = vmatpush1.msra.mxu0 0.0
        %2443 = vmatprep.subr.mxu0 0.0
        %2444 = vmatpush1.msra.mxu0 0.0
        %2445 = vmatprep.subr.mxu0 0.0
        %2446 = vmatpush1.msra.mxu0 0.0
        %2447 = vmatprep.subr.mxu0 0.0
        %2448 = vmatpush1.msra.mxu0 0.0
        %2449 = vmatprep.subr.mxu0 0.0
        %2450 = vmatpush1.msra.mxu0 0.0
        %2451 = vmatprep.subr.mxu0 0.0
        %2452 = vmatpush1.msra.mxu0 0.0
        %2453 = vmatprep.subr.mxu0 0.0
        %2454 = vmatpush1.msra.mxu0 0.0
        %2455 = vmatprep.subr.mxu0 0.0
        %2456 = vmatpush1.msra.mxu0 0.0
        %2457 = vmatprep.subr.mxu0 0.0
        %2458 = vmatpush1.msra.mxu0 0.0
        %2459 = vmatprep.subr.mxu0 0.0
        %2460 = vmatpush1.msra.mxu0 0.0
        %2461 = vmatprep.subr.mxu0 0.0
        %2462 = vmatpush1.msra.mxu0 0.0
        %2463 = vmatprep.subr.mxu0 0.0
        %2464 = vmatpush1.msra.mxu0 0.0
        %2465 = vmatprep.subr.mxu0 0.0
        %2466 = vmatpush1.msra.mxu0 0.0
        %2467 = vmatprep.subr.mxu0 0.0
        %2468 = vmatpush1.msra.mxu0 0.0
        %2469 = vmatprep.mubr.f32.mxu0 0.0
        %2470 = vmatmul.mubr.f32.gmra.mrb[0].mxu0 %v2403
        %v2471 = vpop.f32.mrb[0].mxu0
        %v2472 = vadd.f32 %v2400, %v2471
        %v2473 = vpop.f32.mrb[0].mxu0
        %2474 = vdwg.mxu0
        %vm2475 = vcmask 31744
        %2476 = vst.msk [vmem:[%s704] sm:$0xff] %vm2475, %v2472
        %p2477 = scmp.lt.s32.totalorder %s36, 1
        %s2478 = scalar_select %p2477, %s36, 1
        %s2479 = smul.addr %s2478, 8
        %s2480 = scalar_lea.vmem %s18, %s2479
        // Predicated region
        $region125: #{tpu_custom_call.1} parent=91 // pred_check
          %p2481 = pneg %p442
        $region126: #{tpu_custom_call.1} parent=91 // pred_check_branch
          %2483 = sbr.rel (%p2481) target = $region128
        $region127: #{tpu_custom_call.1} parent=91 // pred_region
          _
        $region128: #{tpu_custom_call.1} parent=91 // pred_fallthru
          _
      $region92: #{tpu_custom_call.1} parent=5 // pred_fallthru
        _
      %p2484 = scmp.le.s32.totalorder 2, %s31
      // Predicated region
      $region129: #{tpu_custom_call.1} parent=5 // pred_check
        %p2485 = pneg %p2484
      $region130: #{tpu_custom_call.1} parent=5 // pred_check_branch
        %2487 = sbr.rel (%p2485) target = $region132
      $region131: #{tpu_custom_call.1} parent=5 // pred_region
        %s2488 = ssub.s32 %s31, 2
        // Predicated region
        $region133: #{tpu_custom_call.1} parent=131 // pred_check
          %p2489 = pneg %p448
        $region134: #{tpu_custom_call.1} parent=131 // pred_check_branch
          %2491 = sbr.rel (%p2489) target = $region136
        $region135: #{tpu_custom_call.1} parent=131 // pred_region
          %p2492 = scmp.lt.s32.totalorder %s37, 1
          %s2493 = scalar_select %p2492, %s37, 1
          %s2494 = smul.addr %s2493, 8
          %s2495 = scalar_lea.vmem %s18, %s2494
        $region136: #{tpu_custom_call.1} parent=131 // pred_fallthru
          _
      $region132: #{tpu_custom_call.1} parent=5 // pred_fallthru
        _
    $region6: #{tpu_custom_call.1} parent=1 // loop_footer
      %s35 = sadd.s32 1, %s31
    $region7: #{tpu_custom_call.1} parent=1 // loop_footer_branch
      %30 = sbr.rel target = $region3
    $region8: #{tpu_custom_call.1} parent=1 // loop_exit
      _
    %2496 = vsyncpa [#allocation3], 1
    %s2497 = scalar_lea.sflag [#allocation3], 1
    %2498 = vsyncpa %s2497, 1
    %2499 = vsyncpa [#allocation5], 1
    %2500 = vsyncpa [#allocation8], 1
    %2501 = vsyncpa [#allocation11], 1
    %2502 = vsyncpa [#allocation14], 1

</llo_original>
